<compile_context>
chip_gen: v7x
topology: tpu7x:2x2x1
jax: 0.10.0
libtpu: 0.0.40
codegen_flags: <defaults>
</compile_context>

<pallas_src>
import numpy as np
import jax
import jax.numpy as jnp
from jax.experimental import pallas as pl
from jax.experimental.pallas import tpu as pltpu

# ---- module hyper-parameters (PyTorch defaults) ------------------------------
N_CONVS = 8
CH_IN = 16
CH_OUT = 128
CH_EACH = CH_OUT // N_CONVS          # 16 out-channels per conv == channels per group
K_MAX = 2 * (N_CONVS - 1) + 1        # 15 (largest conv kernel size)
PAD = N_CONVS - 1                    # 7  ("same" halo for the largest kernel)
SQEX_RED = 16                        # SE reduction ratio
HID = CH_OUT // SQEX_RED             # 8
EPS = 1e-5                           # GroupNorm eps


def _feature_extraction_kernel(x_ref, w_ref, b_ref, gamma_ref, beta_ref,
                               g_ref, gt_ref, w1_ref, b1_ref, w2_ref, b2_ref,
                               o_ref):
    k_max = w_ref.shape[0]
    c_out = o_ref.shape[1]
    seq_l = o_ref.shape[2]
    n_groups = g_ref.shape[0]
    ch_per_group = c_out // n_groups

    x = x_ref[0]                                           # (C_in, L + 2*PAD)

    # ---- conv bank: all kernel sizes packed (centered, zero-padded) into K_MAX
    # taps; each tap is a (C_out, C_in) x (C_in, L) matmul on a shifted slice.
    acc = jnp.zeros((c_out, seq_l), jnp.float32)
    for t in range(k_max):                                 # static unroll
        acc = acc + jnp.dot(w_ref[t], x[:, t:t + seq_l],
                            preferred_element_type=jnp.float32)
    acc = acc + b_ref[...]                                 # (C_out, 1) broadcast

    # ---- GroupNorm(num_groups=N_CONVS) via group-indicator matmuls -----------
    inv_n = 1.0 / (ch_per_group * seq_l)
    g_sum = jnp.sum(jnp.dot(g_ref[...], acc,
                            preferred_element_type=jnp.float32),
                    axis=1, keepdims=True)                 # (G, 1)
    g_sqsum = jnp.sum(jnp.dot(g_ref[...], acc * acc,
                              preferred_element_type=jnp.float32),
                      axis=1, keepdims=True)               # (G, 1)
    g_mean = g_sum * inv_n
    g_var = g_sqsum * inv_n - g_mean * g_mean
    g_rstd = jax.lax.rsqrt(g_var + EPS)
    mean_map = jnp.dot(gt_ref[...],
                       jnp.broadcast_to(g_mean, (n_groups, seq_l)),
                       preferred_element_type=jnp.float32)  # (C_out, L)
    rstd_map = jnp.dot(gt_ref[...],
                       jnp.broadcast_to(g_rstd, (n_groups, seq_l)),
                       preferred_element_type=jnp.float32)  # (C_out, L)
    y = (acc - mean_map) * rstd_map * gamma_ref[...] + beta_ref[...]

    # ---- SqEx1d gate: avg-pool -> FC -> ReLU -> FC -> sigmoid -> scale -------
    pooled = jnp.sum(y, axis=1, keepdims=True) * (1.0 / seq_l)   # (C_out, 1)
    pooled_b = jnp.broadcast_to(pooled, (c_out, seq_l))          # (C_out, L)
    z = jnp.maximum(jnp.dot(w1_ref[...], pooled_b,
                            preferred_element_type=jnp.float32) + b1_ref[...],
                    0.0)                                         # (HID, L)
    gate = jax.nn.sigmoid(jnp.dot(w2_ref[...], z,
                                  preferred_element_type=jnp.float32)
                          + b2_ref[...])                         # (C_out, L)
    o_ref[0] = (y * gate).astype(o_ref.dtype)


def _pack_params(p):
    """Pack the ragged per-conv weights into one centered (K_MAX, C_out, C_in) tensor."""
    w_cat = jnp.zeros((K_MAX, CH_OUT, CH_IN), jnp.float32)
    for i in range(N_CONVS):
        w = p["conv_w"][i]                                 # (CH_EACH, CH_IN, 2i+1)
        for k in range(2 * i + 1):
            t = PAD - i + k                                # center tap at t == PAD
            w_cat = w_cat.at[t, i * CH_EACH:(i + 1) * CH_EACH, :].set(w[:, :, k])
    b_cat = jnp.concatenate(p["conv_b"]).reshape(CH_OUT, 1).astype(jnp.float32)
    gamma = p["gamma"].reshape(CH_OUT, 1).astype(jnp.float32)
    beta = p["beta"].reshape(CH_OUT, 1).astype(jnp.float32)
    grp = np.arange(CH_OUT) // CH_EACH
    g_mat = jnp.asarray((grp[None, :] == np.arange(N_CONVS)[:, None])
                        .astype(np.float32))               # (G, C_out)
    gt_mat = jnp.asarray((grp[:, None] == np.arange(N_CONVS)[None, :])
                         .astype(np.float32))              # (C_out, G)
    w1 = p["sq_w1"].astype(jnp.float32)                    # (HID, C_out)
    b1 = p["sq_b1"].reshape(HID, 1).astype(jnp.float32)
    w2 = p["sq_w2"].astype(jnp.float32)                    # (C_out, HID)
    b2 = p["sq_b2"].reshape(CH_OUT, 1).astype(jnp.float32)
    return w_cat, b_cat, gamma, beta, g_mat, gt_mat, w1, b1, w2, b2


def feature_extraction_pallas(x, params):
    B, c_in, L = x.shape
    assert c_in == CH_IN, "ch_in mismatch"
    w_cat, b_cat, gamma, beta, g_mat, gt_mat, w1, b1, w2, b2 = _pack_params(params)
    x_pad = jnp.pad(x.astype(jnp.float32), ((0, 0), (0, 0), (PAD, PAD)))
    lp = L + 2 * PAD

    return pl.pallas_call(
        _feature_extraction_kernel,
        out_shape=jax.ShapeDtypeStruct((B, CH_OUT, L), x.dtype),
        grid_spec=pltpu.PrefetchScalarGridSpec(
            num_scalar_prefetch=0,
            grid=(B,),
            in_specs=[
                pl.BlockSpec((1, CH_IN, lp), lambda b: (b, 0, 0)),        # x (halo-padded)
                pl.BlockSpec((K_MAX, CH_OUT, CH_IN), lambda b: (0, 0, 0)),  # packed conv W
                pl.BlockSpec((CH_OUT, 1), lambda b: (0, 0)),              # conv bias
                pl.BlockSpec((CH_OUT, 1), lambda b: (0, 0)),              # GN gamma
                pl.BlockSpec((CH_OUT, 1), lambda b: (0, 0)),              # GN beta
                pl.BlockSpec((N_CONVS, CH_OUT), lambda b: (0, 0)),        # group map
                pl.BlockSpec((CH_OUT, N_CONVS), lambda b: (0, 0)),        # group map^T
                pl.BlockSpec((HID, CH_OUT), lambda b: (0, 0)),            # SE fc1 W
                pl.BlockSpec((HID, 1), lambda b: (0, 0)),                 # SE fc1 b
                pl.BlockSpec((CH_OUT, HID), lambda b: (0, 0)),            # SE fc2 W
                pl.BlockSpec((CH_OUT, 1), lambda b: (0, 0)),              # SE fc2 b
            ],
            out_specs=pl.BlockSpec((1, CH_OUT, L), lambda b: (b, 0, 0)),
        ),
        compiler_params=pltpu.CompilerParams(
            dimension_semantics=("parallel",),   # batch steps shard across TCs (v7x)
        ),
    )(x_pad, w_cat, b_cat, gamma, beta, g_mat, gt_mat, w1, b1, w2, b2)


# ---- pure-JAX reference (mirrors the PyTorch forward) -------------------------
def reference_forward(x, p):
    B, _, L = x.shape
    ys = []
    for i in range(N_CONVS):
        y = jax.lax.conv_general_dilated(
            x, p["conv_w"][i], window_strides=(1,), padding=[(i, i)],
            dimension_numbers=("NCH", "OIH", "NCH"),
            precision=jax.lax.Precision.HIGHEST)
        ys.append(y + p["conv_b"][i][None, :, None])
    out = jnp.concatenate(ys, axis=1)                       # (B, 128, L)
    g = out.reshape(B, N_CONVS, CH_EACH, L)
    mean = g.mean(axis=(2, 3), keepdims=True)
    var = g.var(axis=(2, 3), keepdims=True)
    out = ((g - mean) / jnp.sqrt(var + EPS)).reshape(B, CH_OUT, L)
    out = out * p["gamma"][None, :, None] + p["beta"][None, :, None]
    pooled = out.mean(axis=2)                               # (B, 128)
    z = jnp.maximum(pooled @ p["sq_w1"].T + p["sq_b1"][None, :], 0.0)
    gate = jax.nn.sigmoid(z @ p["sq_w2"].T + p["sq_b2"][None, :])
    return out * gate[:, :, None]


def init_params(key):
    keys = jax.random.split(key, 2 * N_CONVS + 6)
    conv_w, conv_b = [], []
    for i in range(N_CONVS):
        k_size = 2 * i + 1
        bound = 1.0 / np.sqrt(CH_IN * k_size)
        conv_w.append(jax.random.uniform(keys[2 * i], (CH_EACH, CH_IN, k_size),
                                         minval=-bound, maxval=bound,
                                         dtype=jnp.float32))
        conv_b.append(jax.random.uniform(keys[2 * i + 1], (CH_EACH,),
                                         minval=-bound, maxval=bound,
                                         dtype=jnp.float32))
    kg, kb, kw1, kb1, kw2, kb2 = keys[2 * N_CONVS:]
    b1_bound = 1.0 / np.sqrt(CH_OUT)
    b2_bound = 1.0 / np.sqrt(HID)
    return {
        "conv_w": conv_w,
        "conv_b": conv_b,
        "gamma": 1.0 + 0.1 * jax.random.normal(kg, (CH_OUT,), jnp.float32),
        "beta": 0.1 * jax.random.normal(kb, (CH_OUT,), jnp.float32),
        "sq_w1": jax.random.uniform(kw1, (HID, CH_OUT), minval=-b1_bound,
                                    maxval=b1_bound, dtype=jnp.float32),
        "sq_b1": jax.random.uniform(kb1, (HID,), minval=-b1_bound,
                                    maxval=b1_bound, dtype=jnp.float32),
        "sq_w2": jax.random.uniform(kw2, (CH_OUT, HID), minval=-b2_bound,
                                    maxval=b2_bound, dtype=jnp.float32),
        "sq_b2": jax.random.uniform(kb2, (CH_OUT,), minval=-b2_bound,
                                    maxval=b2_bound, dtype=jnp.float32),
    }


if __name__ == "__main__":
    key = jax.random.PRNGKey(0)
    k_par, k_x = jax.random.split(key)
    params = init_params(k_par)

    B, L = 2, 128
    x = jax.random.normal(k_x, (B, CH_IN, L), dtype=jnp.float32)

    fwd = jax.jit(feature_extraction_pallas)
    y = fwd(x, params)
    jax.block_until_ready(y)

    y_ref = reference_forward(x, params)
    assert y.shape == (B, CH_OUT, L) and y.dtype == x.dtype
    max_diff = float(jnp.max(jnp.abs(y - y_ref)))
    assert max_diff < 3e-2, f"mismatch vs reference: max abs diff {max_diff}"

    print("KERNEL_OK")
</pallas_src>

<mosaic_0001>
module attributes {stable_mosaic.version = 11 : i64} {
  func.func @_feature_extraction_kernel(%arg0: i32, %arg1: memref<1x16x142xf32, #tpu.memory_space<vmem>>, %arg2: memref<15x128x16xf32, #tpu.memory_space<vmem>>, %arg3: memref<128x1xf32, #tpu.memory_space<vmem>>, %arg4: memref<128x1xf32, #tpu.memory_space<vmem>>, %arg5: memref<128x1xf32, #tpu.memory_space<vmem>>, %arg6: memref<8x128xf32, #tpu.memory_space<vmem>>, %arg7: memref<128x8xf32, #tpu.memory_space<vmem>>, %arg8: memref<8x128xf32, #tpu.memory_space<vmem>>, %arg9: memref<8x1xf32, #tpu.memory_space<vmem>>, %arg10: memref<128x8xf32, #tpu.memory_space<vmem>>, %arg11: memref<128x1xf32, #tpu.memory_space<vmem>>, %arg12: memref<1x128x128xf32, #tpu.memory_space<vmem>>) attributes {dimension_semantics = [#tpu.dimension_semantics<parallel>], iteration_bounds = array<i64: 2>, scalar_prefetch = 0 : i64, scratch_operands = 0 : i64, tpu.core_type = #tpu.core_type<tc>, window_params = [{transform_indices = @transform_0, window_bounds = array<i64: 1, 16, 142>}, {pipeline_mode = #tpu.pipeline_mode<synchronous>, transform_indices = @transform_1, window_bounds = array<i64: 15, 128, 16>}, {pipeline_mode = #tpu.pipeline_mode<synchronous>, transform_indices = @transform_2, window_bounds = array<i64: 128, 1>}, {pipeline_mode = #tpu.pipeline_mode<synchronous>, transform_indices = @transform_3, window_bounds = array<i64: 128, 1>}, {pipeline_mode = #tpu.pipeline_mode<synchronous>, transform_indices = @transform_4, window_bounds = array<i64: 128, 1>}, {pipeline_mode = #tpu.pipeline_mode<synchronous>, transform_indices = @transform_5, window_bounds = array<i64: 8, 128>}, {pipeline_mode = #tpu.pipeline_mode<synchronous>, transform_indices = @transform_6, window_bounds = array<i64: 128, 8>}, {pipeline_mode = #tpu.pipeline_mode<synchronous>, transform_indices = @transform_7, window_bounds = array<i64: 8, 128>}, {pipeline_mode = #tpu.pipeline_mode<synchronous>, transform_indices = @transform_8, window_bounds = array<i64: 8, 1>}, {pipeline_mode = #tpu.pipeline_mode<synchronous>, transform_indices = @transform_9, window_bounds = array<i64: 128, 8>}, {pipeline_mode = #tpu.pipeline_mode<synchronous>, transform_indices = @transform_10, window_bounds = array<i64: 128, 1>}, {transform_indices = @transform_11, window_bounds = array<i64: 1, 128, 128>}]} {
    %c0 = arith.constant 0 : index
    %c0_0 = arith.constant 0 : index
    %c0_1 = arith.constant 0 : index
    %0 = vector.load %arg1[%c0, %c0_0, %c0_1] : memref<1x16x142xf32, #tpu.memory_space<vmem>>, vector<1x16x142xf32>
    %1 = vector.shape_cast %0 : vector<1x16x142xf32> to vector<16x142xf32>
    %cst = arith.constant 0.000000e+00 : f32
    %2 = vector.broadcast %cst : f32 to vector<128x128xf32>
    %c0_2 = arith.constant 0 : index
    %c0_3 = arith.constant 0 : index
    %c0_4 = arith.constant 0 : index
    %3 = vector.load %arg2[%c0_2, %c0_3, %c0_4] : memref<15x128x16xf32, #tpu.memory_space<vmem>>, vector<1x128x16xf32>
    %4 = vector.shape_cast %3 : vector<1x128x16xf32> to vector<128x16xf32>
    %5 = vector.extract_strided_slice %1 {offsets = [0, 0], sizes = [16, 128], strides = [1, 1]} : vector<16x142xf32> to vector<16x128xf32>
    %cst_5 = arith.constant dense<0.000000e+00> : vector<128x128xf32>
    %6 = tpu.matmul %4, %5, %cst_5 {dimension_numbers = #tpu.dot_dimension_numbers<[1], [0], [0], [1], [0, 0, 1, 1], [], []>} : vector<128x16xf32>, vector<16x128xf32>, vector<128x128xf32> -> vector<128x128xf32>
    %7 = arith.addf %2, %6 : vector<128x128xf32>
    %c1 = arith.constant 1 : index
    %c0_6 = arith.constant 0 : index
    %c0_7 = arith.constant 0 : index
    %8 = vector.load %arg2[%c1, %c0_6, %c0_7] : memref<15x128x16xf32, #tpu.memory_space<vmem>>, vector<1x128x16xf32>
    %9 = vector.shape_cast %8 : vector<1x128x16xf32> to vector<128x16xf32>
    %10 = vector.extract_strided_slice %1 {offsets = [0, 1], sizes = [16, 128], strides = [1, 1]} : vector<16x142xf32> to vector<16x128xf32>
    %cst_8 = arith.constant dense<0.000000e+00> : vector<128x128xf32>
    %11 = tpu.matmul %9, %10, %cst_8 {dimension_numbers = #tpu.dot_dimension_numbers<[1], [0], [0], [1], [0, 0, 1, 1], [], []>} : vector<128x16xf32>, vector<16x128xf32>, vector<128x128xf32> -> vector<128x128xf32>
    %12 = arith.addf %7, %11 : vector<128x128xf32>
    %c2 = arith.constant 2 : index
    %c0_9 = arith.constant 0 : index
    %c0_10 = arith.constant 0 : index
    %13 = vector.load %arg2[%c2, %c0_9, %c0_10] : memref<15x128x16xf32, #tpu.memory_space<vmem>>, vector<1x128x16xf32>
    %14 = vector.shape_cast %13 : vector<1x128x16xf32> to vector<128x16xf32>
    %15 = vector.extract_strided_slice %1 {offsets = [0, 2], sizes = [16, 128], strides = [1, 1]} : vector<16x142xf32> to vector<16x128xf32>
    %cst_11 = arith.constant dense<0.000000e+00> : vector<128x128xf32>
    %16 = tpu.matmul %14, %15, %cst_11 {dimension_numbers = #tpu.dot_dimension_numbers<[1], [0], [0], [1], [0, 0, 1, 1], [], []>} : vector<128x16xf32>, vector<16x128xf32>, vector<128x128xf32> -> vector<128x128xf32>
    %17 = arith.addf %12, %16 : vector<128x128xf32>
    %c3 = arith.constant 3 : index
    %c0_12 = arith.constant 0 : index
    %c0_13 = arith.constant 0 : index
    %18 = vector.load %arg2[%c3, %c0_12, %c0_13] : memref<15x128x16xf32, #tpu.memory_space<vmem>>, vector<1x128x16xf32>
    %19 = vector.shape_cast %18 : vector<1x128x16xf32> to vector<128x16xf32>
    %20 = vector.extract_strided_slice %1 {offsets = [0, 3], sizes = [16, 128], strides = [1, 1]} : vector<16x142xf32> to vector<16x128xf32>
    %cst_14 = arith.constant dense<0.000000e+00> : vector<128x128xf32>
    %21 = tpu.matmul %19, %20, %cst_14 {dimension_numbers = #tpu.dot_dimension_numbers<[1], [0], [0], [1], [0, 0, 1, 1], [], []>} : vector<128x16xf32>, vector<16x128xf32>, vector<128x128xf32> -> vector<128x128xf32>
    %22 = arith.addf %17, %21 : vector<128x128xf32>
    %c4 = arith.constant 4 : index
    %c0_15 = arith.constant 0 : index
    %c0_16 = arith.constant 0 : index
    %23 = vector.load %arg2[%c4, %c0_15, %c0_16] : memref<15x128x16xf32, #tpu.memory_space<vmem>>, vector<1x128x16xf32>
    %24 = vector.shape_cast %23 : vector<1x128x16xf32> to vector<128x16xf32>
    %25 = vector.extract_strided_slice %1 {offsets = [0, 4], sizes = [16, 128], strides = [1, 1]} : vector<16x142xf32> to vector<16x128xf32>
    %cst_17 = arith.constant dense<0.000000e+00> : vector<128x128xf32>
    %26 = tpu.matmul %24, %25, %cst_17 {dimension_numbers = #tpu.dot_dimension_numbers<[1], [0], [0], [1], [0, 0, 1, 1], [], []>} : vector<128x16xf32>, vector<16x128xf32>, vector<128x128xf32> -> vector<128x128xf32>
    %27 = arith.addf %22, %26 : vector<128x128xf32>
    %c5 = arith.constant 5 : index
    %c0_18 = arith.constant 0 : index
    %c0_19 = arith.constant 0 : index
    %28 = vector.load %arg2[%c5, %c0_18, %c0_19] : memref<15x128x16xf32, #tpu.memory_space<vmem>>, vector<1x128x16xf32>
    %29 = vector.shape_cast %28 : vector<1x128x16xf32> to vector<128x16xf32>
    %30 = vector.extract_strided_slice %1 {offsets = [0, 5], sizes = [16, 128], strides = [1, 1]} : vector<16x142xf32> to vector<16x128xf32>
    %cst_20 = arith.constant dense<0.000000e+00> : vector<128x128xf32>
    %31 = tpu.matmul %29, %30, %cst_20 {dimension_numbers = #tpu.dot_dimension_numbers<[1], [0], [0], [1], [0, 0, 1, 1], [], []>} : vector<128x16xf32>, vector<16x128xf32>, vector<128x128xf32> -> vector<128x128xf32>
    %32 = arith.addf %27, %31 : vector<128x128xf32>
    %c6 = arith.constant 6 : index
    %c0_21 = arith.constant 0 : index
    %c0_22 = arith.constant 0 : index
    %33 = vector.load %arg2[%c6, %c0_21, %c0_22] : memref<15x128x16xf32, #tpu.memory_space<vmem>>, vector<1x128x16xf32>
    %34 = vector.shape_cast %33 : vector<1x128x16xf32> to vector<128x16xf32>
    %35 = vector.extract_strided_slice %1 {offsets = [0, 6], sizes = [16, 128], strides = [1, 1]} : vector<16x142xf32> to vector<16x128xf32>
    %cst_23 = arith.constant dense<0.000000e+00> : vector<128x128xf32>
    %36 = tpu.matmul %34, %35, %cst_23 {dimension_numbers = #tpu.dot_dimension_numbers<[1], [0], [0], [1], [0, 0, 1, 1], [], []>} : vector<128x16xf32>, vector<16x128xf32>, vector<128x128xf32> -> vector<128x128xf32>
    %37 = arith.addf %32, %36 : vector<128x128xf32>
    %c7 = arith.constant 7 : index
    %c0_24 = arith.constant 0 : index
    %c0_25 = arith.constant 0 : index
    %38 = vector.load %arg2[%c7, %c0_24, %c0_25] : memref<15x128x16xf32, #tpu.memory_space<vmem>>, vector<1x128x16xf32>
    %39 = vector.shape_cast %38 : vector<1x128x16xf32> to vector<128x16xf32>
    %40 = vector.extract_strided_slice %1 {offsets = [0, 7], sizes = [16, 128], strides = [1, 1]} : vector<16x142xf32> to vector<16x128xf32>
    %cst_26 = arith.constant dense<0.000000e+00> : vector<128x128xf32>
    %41 = tpu.matmul %39, %40, %cst_26 {dimension_numbers = #tpu.dot_dimension_numbers<[1], [0], [0], [1], [0, 0, 1, 1], [], []>} : vector<128x16xf32>, vector<16x128xf32>, vector<128x128xf32> -> vector<128x128xf32>
    %42 = arith.addf %37, %41 : vector<128x128xf32>
    %c8 = arith.constant 8 : index
    %c0_27 = arith.constant 0 : index
    %c0_28 = arith.constant 0 : index
    %43 = vector.load %arg2[%c8, %c0_27, %c0_28] : memref<15x128x16xf32, #tpu.memory_space<vmem>>, vector<1x128x16xf32>
    %44 = vector.shape_cast %43 : vector<1x128x16xf32> to vector<128x16xf32>
    %45 = vector.extract_strided_slice %1 {offsets = [0, 8], sizes = [16, 128], strides = [1, 1]} : vector<16x142xf32> to vector<16x128xf32>
    %cst_29 = arith.constant dense<0.000000e+00> : vector<128x128xf32>
    %46 = tpu.matmul %44, %45, %cst_29 {dimension_numbers = #tpu.dot_dimension_numbers<[1], [0], [0], [1], [0, 0, 1, 1], [], []>} : vector<128x16xf32>, vector<16x128xf32>, vector<128x128xf32> -> vector<128x128xf32>
    %47 = arith.addf %42, %46 : vector<128x128xf32>
    %c9 = arith.constant 9 : index
    %c0_30 = arith.constant 0 : index
    %c0_31 = arith.constant 0 : index
    %48 = vector.load %arg2[%c9, %c0_30, %c0_31] : memref<15x128x16xf32, #tpu.memory_space<vmem>>, vector<1x128x16xf32>
    %49 = vector.shape_cast %48 : vector<1x128x16xf32> to vector<128x16xf32>
    %50 = vector.extract_strided_slice %1 {offsets = [0, 9], sizes = [16, 128], strides = [1, 1]} : vector<16x142xf32> to vector<16x128xf32>
    %cst_32 = arith.constant dense<0.000000e+00> : vector<128x128xf32>
    %51 = tpu.matmul %49, %50, %cst_32 {dimension_numbers = #tpu.dot_dimension_numbers<[1], [0], [0], [1], [0, 0, 1, 1], [], []>} : vector<128x16xf32>, vector<16x128xf32>, vector<128x128xf32> -> vector<128x128xf32>
    %52 = arith.addf %47, %51 : vector<128x128xf32>
    %c10 = arith.constant 10 : index
    %c0_33 = arith.constant 0 : index
    %c0_34 = arith.constant 0 : index
    %53 = vector.load %arg2[%c10, %c0_33, %c0_34] : memref<15x128x16xf32, #tpu.memory_space<vmem>>, vector<1x128x16xf32>
    %54 = vector.shape_cast %53 : vector<1x128x16xf32> to vector<128x16xf32>
    %55 = vector.extract_strided_slice %1 {offsets = [0, 10], sizes = [16, 128], strides = [1, 1]} : vector<16x142xf32> to vector<16x128xf32>
    %cst_35 = arith.constant dense<0.000000e+00> : vector<128x128xf32>
    %56 = tpu.matmul %54, %55, %cst_35 {dimension_numbers = #tpu.dot_dimension_numbers<[1], [0], [0], [1], [0, 0, 1, 1], [], []>} : vector<128x16xf32>, vector<16x128xf32>, vector<128x128xf32> -> vector<128x128xf32>
    %57 = arith.addf %52, %56 : vector<128x128xf32>
    %c11 = arith.constant 11 : index
    %c0_36 = arith.constant 0 : index
    %c0_37 = arith.constant 0 : index
    %58 = vector.load %arg2[%c11, %c0_36, %c0_37] : memref<15x128x16xf32, #tpu.memory_space<vmem>>, vector<1x128x16xf32>
    %59 = vector.shape_cast %58 : vector<1x128x16xf32> to vector<128x16xf32>
    %60 = vector.extract_strided_slice %1 {offsets = [0, 11], sizes = [16, 128], strides = [1, 1]} : vector<16x142xf32> to vector<16x128xf32>
    %cst_38 = arith.constant dense<0.000000e+00> : vector<128x128xf32>
    %61 = tpu.matmul %59, %60, %cst_38 {dimension_numbers = #tpu.dot_dimension_numbers<[1], [0], [0], [1], [0, 0, 1, 1], [], []>} : vector<128x16xf32>, vector<16x128xf32>, vector<128x128xf32> -> vector<128x128xf32>
    %62 = arith.addf %57, %61 : vector<128x128xf32>
    %c12 = arith.constant 12 : index
    %c0_39 = arith.constant 0 : index
    %c0_40 = arith.constant 0 : index
    %63 = vector.load %arg2[%c12, %c0_39, %c0_40] : memref<15x128x16xf32, #tpu.memory_space<vmem>>, vector<1x128x16xf32>
    %64 = vector.shape_cast %63 : vector<1x128x16xf32> to vector<128x16xf32>
    %65 = vector.extract_strided_slice %1 {offsets = [0, 12], sizes = [16, 128], strides = [1, 1]} : vector<16x142xf32> to vector<16x128xf32>
    %cst_41 = arith.constant dense<0.000000e+00> : vector<128x128xf32>
    %66 = tpu.matmul %64, %65, %cst_41 {dimension_numbers = #tpu.dot_dimension_numbers<[1], [0], [0], [1], [0, 0, 1, 1], [], []>} : vector<128x16xf32>, vector<16x128xf32>, vector<128x128xf32> -> vector<128x128xf32>
    %67 = arith.addf %62, %66 : vector<128x128xf32>
    %c13 = arith.constant 13 : index
    %c0_42 = arith.constant 0 : index
    %c0_43 = arith.constant 0 : index
    %68 = vector.load %arg2[%c13, %c0_42, %c0_43] : memref<15x128x16xf32, #tpu.memory_space<vmem>>, vector<1x128x16xf32>
    %69 = vector.shape_cast %68 : vector<1x128x16xf32> to vector<128x16xf32>
    %70 = vector.extract_strided_slice %1 {offsets = [0, 13], sizes = [16, 128], strides = [1, 1]} : vector<16x142xf32> to vector<16x128xf32>
    %cst_44 = arith.constant dense<0.000000e+00> : vector<128x128xf32>
    %71 = tpu.matmul %69, %70, %cst_44 {dimension_numbers = #tpu.dot_dimension_numbers<[1], [0], [0], [1], [0, 0, 1, 1], [], []>} : vector<128x16xf32>, vector<16x128xf32>, vector<128x128xf32> -> vector<128x128xf32>
    %72 = arith.addf %67, %71 : vector<128x128xf32>
    %c14 = arith.constant 14 : index
    %c0_45 = arith.constant 0 : index
    %c0_46 = arith.constant 0 : index
    %73 = vector.load %arg2[%c14, %c0_45, %c0_46] : memref<15x128x16xf32, #tpu.memory_space<vmem>>, vector<1x128x16xf32>
    %74 = vector.shape_cast %73 : vector<1x128x16xf32> to vector<128x16xf32>
    %75 = vector.extract_strided_slice %1 {offsets = [0, 14], sizes = [16, 128], strides = [1, 1]} : vector<16x142xf32> to vector<16x128xf32>
    %cst_47 = arith.constant dense<0.000000e+00> : vector<128x128xf32>
    %76 = tpu.matmul %74, %75, %cst_47 {dimension_numbers = #tpu.dot_dimension_numbers<[1], [0], [0], [1], [0, 0, 1, 1], [], []>} : vector<128x16xf32>, vector<16x128xf32>, vector<128x128xf32> -> vector<128x128xf32>
    %77 = arith.addf %72, %76 : vector<128x128xf32>
    %c0_48 = arith.constant 0 : index
    %c0_49 = arith.constant 0 : index
    %78 = vector.load %arg3[%c0_48, %c0_49] : memref<128x1xf32, #tpu.memory_space<vmem>>, vector<128x1xf32>
    %79 = vector.broadcast %78 : vector<128x1xf32> to vector<128x128xf32>
    %80 = arith.addf %77, %79 : vector<128x128xf32>
    %c0_50 = arith.constant 0 : index
    %c0_51 = arith.constant 0 : index
    %81 = vector.load %arg6[%c0_50, %c0_51] : memref<8x128xf32, #tpu.memory_space<vmem>>, vector<8x128xf32>
    %cst_52 = arith.constant dense<0.000000e+00> : vector<8x128xf32>
    %82 = tpu.matmul %81, %80, %cst_52 {dimension_numbers = #tpu.dot_dimension_numbers<[1], [0], [0], [1], [0, 0, 1, 1], [], []>} : vector<8x128xf32>, vector<128x128xf32>, vector<8x128xf32> -> vector<8x128xf32>
    %cst_53 = arith.constant dense<0.000000e+00> : vector<8xf32>
    %83 = vector.multi_reduction <add>, %82, %cst_53 [1] : vector<8x128xf32> to vector<8xf32>
    %84 = vector.shape_cast %83 : vector<8xf32> to vector<8x1xf32>
    %c0_54 = arith.constant 0 : index
    %c0_55 = arith.constant 0 : index
    %85 = vector.load %arg6[%c0_54, %c0_55] : memref<8x128xf32, #tpu.memory_space<vmem>>, vector<8x128xf32>
    %86 = arith.mulf %80, %80 : vector<128x128xf32>
    %cst_56 = arith.constant dense<0.000000e+00> : vector<8x128xf32>
    %87 = tpu.matmul %85, %86, %cst_56 {dimension_numbers = #tpu.dot_dimension_numbers<[1], [0], [0], [1], [0, 0, 1, 1], [], []>} : vector<8x128xf32>, vector<128x128xf32>, vector<8x128xf32> -> vector<8x128xf32>
    %cst_57 = arith.constant dense<0.000000e+00> : vector<8xf32>
    %88 = vector.multi_reduction <add>, %87, %cst_57 [1] : vector<8x128xf32> to vector<8xf32>
    %89 = vector.shape_cast %88 : vector<8xf32> to vector<8x1xf32>
    %cst_58 = arith.constant 4.8828125E-4 : f32
    %90 = vector.broadcast %cst_58 : f32 to vector<8x1xf32>
    %91 = arith.mulf %84, %90 : vector<8x1xf32>
    %cst_59 = arith.constant 4.8828125E-4 : f32
    %92 = vector.broadcast %cst_59 : f32 to vector<8x1xf32>
    %93 = arith.mulf %89, %92 : vector<8x1xf32>
    %94 = arith.mulf %91, %91 : vector<8x1xf32>
    %95 = arith.subf %93, %94 : vector<8x1xf32>
    %cst_60 = arith.constant 9.99999974E-6 : f32
    %96 = vector.broadcast %cst_60 : f32 to vector<8x1xf32>
    %97 = arith.addf %95, %96 : vector<8x1xf32>
    %98 = math.rsqrt %97 : vector<8x1xf32>
    %c0_61 = arith.constant 0 : index
    %c0_62 = arith.constant 0 : index
    %99 = vector.load %arg7[%c0_61, %c0_62] : memref<128x8xf32, #tpu.memory_space<vmem>>, vector<128x8xf32>
    %100 = vector.shape_cast %91 : vector<8x1xf32> to vector<8x1xf32>
    %101 = vector.broadcast %100 : vector<8x1xf32> to vector<8x128xf32>
    %cst_63 = arith.constant dense<0.000000e+00> : vector<128x128xf32>
    %102 = tpu.matmul %99, %101, %cst_63 {dimension_numbers = #tpu.dot_dimension_numbers<[1], [0], [0], [1], [0, 0, 1, 1], [], []>} : vector<128x8xf32>, vector<8x128xf32>, vector<128x128xf32> -> vector<128x128xf32>
    %c0_64 = arith.constant 0 : index
    %c0_65 = arith.constant 0 : index
    %103 = vector.load %arg7[%c0_64, %c0_65] : memref<128x8xf32, #tpu.memory_space<vmem>>, vector<128x8xf32>
    %104 = vector.shape_cast %98 : vector<8x1xf32> to vector<8x1xf32>
    %105 = vector.broadcast %104 : vector<8x1xf32> to vector<8x128xf32>
    %cst_66 = arith.constant dense<0.000000e+00> : vector<128x128xf32>
    %106 = tpu.matmul %103, %105, %cst_66 {dimension_numbers = #tpu.dot_dimension_numbers<[1], [0], [0], [1], [0, 0, 1, 1], [], []>} : vector<128x8xf32>, vector<8x128xf32>, vector<128x128xf32> -> vector<128x128xf32>
    %107 = arith.subf %80, %102 : vector<128x128xf32>
    %108 = arith.mulf %107, %106 : vector<128x128xf32>
    %c0_67 = arith.constant 0 : index
    %c0_68 = arith.constant 0 : index
    %109 = vector.load %arg4[%c0_67, %c0_68] : memref<128x1xf32, #tpu.memory_space<vmem>>, vector<128x1xf32>
    %110 = vector.broadcast %109 : vector<128x1xf32> to vector<128x128xf32>
    %111 = arith.mulf %108, %110 : vector<128x128xf32>
    %c0_69 = arith.constant 0 : index
    %c0_70 = arith.constant 0 : index
    %112 = vector.load %arg5[%c0_69, %c0_70] : memref<128x1xf32, #tpu.memory_space<vmem>>, vector<128x1xf32>
    %113 = vector.broadcast %112 : vector<128x1xf32> to vector<128x128xf32>
    %114 = arith.addf %111, %113 : vector<128x128xf32>
    %cst_71 = arith.constant dense<0.000000e+00> : vector<128xf32>
    %115 = vector.multi_reduction <add>, %114, %cst_71 [1] : vector<128x128xf32> to vector<128xf32>
    %116 = vector.shape_cast %115 : vector<128xf32> to vector<128x1xf32>
    %cst_72 = arith.constant 7.812500e-03 : f32
    %117 = vector.broadcast %cst_72 : f32 to vector<128x1xf32>
    %118 = arith.mulf %116, %117 : vector<128x1xf32>
    %119 = vector.shape_cast %118 : vector<128x1xf32> to vector<128x1xf32>
    %120 = vector.broadcast %119 : vector<128x1xf32> to vector<128x128xf32>
    %c0_73 = arith.constant 0 : index
    %c0_74 = arith.constant 0 : index
    %121 = vector.load %arg8[%c0_73, %c0_74] : memref<8x128xf32, #tpu.memory_space<vmem>>, vector<8x128xf32>
    %cst_75 = arith.constant dense<0.000000e+00> : vector<8x128xf32>
    %122 = tpu.matmul %121, %120, %cst_75 {dimension_numbers = #tpu.dot_dimension_numbers<[1], [0], [0], [1], [0, 0, 1, 1], [], []>} : vector<8x128xf32>, vector<128x128xf32>, vector<8x128xf32> -> vector<8x128xf32>
    %c0_76 = arith.constant 0 : index
    %c0_77 = arith.constant 0 : index
    %123 = vector.load %arg9[%c0_76, %c0_77] : memref<8x1xf32, #tpu.memory_space<vmem>>, vector<8x1xf32>
    %124 = vector.broadcast %123 : vector<8x1xf32> to vector<8x128xf32>
    %125 = arith.addf %122, %124 : vector<8x128xf32>
    %cst_78 = arith.constant 0.000000e+00 : f32
    %126 = vector.broadcast %cst_78 : f32 to vector<8x128xf32>
    %127 = arith.maximumf %125, %126 : vector<8x128xf32>
    %c0_79 = arith.constant 0 : index
    %c0_80 = arith.constant 0 : index
    %128 = vector.load %arg10[%c0_79, %c0_80] : memref<128x8xf32, #tpu.memory_space<vmem>>, vector<128x8xf32>
    %cst_81 = arith.constant dense<0.000000e+00> : vector<128x128xf32>
    %129 = tpu.matmul %128, %127, %cst_81 {dimension_numbers = #tpu.dot_dimension_numbers<[1], [0], [0], [1], [0, 0, 1, 1], [], []>} : vector<128x8xf32>, vector<8x128xf32>, vector<128x128xf32> -> vector<128x128xf32>
    %c0_82 = arith.constant 0 : index
    %c0_83 = arith.constant 0 : index
    %130 = vector.load %arg11[%c0_82, %c0_83] : memref<128x1xf32, #tpu.memory_space<vmem>>, vector<128x1xf32>
    %131 = vector.broadcast %130 : vector<128x1xf32> to vector<128x128xf32>
    %132 = arith.addf %129, %131 : vector<128x128xf32>
    %133 = arith.negf %132 : vector<128x128xf32>
    %134 = math.exp %133 : vector<128x128xf32>
    %cst_84 = arith.constant 1.000000e+00 : f32
    %135 = vector.broadcast %cst_84 : f32 to vector<128x128xf32>
    %136 = arith.addf %135, %134 : vector<128x128xf32>
    %137 = arith.divf %135, %136 : vector<128x128xf32>
    %138 = arith.mulf %114, %137 : vector<128x128xf32>
    %c0_85 = arith.constant 0 : index
    %c0_86 = arith.constant 0 : index
    %c0_87 = arith.constant 0 : index
    %139 = vector.load %arg12[%c0_85, %c0_86, %c0_87] : memref<1x128x128xf32, #tpu.memory_space<vmem>>, vector<1x128x128xf32>
    %140 = vector.shape_cast %139 : vector<1x128x128xf32> to vector<128x128xf32>
    %141 = vector.shape_cast %138 : vector<128x128xf32> to vector<1x128x128xf32>
    tpu.vector_store %arg12[%c0_85, %c0_86, %c0_87], %141 {strides = array<i32>} : memref<1x128x128xf32, #tpu.memory_space<vmem>>, vector<1x128x128xf32>,
    return
  }
  func.func @transform_0(%arg0: i32) -> (i32, i32, i32) {
    %c0_i32 = arith.constant 0 : i32
    %c0_i32_0 = arith.constant 0 : i32
    %c0_i32_1 = arith.constant 0 : i32
    return %arg0, %c0_i32, %c0_i32_0 : i32, i32, i32
  }
  func.func @transform_1(%arg0: i32) -> (i32, i32, i32) {
    %c0_i32 = arith.constant 0 : i32
    %c0_i32_0 = arith.constant 0 : i32
    %c0_i32_1 = arith.constant 0 : i32
    %c0_i32_2 = arith.constant 0 : i32
    return %c0_i32, %c0_i32_0, %c0_i32_1 : i32, i32, i32
  }
  func.func @transform_2(%arg0: i32) -> (i32, i32) {
    %c0_i32 = arith.constant 0 : i32
    %c0_i32_0 = arith.constant 0 : i32
    %c0_i32_1 = arith.constant 0 : i32
    return %c0_i32, %c0_i32_0 : i32, i32
  }
  func.func @transform_3(%arg0: i32) -> (i32, i32) {
    %c0_i32 = arith.constant 0 : i32
    %c0_i32_0 = arith.constant 0 : i32
    %c0_i32_1 = arith.constant 0 : i32
    return %c0_i32, %c0_i32_0 : i32, i32
  }
  func.func @transform_4(%arg0: i32) -> (i32, i32) {
    %c0_i32 = arith.constant 0 : i32
    %c0_i32_0 = arith.constant 0 : i32
    %c0_i32_1 = arith.constant 0 : i32
    return %c0_i32, %c0_i32_0 : i32, i32
  }
  func.func @transform_5(%arg0: i32) -> (i32, i32) {
    %c0_i32 = arith.constant 0 : i32
    %c0_i32_0 = arith.constant 0 : i32
    %c0_i32_1 = arith.constant 0 : i32
    return %c0_i32, %c0_i32_0 : i32, i32
  }
  func.func @transform_6(%arg0: i32) -> (i32, i32) {
    %c0_i32 = arith.constant 0 : i32
    %c0_i32_0 = arith.constant 0 : i32
    %c0_i32_1 = arith.constant 0 : i32
    return %c0_i32, %c0_i32_0 : i32, i32
  }
  func.func @transform_7(%arg0: i32) -> (i32, i32) {
    %c0_i32 = arith.constant 0 : i32
    %c0_i32_0 = arith.constant 0 : i32
    %c0_i32_1 = arith.constant 0 : i32
    return %c0_i32, %c0_i32_0 : i32, i32
  }
  func.func @transform_8(%arg0: i32) -> (i32, i32) {
    %c0_i32 = arith.constant 0 : i32
    %c0_i32_0 = arith.constant 0 : i32
    %c0_i32_1 = arith.constant 0 : i32
    return %c0_i32, %c0_i32_0 : i32, i32
  }
  func.func @transform_9(%arg0: i32) -> (i32, i32) {
    %c0_i32 = arith.constant 0 : i32
    %c0_i32_0 = arith.constant 0 : i32
    %c0_i32_1 = arith.constant 0 : i32
    return %c0_i32, %c0_i32_0 : i32, i32
  }
  func.func @transform_10(%arg0: i32) -> (i32, i32) {
    %c0_i32 = arith.constant 0 : i32
    %c0_i32_0 = arith.constant 0 : i32
    %c0_i32_1 = arith.constant 0 : i32
    return %c0_i32, %c0_i32_0 : i32, i32
  }
  func.func @transform_11(%arg0: i32) -> (i32, i32, i32) {
    %c0_i32 = arith.constant 0 : i32
    %c0_i32_0 = arith.constant 0 : i32
    %c0_i32_1 = arith.constant 0 : i32
    return %arg0, %c0_i32, %c0_i32_0 : i32, i32, i32
  }
}

</mosaic_0001>

<llo_original>
// kernel: feature_extraction_pallas.1
$region0: #{feature_extraction_pallas.1}
  #allocation0 [shape = 'u32[]', space=smem, size = 0x4, offset = 0x4, fixed_abs, tag = 'smem constant byte address 0x4 - core index']
  #allocation1 [shape = 'u32[144,128]{1,0:T(1,128)}', space=vmem, size = 0x12000, scoped, tag = 'internal scratch']
  %s0 = inlined_call_operand.vmem [shape: f32[2,16,142], index: 0, kind: input, shape index: {}]
  %s1 = inlined_call_operand.vmem [shape: f32[15,128,16], index: 1, kind: input, shape index: {}]
  %s2 = inlined_call_operand.vmem [shape: f32[128,1], index: 2, kind: input, shape index: {}]
  %s3 = inlined_call_operand.vmem [shape: f32[128,1], index: 3, kind: input, shape index: {}]
  %s4 = inlined_call_operand.vmem [shape: f32[128,1], index: 4, kind: input, shape index: {}]
  %s5 = inlined_call_operand.vmem [shape: f32[8,128], index: 5, kind: input, shape index: {}]
  %s6 = inlined_call_operand.vmem [shape: f32[128,8], index: 6, kind: input, shape index: {}]
  %s7 = inlined_call_operand.vmem [shape: f32[8,128], index: 7, kind: input, shape index: {}]
  %s8 = inlined_call_operand.vmem [shape: f32[8,1], index: 8, kind: input, shape index: {}]
  %s9 = inlined_call_operand.vmem [shape: f32[128,8], index: 9, kind: input, shape index: {}]
  %s10 = inlined_call_operand.vmem [shape: f32[128,1], index: 10, kind: input, shape index: {}]
  %s11 = inlined_call_operand.hbm [shape: f32[2,128,128], index: 11, kind: output, shape index: {}]
  %s12 = sld [smem:[#allocation0]]
  $region77: #{feature_extraction_pallas.1} parent=0
    _
  %s14 = ssub.s32 1, %s12
  %s15 = scalar_select 0, %s14, %s12
  $region1: #{feature_extraction_pallas.1} parent=0
    #allocation2 [shape = 'u8[131072]{0}', space=vmem, size = 0x20000, scoped, tag = 'output window, operand 0']
    #allocation3 [shape = 's32[2]{0}', space=sflag, size = 0x8, scoped, tag = 'scoped memory for feature_extraction_pallas.1']
    %16 = vsyncpa [#allocation3], 0
    %s17 = scalar_lea.sflag [#allocation3], 1
    %18 = vsyncpa %s17, 0
    loop: start=0, step=1, limit=4
    $region2: #{feature_extraction_pallas.1} parent=1 // loop_pre_header
      _
    $region3: #{feature_extraction_pallas.1} parent=1 // loop_header
      %s20 = sphi 0, %s24
      %p21 = scmp.ge.s32.totalorder %s20, 4
      %s30 = sphi 0, %s32
      %s33 = sphi 0, %s30
      %s34 = sphi 0, %s33
      %s50 = sphi 0, %s34
      %s54 = sphi 0, %s54
      %s56 = sphi 0, %s54
      %s57 = sphi 0, %s56
      %s71 = sphi 0, %s57
      %s75 = sphi 0, %s75
      %s77 = sphi 0, %s75
      %s78 = sphi 0, %s77
      %s92 = sphi 0, %s78
      %s96 = sphi 0, %s96
      %s98 = sphi 0, %s96
      %s99 = sphi 0, %s98
      %s113 = sphi 0, %s99
      %s117 = sphi 0, %s117
      %s119 = sphi 0, %s117
      %s120 = sphi 0, %s119
      %s134 = sphi 0, %s120
      %s138 = sphi 0, %s138
      %s140 = sphi 0, %s138
      %s141 = sphi 0, %s140
      %s155 = sphi 0, %s141
      %s159 = sphi 0, %s159
      %s161 = sphi 0, %s159
      %s162 = sphi 0, %s161
      %s176 = sphi 0, %s162
      %s180 = sphi 0, %s180
      %s182 = sphi 0, %s180
      %s183 = sphi 0, %s182
      %s197 = sphi 0, %s183
      %s201 = sphi 0, %s201
      %s203 = sphi 0, %s201
      %s204 = sphi 0, %s203
      %s218 = sphi 0, %s204
      %s222 = sphi 0, %s222
      %s224 = sphi 0, %s222
      %s225 = sphi 0, %s224
      %s239 = sphi 0, %s225
      %s243 = sphi 0, %s243
      %s245 = sphi 0, %s243
      %s246 = sphi 0, %s245
      %s260 = sphi 0, %s246
      %s266 = sphi 0, %s268
      %s269 = sphi 0, %s266
      %s270 = sphi 0, %s269
      %s286 = sphi 0, %s270
    $region4: #{feature_extraction_pallas.1} parent=1 // loop_header_branch
      %23 = sbr.rel (%p21) target = $region8
    $region5: #{feature_extraction_pallas.1} parent=1 // loop_body
      %s25 = ssub.s32 %s20, 1
      %s26 = ssub.s32 %s20, 2
      %s27 = sadd.s32 %s20, 1
      %s28 = ssub.s32 %s20, %s27
      %p29 = scmp.eq.s32.totalorder %s28, 0
      %s31 = sadd.s32 %s30, 1
      %s32 = scalar_select %p29, %s30, %s31
      %p35 = pneg %p29
      %p36 = scmp.eq.s32.totalorder %s20, 1
      %p37 = por %p35, %p36
      %p38 = scmp.ne.s32.totalorder %s30, %s33
      %p39 = scmp.eq.s32.totalorder %s20, 0
      %p40 = por %p38, %p39
      %p41 = scmp.ne.s32.totalorder %s30, %s33
      %p42 = scmp.eq.s32.totalorder %s25, 1
      %p43 = por %p41, %p42
      %p44 = scmp.ne.s32.totalorder %s33, %s34
      %p45 = scmp.eq.s32.totalorder %s25, 0
      %p46 = por %p44, %p45
      %p47 = scmp.ne.s32.totalorder %s33, %s34
      %p48 = scmp.eq.s32.totalorder %s26, 1
      %p49 = por %p47, %p48
      %p51 = scmp.ne.s32.totalorder %s34, %s50
      %p52 = scmp.eq.s32.totalorder %s26, 0
      %p53 = por %p51, %p52
      %s55 = sadd.s32 %s54, 1
      %p58 = scmp.eq.s32.totalorder %s20, 1
      %p59 = scmp.ne.s32.totalorder %s54, %s56
      %p60 = scmp.eq.s32.totalorder %s20, 0
      %p61 = por %p59, %p60
      %p62 = scmp.ne.s32.totalorder %s54, %s56
      %p63 = scmp.eq.s32.totalorder %s25, 1
      %p64 = por %p62, %p63
      %p65 = scmp.ne.s32.totalorder %s56, %s57
      %p66 = scmp.eq.s32.totalorder %s25, 0
      %p67 = por %p65, %p66
      %p68 = scmp.ne.s32.totalorder %s56, %s57
      %p69 = scmp.eq.s32.totalorder %s26, 1
      %p70 = por %p68, %p69
      %p72 = scmp.ne.s32.totalorder %s57, %s71
      %p73 = scmp.eq.s32.totalorder %s26, 0
      %p74 = por %p72, %p73
      %s76 = sadd.s32 %s75, 1
      %p79 = scmp.eq.s32.totalorder %s20, 1
      %p80 = scmp.ne.s32.totalorder %s75, %s77
      %p81 = scmp.eq.s32.totalorder %s20, 0
      %p82 = por %p80, %p81
      %p83 = scmp.ne.s32.totalorder %s75, %s77
      %p84 = scmp.eq.s32.totalorder %s25, 1
      %p85 = por %p83, %p84
      %p86 = scmp.ne.s32.totalorder %s77, %s78
      %p87 = scmp.eq.s32.totalorder %s25, 0
      %p88 = por %p86, %p87
      %p89 = scmp.ne.s32.totalorder %s77, %s78
      %p90 = scmp.eq.s32.totalorder %s26, 1
      %p91 = por %p89, %p90
      %p93 = scmp.ne.s32.totalorder %s78, %s92
      %p94 = scmp.eq.s32.totalorder %s26, 0
      %p95 = por %p93, %p94
      %s97 = sadd.s32 %s96, 1
      %p100 = scmp.eq.s32.totalorder %s20, 1
      %p101 = scmp.ne.s32.totalorder %s96, %s98
      %p102 = scmp.eq.s32.totalorder %s20, 0
      %p103 = por %p101, %p102
      %p104 = scmp.ne.s32.totalorder %s96, %s98
      %p105 = scmp.eq.s32.totalorder %s25, 1
      %p106 = por %p104, %p105
      %p107 = scmp.ne.s32.totalorder %s98, %s99
      %p108 = scmp.eq.s32.totalorder %s25, 0
      %p109 = por %p107, %p108
      %p110 = scmp.ne.s32.totalorder %s98, %s99
      %p111 = scmp.eq.s32.totalorder %s26, 1
      %p112 = por %p110, %p111
      %p114 = scmp.ne.s32.totalorder %s99, %s113
      %p115 = scmp.eq.s32.totalorder %s26, 0
      %p116 = por %p114, %p115
      %s118 = sadd.s32 %s117, 1
      %p121 = scmp.eq.s32.totalorder %s20, 1
      %p122 = scmp.ne.s32.totalorder %s117, %s119
      %p123 = scmp.eq.s32.totalorder %s20, 0
      %p124 = por %p122, %p123
      %p125 = scmp.ne.s32.totalorder %s117, %s119
      %p126 = scmp.eq.s32.totalorder %s25, 1
      %p127 = por %p125, %p126
      %p128 = scmp.ne.s32.totalorder %s119, %s120
      %p129 = scmp.eq.s32.totalorder %s25, 0
      %p130 = por %p128, %p129
      %p131 = scmp.ne.s32.totalorder %s119, %s120
      %p132 = scmp.eq.s32.totalorder %s26, 1
      %p133 = por %p131, %p132
      %p135 = scmp.ne.s32.totalorder %s120, %s134
      %p136 = scmp.eq.s32.totalorder %s26, 0
      %p137 = por %p135, %p136
      %s139 = sadd.s32 %s138, 1
      %p142 = scmp.eq.s32.totalorder %s20, 1
      %p143 = scmp.ne.s32.totalorder %s138, %s140
      %p144 = scmp.eq.s32.totalorder %s20, 0
      %p145 = por %p143, %p144
      %p146 = scmp.ne.s32.totalorder %s138, %s140
      %p147 = scmp.eq.s32.totalorder %s25, 1
      %p148 = por %p146, %p147
      %p149 = scmp.ne.s32.totalorder %s140, %s141
      %p150 = scmp.eq.s32.totalorder %s25, 0
      %p151 = por %p149, %p150
      %p152 = scmp.ne.s32.totalorder %s140, %s141
      %p153 = scmp.eq.s32.totalorder %s26, 1
      %p154 = por %p152, %p153
      %p156 = scmp.ne.s32.totalorder %s141, %s155
      %p157 = scmp.eq.s32.totalorder %s26, 0
      %p158 = por %p156, %p157
      %s160 = sadd.s32 %s159, 1
      %p163 = scmp.eq.s32.totalorder %s20, 1
      %p164 = scmp.ne.s32.totalorder %s159, %s161
      %p165 = scmp.eq.s32.totalorder %s20, 0
      %p166 = por %p164, %p165
      %p167 = scmp.ne.s32.totalorder %s159, %s161
      %p168 = scmp.eq.s32.totalorder %s25, 1
      %p169 = por %p167, %p168
      %p170 = scmp.ne.s32.totalorder %s161, %s162
      %p171 = scmp.eq.s32.totalorder %s25, 0
      %p172 = por %p170, %p171
      %p173 = scmp.ne.s32.totalorder %s161, %s162
      %p174 = scmp.eq.s32.totalorder %s26, 1
      %p175 = por %p173, %p174
      %p177 = scmp.ne.s32.totalorder %s162, %s176
      %p178 = scmp.eq.s32.totalorder %s26, 0
      %p179 = por %p177, %p178
      %s181 = sadd.s32 %s180, 1
      %p184 = scmp.eq.s32.totalorder %s20, 1
      %p185 = scmp.ne.s32.totalorder %s180, %s182
      %p186 = scmp.eq.s32.totalorder %s20, 0
      %p187 = por %p185, %p186
      %p188 = scmp.ne.s32.totalorder %s180, %s182
      %p189 = scmp.eq.s32.totalorder %s25, 1
      %p190 = por %p188, %p189
      %p191 = scmp.ne.s32.totalorder %s182, %s183
      %p192 = scmp.eq.s32.totalorder %s25, 0
      %p193 = por %p191, %p192
      %p194 = scmp.ne.s32.totalorder %s182, %s183
      %p195 = scmp.eq.s32.totalorder %s26, 1
      %p196 = por %p194, %p195
      %p198 = scmp.ne.s32.totalorder %s183, %s197
      %p199 = scmp.eq.s32.totalorder %s26, 0
      %p200 = por %p198, %p199
      %s202 = sadd.s32 %s201, 1
      %p205 = scmp.eq.s32.totalorder %s20, 1
      %p206 = scmp.ne.s32.totalorder %s201, %s203
      %p207 = scmp.eq.s32.totalorder %s20, 0
      %p208 = por %p206, %p207
      %p209 = scmp.ne.s32.totalorder %s201, %s203
      %p210 = scmp.eq.s32.totalorder %s25, 1
      %p211 = por %p209, %p210
      %p212 = scmp.ne.s32.totalorder %s203, %s204
      %p213 = scmp.eq.s32.totalorder %s25, 0
      %p214 = por %p212, %p213
      %p215 = scmp.ne.s32.totalorder %s203, %s204
      %p216 = scmp.eq.s32.totalorder %s26, 1
      %p217 = por %p215, %p216
      %p219 = scmp.ne.s32.totalorder %s204, %s218
      %p220 = scmp.eq.s32.totalorder %s26, 0
      %p221 = por %p219, %p220
      %s223 = sadd.s32 %s222, 1
      %p226 = scmp.eq.s32.totalorder %s20, 1
      %p227 = scmp.ne.s32.totalorder %s222, %s224
      %p228 = scmp.eq.s32.totalorder %s20, 0
      %p229 = por %p227, %p228
      %p230 = scmp.ne.s32.totalorder %s222, %s224
      %p231 = scmp.eq.s32.totalorder %s25, 1
      %p232 = por %p230, %p231
      %p233 = scmp.ne.s32.totalorder %s224, %s225
      %p234 = scmp.eq.s32.totalorder %s25, 0
      %p235 = por %p233, %p234
      %p236 = scmp.ne.s32.totalorder %s224, %s225
      %p237 = scmp.eq.s32.totalorder %s26, 1
      %p238 = por %p236, %p237
      %p240 = scmp.ne.s32.totalorder %s225, %s239
      %p241 = scmp.eq.s32.totalorder %s26, 0
      %p242 = por %p240, %p241
      %s244 = sadd.s32 %s243, 1
      %p247 = scmp.eq.s32.totalorder %s20, 1
      %p248 = scmp.ne.s32.totalorder %s243, %s245
      %p249 = scmp.eq.s32.totalorder %s20, 0
      %p250 = por %p248, %p249
      %p251 = scmp.ne.s32.totalorder %s243, %s245
      %p252 = scmp.eq.s32.totalorder %s25, 1
      %p253 = por %p251, %p252
      %p254 = scmp.ne.s32.totalorder %s245, %s246
      %p255 = scmp.eq.s32.totalorder %s25, 0
      %p256 = por %p254, %p255
      %p257 = scmp.ne.s32.totalorder %s245, %s246
      %p258 = scmp.eq.s32.totalorder %s26, 1
      %p259 = por %p257, %p258
      %p261 = scmp.ne.s32.totalorder %s246, %s260
      %p262 = scmp.eq.s32.totalorder %s26, 0
      %p263 = por %p261, %p262
      %s264 = ssub.s32 %s20, %s27
      %p265 = scmp.eq.s32.totalorder %s264, 0
      %s267 = sadd.s32 %s266, 1
      %s268 = scalar_select %p265, %s266, %s267
      %p271 = pneg %p265
      %p272 = scmp.eq.s32.totalorder %s20, 1
      %p273 = por %p271, %p272
      %p274 = scmp.ne.s32.totalorder %s266, %s269
      %p275 = scmp.eq.s32.totalorder %s20, 0
      %p276 = por %p274, %p275
      %p277 = scmp.ne.s32.totalorder %s266, %s269
      %p278 = scmp.eq.s32.totalorder %s25, 1
      %p279 = por %p277, %p278
      %p280 = scmp.ne.s32.totalorder %s269, %s270
      %p281 = scmp.eq.s32.totalorder %s25, 0
      %p282 = por %p280, %p281
      %p283 = scmp.ne.s32.totalorder %s269, %s270
      %p284 = scmp.eq.s32.totalorder %s26, 1
      %p285 = por %p283, %p284
      %p287 = scmp.ne.s32.totalorder %s270, %s286
      %p288 = scmp.eq.s32.totalorder %s26, 0
      %p289 = por %p287, %p288
      %p290 = scmp.le.s32.totalorder 1, %s20
      %p291 = scmp.lt.s32.totalorder %s20, 3
      %p292 = pnand %p290, %p291
      %p293 = pneg %p292
      // Predicated region
      $region9: #{feature_extraction_pallas.1} parent=5 // pred_check
        _
      $region10: #{feature_extraction_pallas.1} parent=5 // pred_check_branch
        %295 = sbr.rel (%p292) target = $region12
      $region11: #{feature_extraction_pallas.1} parent=5 // pred_region
        %s296 = ssub.s32 %s20, 1
        // Predicated region
        $region13: #{feature_extraction_pallas.1} parent=11 // pred_check
          %p297 = pneg %p67
        $region14: #{feature_extraction_pallas.1} parent=11 // pred_check_branch
          %299 = sbr.rel (%p297) target = $region16
        $region15: #{feature_extraction_pallas.1} parent=11 // pred_region
          _
        $region16: #{feature_extraction_pallas.1} parent=11 // pred_fallthru
          _
        // Predicated region
        $region17: #{feature_extraction_pallas.1} parent=11 // pred_check
          %p300 = pneg %p88
        $region18: #{feature_extraction_pallas.1} parent=11 // pred_check_branch
          %302 = sbr.rel (%p300) target = $region20
        $region19: #{feature_extraction_pallas.1} parent=11 // pred_region
          _
        $region20: #{feature_extraction_pallas.1} parent=11 // pred_fallthru
          _
        // Predicated region
        $region21: #{feature_extraction_pallas.1} parent=11 // pred_check
          %p303 = pneg %p109
        $region22: #{feature_extraction_pallas.1} parent=11 // pred_check_branch
          %305 = sbr.rel (%p303) target = $region24
        $region23: #{feature_extraction_pallas.1} parent=11 // pred_region
          _
        $region24: #{feature_extraction_pallas.1} parent=11 // pred_fallthru
          _
        // Predicated region
        $region25: #{feature_extraction_pallas.1} parent=11 // pred_check
          %p306 = pneg %p130
        $region26: #{feature_extraction_pallas.1} parent=11 // pred_check_branch
          %308 = sbr.rel (%p306) target = $region28
        $region27: #{feature_extraction_pallas.1} parent=11 // pred_region
          _
        $region28: #{feature_extraction_pallas.1} parent=11 // pred_fallthru
          _
        // Predicated region
        $region29: #{feature_extraction_pallas.1} parent=11 // pred_check
          %p309 = pneg %p151
        $region30: #{feature_extraction_pallas.1} parent=11 // pred_check_branch
          %311 = sbr.rel (%p309) target = $region32
        $region31: #{feature_extraction_pallas.1} parent=11 // pred_region
          _
        $region32: #{feature_extraction_pallas.1} parent=11 // pred_fallthru
          _
        // Predicated region
        $region33: #{feature_extraction_pallas.1} parent=11 // pred_check
          %p312 = pneg %p172
        $region34: #{feature_extraction_pallas.1} parent=11 // pred_check_branch
          %314 = sbr.rel (%p312) target = $region36
        $region35: #{feature_extraction_pallas.1} parent=11 // pred_region
          _
        $region36: #{feature_extraction_pallas.1} parent=11 // pred_fallthru
          _
        // Predicated region
        $region37: #{feature_extraction_pallas.1} parent=11 // pred_check
          %p315 = pneg %p193
        $region38: #{feature_extraction_pallas.1} parent=11 // pred_check_branch
          %317 = sbr.rel (%p315) target = $region40
        $region39: #{feature_extraction_pallas.1} parent=11 // pred_region
          _
        $region40: #{feature_extraction_pallas.1} parent=11 // pred_fallthru
          _
        // Predicated region
        $region41: #{feature_extraction_pallas.1} parent=11 // pred_check
          %p318 = pneg %p214
        $region42: #{feature_extraction_pallas.1} parent=11 // pred_check_branch
          %320 = sbr.rel (%p318) target = $region44
        $region43: #{feature_extraction_pallas.1} parent=11 // pred_region
          _
        $region44: #{feature_extraction_pallas.1} parent=11 // pred_fallthru
          _
        // Predicated region
        $region45: #{feature_extraction_pallas.1} parent=11 // pred_check
          %p321 = pneg %p235
        $region46: #{feature_extraction_pallas.1} parent=11 // pred_check_branch
          %323 = sbr.rel (%p321) target = $region48
        $region47: #{feature_extraction_pallas.1} parent=11 // pred_region
          _
        $region48: #{feature_extraction_pallas.1} parent=11 // pred_fallthru
          _
        // Predicated region
        $region49: #{feature_extraction_pallas.1} parent=11 // pred_check
          %p324 = pneg %p256
        $region50: #{feature_extraction_pallas.1} parent=11 // pred_check_branch
          %326 = sbr.rel (%p324) target = $region52
        $region51: #{feature_extraction_pallas.1} parent=11 // pred_region
          _
        $region52: #{feature_extraction_pallas.1} parent=11 // pred_fallthru
          _
      $region12: #{feature_extraction_pallas.1} parent=5 // pred_fallthru
        _
      %p327 = scmp.lt.s32.totalorder %s20, 2
      // Predicated region
      $region53: #{feature_extraction_pallas.1} parent=5 // pred_check
        %p328 = pneg %p327
      $region54: #{feature_extraction_pallas.1} parent=5 // pred_check_branch
        %330 = sbr.rel (%p328) target = $region56
      $region55: #{feature_extraction_pallas.1} parent=5 // pred_region
        // Predicated region
        $region57: #{feature_extraction_pallas.1} parent=55 // pred_check
          %p331 = pneg %p40
        $region58: #{feature_extraction_pallas.1} parent=55 // pred_check_branch
          %333 = sbr.rel (%p331) target = $region60
        $region59: #{feature_extraction_pallas.1} parent=55 // pred_region
          %p334 = scmp.lt.s32.totalorder %s20, 1
          %s335 = scalar_select %p334, %s20, 1
          %s336 = smul.addr %s335, 4
          %s337 = smul.addr %s336, 8
          %s338 = scalar_lea.vmem %s0, %s337
        $region60: #{feature_extraction_pallas.1} parent=55 // pred_fallthru
          _
      $region56: #{feature_extraction_pallas.1} parent=5 // pred_fallthru
        _
      %p339 = scmp.le.s32.totalorder 1, %s20
      %p340 = scmp.lt.s32.totalorder %s20, 3
      %p341 = pnand %p339, %p340
      %p342 = pneg %p341
      // Predicated region
      $region61: #{feature_extraction_pallas.1} parent=5 // pred_check
        _
      $region62: #{feature_extraction_pallas.1} parent=5 // pred_check_branch
        %344 = sbr.rel (%p341) target = $region64
      $region63: #{feature_extraction_pallas.1} parent=5 // pred_region
        %s345 = ssub.s32 %s20, 1
        %p346 = scmp.lt.s32.totalorder %s25, 1
        %s347 = scalar_select %p346, %s25, 1
        %s348 = smul.addr %s347, 4
        %s349 = smul.addr %s348, 8
        %s350 = scalar_lea.vmem %s0, %s349
        %p351 = pneg %p46
        %p352 = pneg %p43
        %p353 = pneg %p67
        %p354 = pneg %p64
        %p355 = pneg %p88
        %p356 = pneg %p85
        %p357 = pneg %p109
        %p358 = pneg %p106
        %p359 = pneg %p130
        %p360 = pneg %p127
        %p361 = pneg %p151
        %p362 = pneg %p148
        %p363 = pneg %p172
        %p364 = pneg %p169
        %p365 = pneg %p193
        %p366 = pneg %p190
        %p367 = pneg %p214
        %p368 = pneg %p211
        %p369 = pneg %p235
        %p370 = pneg %p232
        %p371 = pneg %p256
        %p372 = pneg %p253
        %p373 = pneg %p282
        %p374 = pneg %p279
        %s375 = sand.u32 %s269, 1
        %s376 = scalar_lea.sflag [#allocation3], %s375
        %s377 = sand.u32 %s269, 1
        %s378 = smul.addr %s377, 128
        %s379 = scalar_lea.vmem [#allocation2], %s378
        %p380 = scmp.lt.s32.totalorder %s25, 1
        %s381 = scalar_select %p380, %s25, 1
        %s382 = smul.addr %s381, 4
        %s383 = smul.addr %s382, 8
        %s384 = scalar_lea.vmem %s0, %s383
        %v385 = vld [vmem:[%s384] sm:$0xff]
        %v386 = vld [vmem:[%s384 + $0x8] sm:$0xff]
        %v387 = vld [vmem:[%s384 + $0x10] sm:$0xff]
        %v388 = vld [vmem:[%s384 + $0x18] sm:$0xff]
        %v389 = vld [vmem:[%s1] sm:$0xff]
        %v390 = vld [vmem:[%s1 + $0x8] sm:$0xff]
        %v391 = vld [vmem:[%s1 + $0x10] sm:$0xff]
        %v392 = vld [vmem:[%s1 + $0x18] sm:$0xff]
        %v393 = vld [vmem:[%s1 + $0x20] sm:$0xff]
        %v394 = vld [vmem:[%s1 + $0x28] sm:$0xff]
        %v395 = vld [vmem:[%s1 + $0x30] sm:$0xff]
        %v396 = vld [vmem:[%s1 + $0x38] sm:$0xff]
        %v397 = vld [vmem:[%s1 + $0x40] sm:$0xff]
        %v398 = vld [vmem:[%s1 + $0x48] sm:$0xff]
        %v399 = vld [vmem:[%s1 + $0x50] sm:$0xff]
        %v400 = vld [vmem:[%s1 + $0x58] sm:$0xff]
        %v401 = vld [vmem:[%s1 + $0x60] sm:$0xff]
        %v402 = vld [vmem:[%s1 + $0x68] sm:$0xff]
        %v403 = vld [vmem:[%s1 + $0x70] sm:$0xff]
        %v404 = vld [vmem:[%s1 + $0x78] sm:$0xff]
        %s405 = scalar_lea.vmem %s1, 128
        %v406 = vld [vmem:[%s405] sm:$0xff]
        %v407 = vld [vmem:[%s405 + $0x8] sm:$0xff]
        %v408 = vld [vmem:[%s405 + $0x10] sm:$0xff]
        %v409 = vld [vmem:[%s405 + $0x18] sm:$0xff]
        %v410 = vld [vmem:[%s405 + $0x20] sm:$0xff]
        %v411 = vld [vmem:[%s405 + $0x28] sm:$0xff]
        %v412 = vld [vmem:[%s405 + $0x30] sm:$0xff]
        %v413 = vld [vmem:[%s405 + $0x38] sm:$0xff]
        %v414 = vld [vmem:[%s405 + $0x40] sm:$0xff]
        %v415 = vld [vmem:[%s405 + $0x48] sm:$0xff]
        %v416 = vld [vmem:[%s405 + $0x50] sm:$0xff]
        %v417 = vld [vmem:[%s405 + $0x58] sm:$0xff]
        %v418 = vld [vmem:[%s405 + $0x60] sm:$0xff]
        %v419 = vld [vmem:[%s405 + $0x68] sm:$0xff]
        %v420 = vld [vmem:[%s405 + $0x70] sm:$0xff]
        %v421 = vld [vmem:[%s405 + $0x78] sm:$0xff]
        %426 = vrot.lane.b32.xlu0 %v385, 127
        %v427 = vpop.permute.xlu0 %426
        %428 = vrot.lane.b32.xlu0 %v386, 127
        %v429 = vpop.permute.xlu0 %428
        %430 = vrot.lane.b32.xlu0 %v387, 127
        %v431 = vpop.permute.xlu0 %430
        %432 = vrot.lane.b32.xlu0 %v388, 127
        %v433 = vpop.permute.xlu0 %432
        %vm434 = vcmask 1039360
        %v435 = vsel %vm434, %v427, %v429
        %v436 = vsel %vm434, %v431, %v433
        %vm439 = vcmask 130048
        %v441 = vsel %vm439, %v406, 0
        %v444 = vsel %vm439, %v407, 0
        %v447 = vsel %vm439, %v408, 0
        %v450 = vsel %vm439, %v409, 0
        %v453 = vsel %vm439, %v410, 0
        %v456 = vsel %vm439, %v411, 0
        %v459 = vsel %vm439, %v412, 0
        %v462 = vsel %vm439, %v413, 0
        %v465 = vsel %vm439, %v414, 0
        %v468 = vsel %vm439, %v415, 0
        %v471 = vsel %vm439, %v416, 0
        %v474 = vsel %vm439, %v417, 0
        %v477 = vsel %vm439, %v418, 0
        %v480 = vsel %vm439, %v419, 0
        %v483 = vsel %vm439, %v420, 0
        %v486 = vsel %vm439, %v421, 0
        %488 = vmatprep.subr.mxu0 0.0
        %489 = vmatpush1.msra.mxu0 %v435
        %490 = vmatprep.subr.mxu0 0.0
        %491 = vmatpush1.msra.mxu0 %v436
        %492 = vmatprep.subr.mxu0 0.0
        %493 = vmatpush1.msra.mxu0 0.0
        %494 = vmatprep.subr.mxu0 0.0
        %495 = vmatpush1.msra.mxu0 0.0
        %496 = vmatprep.subr.mxu0 0.0
        %497 = vmatpush1.msra.mxu0 0.0
        %498 = vmatprep.subr.mxu0 0.0
        %499 = vmatpush1.msra.mxu0 0.0
        %500 = vmatprep.subr.mxu0 0.0
        %501 = vmatpush1.msra.mxu0 0.0
        %502 = vmatprep.subr.mxu0 0.0
        %503 = vmatpush1.msra.mxu0 0.0
        %504 = vmatprep.subr.mxu0 0.0
        %505 = vmatpush1.msra.mxu0 0.0
        %506 = vmatprep.subr.mxu0 0.0
        %507 = vmatpush1.msra.mxu0 0.0
        %508 = vmatprep.subr.mxu0 0.0
        %509 = vmatpush1.msra.mxu0 0.0
        %510 = vmatprep.subr.mxu0 0.0
        %511 = vmatpush1.msra.mxu0 0.0
        %512 = vmatprep.subr.mxu0 0.0
        %513 = vmatpush1.msra.mxu0 0.0
        %514 = vmatprep.subr.mxu0 0.0
        %515 = vmatpush1.msra.mxu0 0.0
        %516 = vmatprep.subr.mxu0 0.0
        %517 = vmatpush1.msra.mxu0 0.0
        %518 = vmatprep.subr.mxu0 0.0
        %519 = vmatpush1.msra.mxu0 0.0
        %520 = vmatprep.subr.mxu0 0.0
        %521 = vmatpush1.msra.mxu0 0.0
        %522 = vmatprep.subr.mxu0 0.0
        %523 = vmatpush1.msra.mxu0 0.0
        %524 = vmatprep.subr.mxu0 0.0
        %525 = vmatpush1.msra.mxu0 0.0
        %526 = vmatprep.subr.mxu0 0.0
        %527 = vmatpush1.msra.mxu0 0.0
        %528 = vmatprep.subr.mxu0 0.0
        %529 = vmatpush1.msra.mxu0 0.0
        %530 = vmatprep.subr.mxu0 0.0
        %531 = vmatpush1.msra.mxu0 0.0
        %532 = vmatprep.subr.mxu0 0.0
        %533 = vmatpush1.msra.mxu0 0.0
        %534 = vmatprep.subr.mxu0 0.0
        %535 = vmatpush1.msra.mxu0 0.0
        %536 = vmatprep.subr.mxu0 0.0
        %537 = vmatpush1.msra.mxu0 0.0
        %538 = vmatprep.subr.mxu0 0.0
        %539 = vmatpush1.msra.mxu0 0.0
        %540 = vmatprep.subr.mxu0 0.0
        %541 = vmatpush1.msra.mxu0 0.0
        %542 = vmatprep.subr.mxu0 0.0
        %543 = vmatpush1.msra.mxu0 0.0
        %544 = vmatprep.subr.mxu0 0.0
        %545 = vmatpush1.msra.mxu0 0.0
        %546 = vmatprep.subr.mxu0 0.0
        %547 = vmatpush1.msra.mxu0 0.0
        %548 = vmatprep.subr.mxu0 0.0
        %549 = vmatpush1.msra.mxu0 0.0
        %550 = vmatprep.subr.mxu0 0.0
        %551 = vmatpush1.msra.mxu0 0.0
        %552 = vmatprep.mubr.f32.mxu0 0.0
        %553 = vmatmul.mubr.f32.gmra.mrb[0].mxu0 %v441
        %v554 = vpop.f32.mrb[0].mxu0
        %v555 = vadd.f32 0.0, %v554
        %v556 = vpop.f32.mrb[0].mxu0
        %557 = vmatprep.mubr.f32.mxu0 0.0
        %558 = vmatmul.mubr.f32.gmra.mrb[0].mxu0 %v444
        %v559 = vpop.f32.mrb[0].mxu0
        %v560 = vadd.f32 0.0, %v559
        %v561 = vpop.f32.mrb[0].mxu0
        %562 = vmatprep.mubr.f32.mxu0 0.0
        %563 = vmatmul.mubr.f32.gmra.mrb[0].mxu0 %v447
        %v564 = vpop.f32.mrb[0].mxu0
        %v565 = vadd.f32 0.0, %v564
        %v566 = vpop.f32.mrb[0].mxu0
        %567 = vmatprep.mubr.f32.mxu0 0.0
        %568 = vmatmul.mubr.f32.gmra.mrb[0].mxu0 %v450
        %v569 = vpop.f32.mrb[0].mxu0
        %v570 = vadd.f32 0.0, %v569
        %v571 = vpop.f32.mrb[0].mxu0
        %572 = vmatprep.mubr.f32.mxu0 0.0
        %573 = vmatmul.mubr.f32.gmra.mrb[0].mxu0 %v453
        %v574 = vpop.f32.mrb[0].mxu0
        %v575 = vadd.f32 0.0, %v574
        %v576 = vpop.f32.mrb[0].mxu0
        %577 = vmatprep.mubr.f32.mxu0 0.0
        %578 = vmatmul.mubr.f32.gmra.mrb[0].mxu0 %v456
        %v579 = vpop.f32.mrb[0].mxu0
        %v580 = vadd.f32 0.0, %v579
        %v581 = vpop.f32.mrb[0].mxu0
        %582 = vmatprep.mubr.f32.mxu0 0.0
        %583 = vmatmul.mubr.f32.gmra.mrb[0].mxu0 %v459
        %v584 = vpop.f32.mrb[0].mxu0
        %v585 = vadd.f32 0.0, %v584
        %v586 = vpop.f32.mrb[0].mxu0
        %587 = vmatprep.mubr.f32.mxu0 0.0
        %588 = vmatmul.mubr.f32.gmra.mrb[0].mxu0 %v462
        %v589 = vpop.f32.mrb[0].mxu0
        %v590 = vadd.f32 0.0, %v589
        %v591 = vpop.f32.mrb[0].mxu0
        %592 = vmatprep.mubr.f32.mxu0 0.0
        %593 = vmatmul.mubr.f32.gmra.mrb[0].mxu0 %v465
        %v594 = vpop.f32.mrb[0].mxu0
        %v595 = vadd.f32 0.0, %v594
        %v596 = vpop.f32.mrb[0].mxu0
        %597 = vmatprep.mubr.f32.mxu0 0.0
        %598 = vmatmul.mubr.f32.gmra.mrb[0].mxu0 %v468
        %v599 = vpop.f32.mrb[0].mxu0
        %v600 = vadd.f32 0.0, %v599
        %v601 = vpop.f32.mrb[0].mxu0
        %602 = vmatprep.mubr.f32.mxu0 0.0
        %603 = vmatmul.mubr.f32.gmra.mrb[0].mxu0 %v471
        %v604 = vpop.f32.mrb[0].mxu0
        %v605 = vadd.f32 0.0, %v604
        %v606 = vpop.f32.mrb[0].mxu0
        %607 = vmatprep.mubr.f32.mxu0 0.0
        %608 = vmatmul.mubr.f32.gmra.mrb[0].mxu0 %v474
        %v609 = vpop.f32.mrb[0].mxu0
        %v610 = vadd.f32 0.0, %v609
        %v611 = vpop.f32.mrb[0].mxu0
        %612 = vmatprep.mubr.f32.mxu0 0.0
        %613 = vmatmul.mubr.f32.gmra.mrb[0].mxu0 %v477
        %v614 = vpop.f32.mrb[0].mxu0
        %v615 = vadd.f32 0.0, %v614
        %v616 = vpop.f32.mrb[0].mxu0
        %617 = vmatprep.mubr.f32.mxu0 0.0
        %618 = vmatmul.mubr.f32.gmra.mrb[0].mxu0 %v480
        %v619 = vpop.f32.mrb[0].mxu0
        %v620 = vadd.f32 0.0, %v619
        %v621 = vpop.f32.mrb[0].mxu0
        %622 = vmatprep.mubr.f32.mxu0 0.0
        %623 = vmatmul.mubr.f32.gmra.mrb[0].mxu0 %v483
        %v624 = vpop.f32.mrb[0].mxu0
        %v625 = vadd.f32 0.0, %v624
        %v626 = vpop.f32.mrb[0].mxu0
        %627 = vmatprep.mubr.f32.mxu0 0.0
        %628 = vmatmul.mubr.f32.gmra.mrb[0].mxu0 %v486
        %v629 = vpop.f32.mrb[0].mxu0
        %v630 = vadd.f32 0.0, %v629
        %v631 = vpop.f32.mrb[0].mxu0
        %632 = vdwg.mxu0
        %v634 = vsel %vm439, %v389, 0
        %v637 = vsel %vm439, %v390, 0
        %v640 = vsel %vm439, %v391, 0
        %v643 = vsel %vm439, %v392, 0
        %v646 = vsel %vm439, %v393, 0
        %v649 = vsel %vm439, %v394, 0
        %v652 = vsel %vm439, %v395, 0
        %v655 = vsel %vm439, %v396, 0
        %v658 = vsel %vm439, %v397, 0
        %v661 = vsel %vm439, %v398, 0
        %v664 = vsel %vm439, %v399, 0
        %v667 = vsel %vm439, %v400, 0
        %v670 = vsel %vm439, %v401, 0
        %v673 = vsel %vm439, %v402, 0
        %v676 = vsel %vm439, %v403, 0
        %v679 = vsel %vm439, %v404, 0
        %681 = vmatprep.subr.mxu0 0.0
        %682 = vmatpush1.msra.mxu0 %v385
        %683 = vmatprep.subr.mxu0 0.0
        %684 = vmatpush1.msra.mxu0 %v387
        %685 = vmatprep.subr.mxu0 0.0
        %686 = vmatpush1.msra.mxu0 0.0
        %687 = vmatprep.subr.mxu0 0.0
        %688 = vmatpush1.msra.mxu0 0.0
        %689 = vmatprep.subr.mxu0 0.0
        %690 = vmatpush1.msra.mxu0 0.0
        %691 = vmatprep.subr.mxu0 0.0
        %692 = vmatpush1.msra.mxu0 0.0
        %693 = vmatprep.subr.mxu0 0.0
        %694 = vmatpush1.msra.mxu0 0.0
        %695 = vmatprep.subr.mxu0 0.0
        %696 = vmatpush1.msra.mxu0 0.0
        %697 = vmatprep.subr.mxu0 0.0
        %698 = vmatpush1.msra.mxu0 0.0
        %699 = vmatprep.subr.mxu0 0.0
        %700 = vmatpush1.msra.mxu0 0.0
        %701 = vmatprep.subr.mxu0 0.0
        %702 = vmatpush1.msra.mxu0 0.0
        %703 = vmatprep.subr.mxu0 0.0
        %704 = vmatpush1.msra.mxu0 0.0
        %705 = vmatprep.subr.mxu0 0.0
        %706 = vmatpush1.msra.mxu0 0.0
        %707 = vmatprep.subr.mxu0 0.0
        %708 = vmatpush1.msra.mxu0 0.0
        %709 = vmatprep.subr.mxu0 0.0
        %710 = vmatpush1.msra.mxu0 0.0
        %711 = vmatprep.subr.mxu0 0.0
        %712 = vmatpush1.msra.mxu0 0.0
        %713 = vmatprep.subr.mxu0 0.0
        %714 = vmatpush1.msra.mxu0 0.0
        %715 = vmatprep.subr.mxu0 0.0
        %716 = vmatpush1.msra.mxu0 0.0
        %717 = vmatprep.subr.mxu0 0.0
        %718 = vmatpush1.msra.mxu0 0.0
        %719 = vmatprep.subr.mxu0 0.0
        %720 = vmatpush1.msra.mxu0 0.0
        %721 = vmatprep.subr.mxu0 0.0
        %722 = vmatpush1.msra.mxu0 0.0
        %723 = vmatprep.subr.mxu0 0.0
        %724 = vmatpush1.msra.mxu0 0.0
        %725 = vmatprep.subr.mxu0 0.0
        %726 = vmatpush1.msra.mxu0 0.0
        %727 = vmatprep.subr.mxu0 0.0
        %728 = vmatpush1.msra.mxu0 0.0
        %729 = vmatprep.subr.mxu0 0.0
        %730 = vmatpush1.msra.mxu0 0.0
        %731 = vmatprep.subr.mxu0 0.0
        %732 = vmatpush1.msra.mxu0 0.0
        %733 = vmatprep.subr.mxu0 0.0
        %734 = vmatpush1.msra.mxu0 0.0
        %735 = vmatprep.subr.mxu0 0.0
        %736 = vmatpush1.msra.mxu0 0.0
        %737 = vmatprep.subr.mxu0 0.0
        %738 = vmatpush1.msra.mxu0 0.0
        %739 = vmatprep.subr.mxu0 0.0
        %740 = vmatpush1.msra.mxu0 0.0
        %741 = vmatprep.subr.mxu0 0.0
        %742 = vmatpush1.msra.mxu0 0.0
        %743 = vmatprep.subr.mxu0 0.0
        %744 = vmatpush1.msra.mxu0 0.0
        %745 = vmatprep.mubr.f32.mxu0 0.0
        %746 = vmatmul.mubr.f32.gmra.mrb[0].mxu0 %v634
        %v747 = vpop.f32.mrb[0].mxu0
        %v748 = vadd.f32 %v555, %v747
        %v749 = vpop.f32.mrb[0].mxu0
        %750 = vmatprep.mubr.f32.mxu0 0.0
        %751 = vmatmul.mubr.f32.gmra.mrb[0].mxu0 %v637
        %v752 = vpop.f32.mrb[0].mxu0
        %v753 = vadd.f32 %v560, %v752
        %v754 = vpop.f32.mrb[0].mxu0
        %755 = vmatprep.mubr.f32.mxu0 0.0
        %756 = vmatmul.mubr.f32.gmra.mrb[0].mxu0 %v640
        %v757 = vpop.f32.mrb[0].mxu0
        %v758 = vadd.f32 %v565, %v757
        %v759 = vpop.f32.mrb[0].mxu0
        %760 = vmatprep.mubr.f32.mxu0 0.0
        %761 = vmatmul.mubr.f32.gmra.mrb[0].mxu0 %v643
        %v762 = vpop.f32.mrb[0].mxu0
        %v763 = vadd.f32 %v570, %v762
        %v764 = vpop.f32.mrb[0].mxu0
        %765 = vmatprep.mubr.f32.mxu0 0.0
        %766 = vmatmul.mubr.f32.gmra.mrb[0].mxu0 %v646
        %v767 = vpop.f32.mrb[0].mxu0
        %v768 = vadd.f32 %v575, %v767
        %v769 = vpop.f32.mrb[0].mxu0
        %770 = vmatprep.mubr.f32.mxu0 0.0
        %771 = vmatmul.mubr.f32.gmra.mrb[0].mxu0 %v649
        %v772 = vpop.f32.mrb[0].mxu0
        %v773 = vadd.f32 %v580, %v772
        %v774 = vpop.f32.mrb[0].mxu0
        %775 = vmatprep.mubr.f32.mxu0 0.0
        %776 = vmatmul.mubr.f32.gmra.mrb[0].mxu0 %v652
        %v777 = vpop.f32.mrb[0].mxu0
        %v778 = vadd.f32 %v585, %v777
        %v779 = vpop.f32.mrb[0].mxu0
        %780 = vmatprep.mubr.f32.mxu0 0.0
        %781 = vmatmul.mubr.f32.gmra.mrb[0].mxu0 %v655
        %v782 = vpop.f32.mrb[0].mxu0
        %v783 = vadd.f32 %v590, %v782
        %v784 = vpop.f32.mrb[0].mxu0
        %785 = vmatprep.mubr.f32.mxu0 0.0
        %786 = vmatmul.mubr.f32.gmra.mrb[0].mxu0 %v658
        %v787 = vpop.f32.mrb[0].mxu0
        %v788 = vadd.f32 %v595, %v787
        %v789 = vpop.f32.mrb[0].mxu0
        %790 = vmatprep.mubr.f32.mxu0 0.0
        %791 = vmatmul.mubr.f32.gmra.mrb[0].mxu0 %v661
        %v792 = vpop.f32.mrb[0].mxu0
        %v793 = vadd.f32 %v600, %v792
        %v794 = vpop.f32.mrb[0].mxu0
        %795 = vmatprep.mubr.f32.mxu0 0.0
        %796 = vmatmul.mubr.f32.gmra.mrb[0].mxu0 %v664
        %v797 = vpop.f32.mrb[0].mxu0
        %v798 = vadd.f32 %v605, %v797
        %v799 = vpop.f32.mrb[0].mxu0
        %800 = vmatprep.mubr.f32.mxu0 0.0
        %801 = vmatmul.mubr.f32.gmra.mrb[0].mxu0 %v667
        %v802 = vpop.f32.mrb[0].mxu0
        %v803 = vadd.f32 %v610, %v802
        %v804 = vpop.f32.mrb[0].mxu0
        %805 = vmatprep.mubr.f32.mxu0 0.0
        %806 = vmatmul.mubr.f32.gmra.mrb[0].mxu0 %v670
        %v807 = vpop.f32.mrb[0].mxu0
        %v808 = vadd.f32 %v615, %v807
        %v809 = vpop.f32.mrb[0].mxu0
        %810 = vmatprep.mubr.f32.mxu0 0.0
        %811 = vmatmul.mubr.f32.gmra.mrb[0].mxu0 %v673
        %v812 = vpop.f32.mrb[0].mxu0
        %v813 = vadd.f32 %v620, %v812
        %v814 = vpop.f32.mrb[0].mxu0
        %815 = vmatprep.mubr.f32.mxu0 0.0
        %816 = vmatmul.mubr.f32.gmra.mrb[0].mxu0 %v676
        %v817 = vpop.f32.mrb[0].mxu0
        %v818 = vadd.f32 %v625, %v817
        %v819 = vpop.f32.mrb[0].mxu0
        %820 = vmatprep.mubr.f32.mxu0 0.0
        %821 = vmatmul.mubr.f32.gmra.mrb[0].mxu0 %v679
        %v822 = vpop.f32.mrb[0].mxu0
        %v823 = vadd.f32 %v630, %v822
        %v824 = vpop.f32.mrb[0].mxu0
        %825 = vdwg.mxu0
        %s826 = scalar_lea.vmem %s1, 256
        %v827 = vld [vmem:[%s826] sm:$0xff]
        %v828 = vld [vmem:[%s826 + $0x8] sm:$0xff]
        %v829 = vld [vmem:[%s826 + $0x10] sm:$0xff]
        %v830 = vld [vmem:[%s826 + $0x18] sm:$0xff]
        %v831 = vld [vmem:[%s826 + $0x20] sm:$0xff]
        %v832 = vld [vmem:[%s826 + $0x28] sm:$0xff]
        %v833 = vld [vmem:[%s826 + $0x30] sm:$0xff]
        %v834 = vld [vmem:[%s826 + $0x38] sm:$0xff]
        %v835 = vld [vmem:[%s826 + $0x40] sm:$0xff]
        %v836 = vld [vmem:[%s826 + $0x48] sm:$0xff]
        %v837 = vld [vmem:[%s826 + $0x50] sm:$0xff]
        %v838 = vld [vmem:[%s826 + $0x58] sm:$0xff]
        %v839 = vld [vmem:[%s826 + $0x60] sm:$0xff]
        %v840 = vld [vmem:[%s826 + $0x68] sm:$0xff]
        %v841 = vld [vmem:[%s826 + $0x70] sm:$0xff]
        %v842 = vld [vmem:[%s826 + $0x78] sm:$0xff]
        %843 = vrot.lane.b32.xlu0 %v385, 126
        %v844 = vpop.permute.xlu0 %843
        %845 = vrot.lane.b32.xlu0 %v386, 126
        %v846 = vpop.permute.xlu0 %845
        %847 = vrot.lane.b32.xlu0 %v387, 126
        %v848 = vpop.permute.xlu0 %847
        %849 = vrot.lane.b32.xlu0 %v388, 126
        %v850 = vpop.permute.xlu0 %849
        %vm851 = vcmask 1031168
        %v852 = vsel %vm851, %v844, %v846
        %v853 = vsel %vm851, %v848, %v850
        %v857 = vsel %vm439, %v827, 0
        %v860 = vsel %vm439, %v828, 0
        %v863 = vsel %vm439, %v829, 0
        %v866 = vsel %vm439, %v830, 0
        %v869 = vsel %vm439, %v831, 0
        %v872 = vsel %vm439, %v832, 0
        %v875 = vsel %vm439, %v833, 0
        %v878 = vsel %vm439, %v834, 0
        %v881 = vsel %vm439, %v835, 0
        %v884 = vsel %vm439, %v836, 0
        %v887 = vsel %vm439, %v837, 0
        %v890 = vsel %vm439, %v838, 0
        %v893 = vsel %vm439, %v839, 0
        %v896 = vsel %vm439, %v840, 0
        %v899 = vsel %vm439, %v841, 0
        %v902 = vsel %vm439, %v842, 0
        %904 = vmatprep.subr.mxu0 0.0
        %905 = vmatpush1.msra.mxu0 %v852
        %906 = vmatprep.subr.mxu0 0.0
        %907 = vmatpush1.msra.mxu0 %v853
        %908 = vmatprep.subr.mxu0 0.0
        %909 = vmatpush1.msra.mxu0 0.0
        %910 = vmatprep.subr.mxu0 0.0
        %911 = vmatpush1.msra.mxu0 0.0
        %912 = vmatprep.subr.mxu0 0.0
        %913 = vmatpush1.msra.mxu0 0.0
        %914 = vmatprep.subr.mxu0 0.0
        %915 = vmatpush1.msra.mxu0 0.0
        %916 = vmatprep.subr.mxu0 0.0
        %917 = vmatpush1.msra.mxu0 0.0
        %918 = vmatprep.subr.mxu0 0.0
        %919 = vmatpush1.msra.mxu0 0.0
        %920 = vmatprep.subr.mxu0 0.0
        %921 = vmatpush1.msra.mxu0 0.0
        %922 = vmatprep.subr.mxu0 0.0
        %923 = vmatpush1.msra.mxu0 0.0
        %924 = vmatprep.subr.mxu0 0.0
        %925 = vmatpush1.msra.mxu0 0.0
        %926 = vmatprep.subr.mxu0 0.0
        %927 = vmatpush1.msra.mxu0 0.0
        %928 = vmatprep.subr.mxu0 0.0
        %929 = vmatpush1.msra.mxu0 0.0
        %930 = vmatprep.subr.mxu0 0.0
        %931 = vmatpush1.msra.mxu0 0.0
        %932 = vmatprep.subr.mxu0 0.0
        %933 = vmatpush1.msra.mxu0 0.0
        %934 = vmatprep.subr.mxu0 0.0
        %935 = vmatpush1.msra.mxu0 0.0
        %936 = vmatprep.subr.mxu0 0.0
        %937 = vmatpush1.msra.mxu0 0.0
        %938 = vmatprep.subr.mxu0 0.0
        %939 = vmatpush1.msra.mxu0 0.0
        %940 = vmatprep.subr.mxu0 0.0
        %941 = vmatpush1.msra.mxu0 0.0
        %942 = vmatprep.subr.mxu0 0.0
        %943 = vmatpush1.msra.mxu0 0.0
        %944 = vmatprep.subr.mxu0 0.0
        %945 = vmatpush1.msra.mxu0 0.0
        %946 = vmatprep.subr.mxu0 0.0
        %947 = vmatpush1.msra.mxu0 0.0
        %948 = vmatprep.subr.mxu0 0.0
        %949 = vmatpush1.msra.mxu0 0.0
        %950 = vmatprep.subr.mxu0 0.0
        %951 = vmatpush1.msra.mxu0 0.0
        %952 = vmatprep.subr.mxu0 0.0
        %953 = vmatpush1.msra.mxu0 0.0
        %954 = vmatprep.subr.mxu0 0.0
        %955 = vmatpush1.msra.mxu0 0.0
        %956 = vmatprep.subr.mxu0 0.0
        %957 = vmatpush1.msra.mxu0 0.0
        %958 = vmatprep.subr.mxu0 0.0
        %959 = vmatpush1.msra.mxu0 0.0
        %960 = vmatprep.subr.mxu0 0.0
        %961 = vmatpush1.msra.mxu0 0.0
        %962 = vmatprep.subr.mxu0 0.0
        %963 = vmatpush1.msra.mxu0 0.0
        %964 = vmatprep.subr.mxu0 0.0
        %965 = vmatpush1.msra.mxu0 0.0
        %966 = vmatprep.subr.mxu0 0.0
        %967 = vmatpush1.msra.mxu0 0.0
        %968 = vmatprep.mubr.f32.mxu0 0.0
        %969 = vmatmul.mubr.f32.gmra.mrb[0].mxu0 %v857
        %v970 = vpop.f32.mrb[0].mxu0
        %v971 = vadd.f32 0.0, %v970
        %v972 = vpop.f32.mrb[0].mxu0
        %973 = vmatprep.mubr.f32.mxu0 0.0
        %974 = vmatmul.mubr.f32.gmra.mrb[0].mxu0 %v860
        %v975 = vpop.f32.mrb[0].mxu0
        %v976 = vadd.f32 0.0, %v975
        %v977 = vpop.f32.mrb[0].mxu0
        %978 = vmatprep.mubr.f32.mxu0 0.0
        %979 = vmatmul.mubr.f32.gmra.mrb[0].mxu0 %v863
        %v980 = vpop.f32.mrb[0].mxu0
        %v981 = vadd.f32 0.0, %v980
        %v982 = vpop.f32.mrb[0].mxu0
        %983 = vmatprep.mubr.f32.mxu0 0.0
        %984 = vmatmul.mubr.f32.gmra.mrb[0].mxu0 %v866
        %v985 = vpop.f32.mrb[0].mxu0
        %v986 = vadd.f32 0.0, %v985
        %v987 = vpop.f32.mrb[0].mxu0
        %988 = vmatprep.mubr.f32.mxu0 0.0
        %989 = vmatmul.mubr.f32.gmra.mrb[0].mxu0 %v869
        %v990 = vpop.f32.mrb[0].mxu0
        %v991 = vadd.f32 0.0, %v990
        %v992 = vpop.f32.mrb[0].mxu0
        %993 = vmatprep.mubr.f32.mxu0 0.0
        %994 = vmatmul.mubr.f32.gmra.mrb[0].mxu0 %v872
        %v995 = vpop.f32.mrb[0].mxu0
        %v996 = vadd.f32 0.0, %v995
        %v997 = vpop.f32.mrb[0].mxu0
        %998 = vmatprep.mubr.f32.mxu0 0.0
        %999 = vmatmul.mubr.f32.gmra.mrb[0].mxu0 %v875
        %v1000 = vpop.f32.mrb[0].mxu0
        %v1001 = vadd.f32 0.0, %v1000
        %v1002 = vpop.f32.mrb[0].mxu0
        %1003 = vmatprep.mubr.f32.mxu0 0.0
        %1004 = vmatmul.mubr.f32.gmra.mrb[0].mxu0 %v878
        %v1005 = vpop.f32.mrb[0].mxu0
        %v1006 = vadd.f32 0.0, %v1005
        %v1007 = vpop.f32.mrb[0].mxu0
        %1008 = vmatprep.mubr.f32.mxu0 0.0
        %1009 = vmatmul.mubr.f32.gmra.mrb[0].mxu0 %v881
        %v1010 = vpop.f32.mrb[0].mxu0
        %v1011 = vadd.f32 0.0, %v1010
        %v1012 = vpop.f32.mrb[0].mxu0
        %1013 = vmatprep.mubr.f32.mxu0 0.0
        %1014 = vmatmul.mubr.f32.gmra.mrb[0].mxu0 %v884
        %v1015 = vpop.f32.mrb[0].mxu0
        %v1016 = vadd.f32 0.0, %v1015
        %v1017 = vpop.f32.mrb[0].mxu0
        %1018 = vmatprep.mubr.f32.mxu0 0.0
        %1019 = vmatmul.mubr.f32.gmra.mrb[0].mxu0 %v887
        %v1020 = vpop.f32.mrb[0].mxu0
        %v1021 = vadd.f32 0.0, %v1020
        %v1022 = vpop.f32.mrb[0].mxu0
        %1023 = vmatprep.mubr.f32.mxu0 0.0
        %1024 = vmatmul.mubr.f32.gmra.mrb[0].mxu0 %v890
        %v1025 = vpop.f32.mrb[0].mxu0
        %v1026 = vadd.f32 0.0, %v1025
        %v1027 = vpop.f32.mrb[0].mxu0
        %1028 = vmatprep.mubr.f32.mxu0 0.0
        %1029 = vmatmul.mubr.f32.gmra.mrb[0].mxu0 %v893
        %v1030 = vpop.f32.mrb[0].mxu0
        %v1031 = vadd.f32 0.0, %v1030
        %v1032 = vpop.f32.mrb[0].mxu0
        %1033 = vmatprep.mubr.f32.mxu0 0.0
        %1034 = vmatmul.mubr.f32.gmra.mrb[0].mxu0 %v896
        %v1035 = vpop.f32.mrb[0].mxu0
        %v1036 = vadd.f32 0.0, %v1035
        %v1037 = vpop.f32.mrb[0].mxu0
        %1038 = vmatprep.mubr.f32.mxu0 0.0
        %1039 = vmatmul.mubr.f32.gmra.mrb[0].mxu0 %v899
        %v1040 = vpop.f32.mrb[0].mxu0
        %v1041 = vadd.f32 0.0, %v1040
        %v1042 = vpop.f32.mrb[0].mxu0
        %1043 = vmatprep.mubr.f32.mxu0 0.0
        %1044 = vmatmul.mubr.f32.gmra.mrb[0].mxu0 %v902
        %v1045 = vpop.f32.mrb[0].mxu0
        %v1046 = vadd.f32 0.0, %v1045
        %v1047 = vpop.f32.mrb[0].mxu0
        %1048 = vdwg.mxu0
        %v1049 = vadd.f32 %v748, %v971
        %v1050 = vadd.f32 %v753, %v976
        %v1051 = vadd.f32 %v758, %v981
        %v1052 = vadd.f32 %v763, %v986
        %v1053 = vadd.f32 %v768, %v991
        %v1054 = vadd.f32 %v773, %v996
        %v1055 = vadd.f32 %v778, %v1001
        %v1056 = vadd.f32 %v783, %v1006
        %v1057 = vadd.f32 %v788, %v1011
        %v1058 = vadd.f32 %v793, %v1016
        %v1059 = vadd.f32 %v798, %v1021
        %v1060 = vadd.f32 %v803, %v1026
        %v1061 = vadd.f32 %v808, %v1031
        %v1062 = vadd.f32 %v813, %v1036
        %v1063 = vadd.f32 %v818, %v1041
        %v1064 = vadd.f32 %v823, %v1046
        %s1065 = scalar_lea.vmem %s1, 384
        %v1066 = vld [vmem:[%s1065] sm:$0xff]
        %v1067 = vld [vmem:[%s1065 + $0x8] sm:$0xff]
        %v1068 = vld [vmem:[%s1065 + $0x10] sm:$0xff]
        %v1069 = vld [vmem:[%s1065 + $0x18] sm:$0xff]
        %v1070 = vld [vmem:[%s1065 + $0x20] sm:$0xff]
        %v1071 = vld [vmem:[%s1065 + $0x28] sm:$0xff]
        %v1072 = vld [vmem:[%s1065 + $0x30] sm:$0xff]
        %v1073 = vld [vmem:[%s1065 + $0x38] sm:$0xff]
        %v1074 = vld [vmem:[%s1065 + $0x40] sm:$0xff]
        %v1075 = vld [vmem:[%s1065 + $0x48] sm:$0xff]
        %v1076 = vld [vmem:[%s1065 + $0x50] sm:$0xff]
        %v1077 = vld [vmem:[%s1065 + $0x58] sm:$0xff]
        %v1078 = vld [vmem:[%s1065 + $0x60] sm:$0xff]
        %v1079 = vld [vmem:[%s1065 + $0x68] sm:$0xff]
        %v1080 = vld [vmem:[%s1065 + $0x70] sm:$0xff]
        %v1081 = vld [vmem:[%s1065 + $0x78] sm:$0xff]
        %1082 = vrot.lane.b32.xlu0 %v385, 125
        %v1083 = vpop.permute.xlu0 %1082
        %1084 = vrot.lane.b32.xlu0 %v386, 125
        %v1085 = vpop.permute.xlu0 %1084
        %1086 = vrot.lane.b32.xlu0 %v387, 125
        %v1087 = vpop.permute.xlu0 %1086
        %1088 = vrot.lane.b32.xlu0 %v388, 125
        %v1089 = vpop.permute.xlu0 %1088
        %vm1090 = vcmask 1022976
        %v1091 = vsel %vm1090, %v1083, %v1085
        %v1092 = vsel %vm1090, %v1087, %v1089
        %v1096 = vsel %vm439, %v1066, 0
        %v1099 = vsel %vm439, %v1067, 0
        %v1102 = vsel %vm439, %v1068, 0
        %v1105 = vsel %vm439, %v1069, 0
        %v1108 = vsel %vm439, %v1070, 0
        %v1111 = vsel %vm439, %v1071, 0
        %v1114 = vsel %vm439, %v1072, 0
        %v1117 = vsel %vm439, %v1073, 0
        %v1120 = vsel %vm439, %v1074, 0
        %v1123 = vsel %vm439, %v1075, 0
        %v1126 = vsel %vm439, %v1076, 0
        %v1129 = vsel %vm439, %v1077, 0
        %v1132 = vsel %vm439, %v1078, 0
        %v1135 = vsel %vm439, %v1079, 0
        %v1138 = vsel %vm439, %v1080, 0
        %v1141 = vsel %vm439, %v1081, 0
        %1143 = vmatprep.subr.mxu0 0.0
        %1144 = vmatpush1.msra.mxu0 %v1091
        %1145 = vmatprep.subr.mxu0 0.0
        %1146 = vmatpush1.msra.mxu0 %v1092
        %1147 = vmatprep.subr.mxu0 0.0
        %1148 = vmatpush1.msra.mxu0 0.0
        %1149 = vmatprep.subr.mxu0 0.0
        %1150 = vmatpush1.msra.mxu0 0.0
        %1151 = vmatprep.subr.mxu0 0.0
        %1152 = vmatpush1.msra.mxu0 0.0
        %1153 = vmatprep.subr.mxu0 0.0
        %1154 = vmatpush1.msra.mxu0 0.0
        %1155 = vmatprep.subr.mxu0 0.0
        %1156 = vmatpush1.msra.mxu0 0.0
        %1157 = vmatprep.subr.mxu0 0.0
        %1158 = vmatpush1.msra.mxu0 0.0
        %1159 = vmatprep.subr.mxu0 0.0
        %1160 = vmatpush1.msra.mxu0 0.0
        %1161 = vmatprep.subr.mxu0 0.0
        %1162 = vmatpush1.msra.mxu0 0.0
        %1163 = vmatprep.subr.mxu0 0.0
        %1164 = vmatpush1.msra.mxu0 0.0
        %1165 = vmatprep.subr.mxu0 0.0
        %1166 = vmatpush1.msra.mxu0 0.0
        %1167 = vmatprep.subr.mxu0 0.0
        %1168 = vmatpush1.msra.mxu0 0.0
        %1169 = vmatprep.subr.mxu0 0.0
        %1170 = vmatpush1.msra.mxu0 0.0
        %1171 = vmatprep.subr.mxu0 0.0
        %1172 = vmatpush1.msra.mxu0 0.0
        %1173 = vmatprep.subr.mxu0 0.0
        %1174 = vmatpush1.msra.mxu0 0.0
        %1175 = vmatprep.subr.mxu0 0.0
        %1176 = vmatpush1.msra.mxu0 0.0
        %1177 = vmatprep.subr.mxu0 0.0
        %1178 = vmatpush1.msra.mxu0 0.0
        %1179 = vmatprep.subr.mxu0 0.0
        %1180 = vmatpush1.msra.mxu0 0.0
        %1181 = vmatprep.subr.mxu0 0.0
        %1182 = vmatpush1.msra.mxu0 0.0
        %1183 = vmatprep.subr.mxu0 0.0
        %1184 = vmatpush1.msra.mxu0 0.0
        %1185 = vmatprep.subr.mxu0 0.0
        %1186 = vmatpush1.msra.mxu0 0.0
        %1187 = vmatprep.subr.mxu0 0.0
        %1188 = vmatpush1.msra.mxu0 0.0
        %1189 = vmatprep.subr.mxu0 0.0
        %1190 = vmatpush1.msra.mxu0 0.0
        %1191 = vmatprep.subr.mxu0 0.0
        %1192 = vmatpush1.msra.mxu0 0.0
        %1193 = vmatprep.subr.mxu0 0.0
        %1194 = vmatpush1.msra.mxu0 0.0
        %1195 = vmatprep.subr.mxu0 0.0
        %1196 = vmatpush1.msra.mxu0 0.0
        %1197 = vmatprep.subr.mxu0 0.0
        %1198 = vmatpush1.msra.mxu0 0.0
        %1199 = vmatprep.subr.mxu0 0.0
        %1200 = vmatpush1.msra.mxu0 0.0
        %1201 = vmatprep.subr.mxu0 0.0
        %1202 = vmatpush1.msra.mxu0 0.0
        %1203 = vmatprep.subr.mxu0 0.0
        %1204 = vmatpush1.msra.mxu0 0.0
        %1205 = vmatprep.subr.mxu0 0.0
        %1206 = vmatpush1.msra.mxu0 0.0
        %1207 = vmatprep.mubr.f32.mxu0 0.0
        %1208 = vmatmul.mubr.f32.gmra.mrb[0].mxu0 %v1096
        %v1209 = vpop.f32.mrb[0].mxu0
        %v1210 = vadd.f32 0.0, %v1209
        %v1211 = vpop.f32.mrb[0].mxu0
        %1212 = vmatprep.mubr.f32.mxu0 0.0
        %1213 = vmatmul.mubr.f32.gmra.mrb[0].mxu0 %v1099
        %v1214 = vpop.f32.mrb[0].mxu0
        %v1215 = vadd.f32 0.0, %v1214
        %v1216 = vpop.f32.mrb[0].mxu0
        %1217 = vmatprep.mubr.f32.mxu0 0.0
        %1218 = vmatmul.mubr.f32.gmra.mrb[0].mxu0 %v1102
        %v1219 = vpop.f32.mrb[0].mxu0
        %v1220 = vadd.f32 0.0, %v1219
        %v1221 = vpop.f32.mrb[0].mxu0
        %1222 = vmatprep.mubr.f32.mxu0 0.0
        %1223 = vmatmul.mubr.f32.gmra.mrb[0].mxu0 %v1105
        %v1224 = vpop.f32.mrb[0].mxu0
        %v1225 = vadd.f32 0.0, %v1224
        %v1226 = vpop.f32.mrb[0].mxu0
        %1227 = vmatprep.mubr.f32.mxu0 0.0
        %1228 = vmatmul.mubr.f32.gmra.mrb[0].mxu0 %v1108
        %v1229 = vpop.f32.mrb[0].mxu0
        %v1230 = vadd.f32 0.0, %v1229
        %v1231 = vpop.f32.mrb[0].mxu0
        %1232 = vmatprep.mubr.f32.mxu0 0.0
        %1233 = vmatmul.mubr.f32.gmra.mrb[0].mxu0 %v1111
        %v1234 = vpop.f32.mrb[0].mxu0
        %v1235 = vadd.f32 0.0, %v1234
        %v1236 = vpop.f32.mrb[0].mxu0
        %1237 = vmatprep.mubr.f32.mxu0 0.0
        %1238 = vmatmul.mubr.f32.gmra.mrb[0].mxu0 %v1114
        %v1239 = vpop.f32.mrb[0].mxu0
        %v1240 = vadd.f32 0.0, %v1239
        %v1241 = vpop.f32.mrb[0].mxu0
        %1242 = vmatprep.mubr.f32.mxu0 0.0
        %1243 = vmatmul.mubr.f32.gmra.mrb[0].mxu0 %v1117
        %v1244 = vpop.f32.mrb[0].mxu0
        %v1245 = vadd.f32 0.0, %v1244
        %v1246 = vpop.f32.mrb[0].mxu0
        %1247 = vmatprep.mubr.f32.mxu0 0.0
        %1248 = vmatmul.mubr.f32.gmra.mrb[0].mxu0 %v1120
        %v1249 = vpop.f32.mrb[0].mxu0
        %v1250 = vadd.f32 0.0, %v1249
        %v1251 = vpop.f32.mrb[0].mxu0
        %1252 = vmatprep.mubr.f32.mxu0 0.0
        %1253 = vmatmul.mubr.f32.gmra.mrb[0].mxu0 %v1123
        %v1254 = vpop.f32.mrb[0].mxu0
        %v1255 = vadd.f32 0.0, %v1254
        %v1256 = vpop.f32.mrb[0].mxu0
        %1257 = vmatprep.mubr.f32.mxu0 0.0
        %1258 = vmatmul.mubr.f32.gmra.mrb[0].mxu0 %v1126
        %v1259 = vpop.f32.mrb[0].mxu0
        %v1260 = vadd.f32 0.0, %v1259
        %v1261 = vpop.f32.mrb[0].mxu0
        %1262 = vmatprep.mubr.f32.mxu0 0.0
        %1263 = vmatmul.mubr.f32.gmra.mrb[0].mxu0 %v1129
        %v1264 = vpop.f32.mrb[0].mxu0
        %v1265 = vadd.f32 0.0, %v1264
        %v1266 = vpop.f32.mrb[0].mxu0
        %1267 = vmatprep.mubr.f32.mxu0 0.0
        %1268 = vmatmul.mubr.f32.gmra.mrb[0].mxu0 %v1132
        %v1269 = vpop.f32.mrb[0].mxu0
        %v1270 = vadd.f32 0.0, %v1269
        %v1271 = vpop.f32.mrb[0].mxu0
        %1272 = vmatprep.mubr.f32.mxu0 0.0
        %1273 = vmatmul.mubr.f32.gmra.mrb[0].mxu0 %v1135
        %v1274 = vpop.f32.mrb[0].mxu0
        %v1275 = vadd.f32 0.0, %v1274
        %v1276 = vpop.f32.mrb[0].mxu0
        %1277 = vmatprep.mubr.f32.mxu0 0.0
        %1278 = vmatmul.mubr.f32.gmra.mrb[0].mxu0 %v1138
        %v1279 = vpop.f32.mrb[0].mxu0
        %v1280 = vadd.f32 0.0, %v1279
        %v1281 = vpop.f32.mrb[0].mxu0
        %1282 = vmatprep.mubr.f32.mxu0 0.0
        %1283 = vmatmul.mubr.f32.gmra.mrb[0].mxu0 %v1141
        %v1284 = vpop.f32.mrb[0].mxu0
        %v1285 = vadd.f32 0.0, %v1284
        %v1286 = vpop.f32.mrb[0].mxu0
        %1287 = vdwg.mxu0
        %v1288 = vadd.f32 %v1049, %v1210
        %v1289 = vadd.f32 %v1050, %v1215
        %v1290 = vadd.f32 %v1051, %v1220
        %v1291 = vadd.f32 %v1052, %v1225
        %v1292 = vadd.f32 %v1053, %v1230
        %v1293 = vadd.f32 %v1054, %v1235
        %v1294 = vadd.f32 %v1055, %v1240
        %v1295 = vadd.f32 %v1056, %v1245
        %v1296 = vadd.f32 %v1057, %v1250
        %v1297 = vadd.f32 %v1058, %v1255
        %v1298 = vadd.f32 %v1059, %v1260
        %v1299 = vadd.f32 %v1060, %v1265
        %v1300 = vadd.f32 %v1061, %v1270
        %v1301 = vadd.f32 %v1062, %v1275
        %v1302 = vadd.f32 %v1063, %v1280
        %v1303 = vadd.f32 %v1064, %v1285
        %s1304 = scalar_lea.vmem %s1, 512
        %v1305 = vld [vmem:[%s1304] sm:$0xff]
        %v1306 = vld [vmem:[%s1304 + $0x8] sm:$0xff]
        %v1307 = vld [vmem:[%s1304 + $0x10] sm:$0xff]
        %v1308 = vld [vmem:[%s1304 + $0x18] sm:$0xff]
        %v1309 = vld [vmem:[%s1304 + $0x20] sm:$0xff]
        %v1310 = vld [vmem:[%s1304 + $0x28] sm:$0xff]
        %v1311 = vld [vmem:[%s1304 + $0x30] sm:$0xff]
        %v1312 = vld [vmem:[%s1304 + $0x38] sm:$0xff]
        %v1313 = vld [vmem:[%s1304 + $0x40] sm:$0xff]
        %v1314 = vld [vmem:[%s1304 + $0x48] sm:$0xff]
        %v1315 = vld [vmem:[%s1304 + $0x50] sm:$0xff]
        %v1316 = vld [vmem:[%s1304 + $0x58] sm:$0xff]
        %v1317 = vld [vmem:[%s1304 + $0x60] sm:$0xff]
        %v1318 = vld [vmem:[%s1304 + $0x68] sm:$0xff]
        %v1319 = vld [vmem:[%s1304 + $0x70] sm:$0xff]
        %v1320 = vld [vmem:[%s1304 + $0x78] sm:$0xff]
        %1321 = vrot.lane.b32.xlu0 %v385, 124
        %v1322 = vpop.permute.xlu0 %1321
        %1323 = vrot.lane.b32.xlu0 %v386, 124
        %v1324 = vpop.permute.xlu0 %1323
        %1325 = vrot.lane.b32.xlu0 %v387, 124
        %v1326 = vpop.permute.xlu0 %1325
        %1327 = vrot.lane.b32.xlu0 %v388, 124
        %v1328 = vpop.permute.xlu0 %1327
        %vm1329 = vcmask 1014784
        %v1330 = vsel %vm1329, %v1322, %v1324
        %v1331 = vsel %vm1329, %v1326, %v1328
        %v1335 = vsel %vm439, %v1305, 0
        %v1338 = vsel %vm439, %v1306, 0
        %v1341 = vsel %vm439, %v1307, 0
        %v1344 = vsel %vm439, %v1308, 0
        %v1347 = vsel %vm439, %v1309, 0
        %v1350 = vsel %vm439, %v1310, 0
        %v1353 = vsel %vm439, %v1311, 0
        %v1356 = vsel %vm439, %v1312, 0
        %v1359 = vsel %vm439, %v1313, 0
        %v1362 = vsel %vm439, %v1314, 0
        %v1365 = vsel %vm439, %v1315, 0
        %v1368 = vsel %vm439, %v1316, 0
        %v1371 = vsel %vm439, %v1317, 0
        %v1374 = vsel %vm439, %v1318, 0
        %v1377 = vsel %vm439, %v1319, 0
        %v1380 = vsel %vm439, %v1320, 0
        %1382 = vmatprep.subr.mxu0 0.0
        %1383 = vmatpush1.msra.mxu0 %v1330
        %1384 = vmatprep.subr.mxu0 0.0
        %1385 = vmatpush1.msra.mxu0 %v1331
        %1386 = vmatprep.subr.mxu0 0.0
        %1387 = vmatpush1.msra.mxu0 0.0
        %1388 = vmatprep.subr.mxu0 0.0
        %1389 = vmatpush1.msra.mxu0 0.0
        %1390 = vmatprep.subr.mxu0 0.0
        %1391 = vmatpush1.msra.mxu0 0.0
        %1392 = vmatprep.subr.mxu0 0.0
        %1393 = vmatpush1.msra.mxu0 0.0
        %1394 = vmatprep.subr.mxu0 0.0
        %1395 = vmatpush1.msra.mxu0 0.0
        %1396 = vmatprep.subr.mxu0 0.0
        %1397 = vmatpush1.msra.mxu0 0.0
        %1398 = vmatprep.subr.mxu0 0.0
        %1399 = vmatpush1.msra.mxu0 0.0
        %1400 = vmatprep.subr.mxu0 0.0
        %1401 = vmatpush1.msra.mxu0 0.0
        %1402 = vmatprep.subr.mxu0 0.0
        %1403 = vmatpush1.msra.mxu0 0.0
        %1404 = vmatprep.subr.mxu0 0.0
        %1405 = vmatpush1.msra.mxu0 0.0
        %1406 = vmatprep.subr.mxu0 0.0
        %1407 = vmatpush1.msra.mxu0 0.0
        %1408 = vmatprep.subr.mxu0 0.0
        %1409 = vmatpush1.msra.mxu0 0.0
        %1410 = vmatprep.subr.mxu0 0.0
        %1411 = vmatpush1.msra.mxu0 0.0
        %1412 = vmatprep.subr.mxu0 0.0
        %1413 = vmatpush1.msra.mxu0 0.0
        %1414 = vmatprep.subr.mxu0 0.0
        %1415 = vmatpush1.msra.mxu0 0.0
        %1416 = vmatprep.subr.mxu0 0.0
        %1417 = vmatpush1.msra.mxu0 0.0
        %1418 = vmatprep.subr.mxu0 0.0
        %1419 = vmatpush1.msra.mxu0 0.0
        %1420 = vmatprep.subr.mxu0 0.0
        %1421 = vmatpush1.msra.mxu0 0.0
        %1422 = vmatprep.subr.mxu0 0.0
        %1423 = vmatpush1.msra.mxu0 0.0
        %1424 = vmatprep.subr.mxu0 0.0
        %1425 = vmatpush1.msra.mxu0 0.0
        %1426 = vmatprep.subr.mxu0 0.0
        %1427 = vmatpush1.msra.mxu0 0.0
        %1428 = vmatprep.subr.mxu0 0.0
        %1429 = vmatpush1.msra.mxu0 0.0
        %1430 = vmatprep.subr.mxu0 0.0
        %1431 = vmatpush1.msra.mxu0 0.0
        %1432 = vmatprep.subr.mxu0 0.0
        %1433 = vmatpush1.msra.mxu0 0.0
        %1434 = vmatprep.subr.mxu0 0.0
        %1435 = vmatpush1.msra.mxu0 0.0
        %1436 = vmatprep.subr.mxu0 0.0
        %1437 = vmatpush1.msra.mxu0 0.0
        %1438 = vmatprep.subr.mxu0 0.0
        %1439 = vmatpush1.msra.mxu0 0.0
        %1440 = vmatprep.subr.mxu0 0.0
        %1441 = vmatpush1.msra.mxu0 0.0
        %1442 = vmatprep.subr.mxu0 0.0
        %1443 = vmatpush1.msra.mxu0 0.0
        %1444 = vmatprep.subr.mxu0 0.0
        %1445 = vmatpush1.msra.mxu0 0.0
        %1446 = vmatprep.mubr.f32.mxu0 0.0
        %1447 = vmatmul.mubr.f32.gmra.mrb[0].mxu0 %v1335
        %v1448 = vpop.f32.mrb[0].mxu0
        %v1449 = vadd.f32 0.0, %v1448
        %v1450 = vpop.f32.mrb[0].mxu0
        %1451 = vmatprep.mubr.f32.mxu0 0.0
        %1452 = vmatmul.mubr.f32.gmra.mrb[0].mxu0 %v1338
        %v1453 = vpop.f32.mrb[0].mxu0
        %v1454 = vadd.f32 0.0, %v1453
        %v1455 = vpop.f32.mrb[0].mxu0
        %1456 = vmatprep.mubr.f32.mxu0 0.0
        %1457 = vmatmul.mubr.f32.gmra.mrb[0].mxu0 %v1341
        %v1458 = vpop.f32.mrb[0].mxu0
        %v1459 = vadd.f32 0.0, %v1458
        %v1460 = vpop.f32.mrb[0].mxu0
        %1461 = vmatprep.mubr.f32.mxu0 0.0
        %1462 = vmatmul.mubr.f32.gmra.mrb[0].mxu0 %v1344
        %v1463 = vpop.f32.mrb[0].mxu0
        %v1464 = vadd.f32 0.0, %v1463
        %v1465 = vpop.f32.mrb[0].mxu0
        %1466 = vmatprep.mubr.f32.mxu0 0.0
        %1467 = vmatmul.mubr.f32.gmra.mrb[0].mxu0 %v1347
        %v1468 = vpop.f32.mrb[0].mxu0
        %v1469 = vadd.f32 0.0, %v1468
        %v1470 = vpop.f32.mrb[0].mxu0
        %1471 = vmatprep.mubr.f32.mxu0 0.0
        %1472 = vmatmul.mubr.f32.gmra.mrb[0].mxu0 %v1350
        %v1473 = vpop.f32.mrb[0].mxu0
        %v1474 = vadd.f32 0.0, %v1473
        %v1475 = vpop.f32.mrb[0].mxu0
        %1476 = vmatprep.mubr.f32.mxu0 0.0
        %1477 = vmatmul.mubr.f32.gmra.mrb[0].mxu0 %v1353
        %v1478 = vpop.f32.mrb[0].mxu0
        %v1479 = vadd.f32 0.0, %v1478
        %v1480 = vpop.f32.mrb[0].mxu0
        %1481 = vmatprep.mubr.f32.mxu0 0.0
        %1482 = vmatmul.mubr.f32.gmra.mrb[0].mxu0 %v1356
        %v1483 = vpop.f32.mrb[0].mxu0
        %v1484 = vadd.f32 0.0, %v1483
        %v1485 = vpop.f32.mrb[0].mxu0
        %1486 = vmatprep.mubr.f32.mxu0 0.0
        %1487 = vmatmul.mubr.f32.gmra.mrb[0].mxu0 %v1359
        %v1488 = vpop.f32.mrb[0].mxu0
        %v1489 = vadd.f32 0.0, %v1488
        %v1490 = vpop.f32.mrb[0].mxu0
        %1491 = vmatprep.mubr.f32.mxu0 0.0
        %1492 = vmatmul.mubr.f32.gmra.mrb[0].mxu0 %v1362
        %v1493 = vpop.f32.mrb[0].mxu0
        %v1494 = vadd.f32 0.0, %v1493
        %v1495 = vpop.f32.mrb[0].mxu0
        %1496 = vmatprep.mubr.f32.mxu0 0.0
        %1497 = vmatmul.mubr.f32.gmra.mrb[0].mxu0 %v1365
        %v1498 = vpop.f32.mrb[0].mxu0
        %v1499 = vadd.f32 0.0, %v1498
        %v1500 = vpop.f32.mrb[0].mxu0
        %1501 = vmatprep.mubr.f32.mxu0 0.0
        %1502 = vmatmul.mubr.f32.gmra.mrb[0].mxu0 %v1368
        %v1503 = vpop.f32.mrb[0].mxu0
        %v1504 = vadd.f32 0.0, %v1503
        %v1505 = vpop.f32.mrb[0].mxu0
        %1506 = vmatprep.mubr.f32.mxu0 0.0
        %1507 = vmatmul.mubr.f32.gmra.mrb[0].mxu0 %v1371
        %v1508 = vpop.f32.mrb[0].mxu0
        %v1509 = vadd.f32 0.0, %v1508
        %v1510 = vpop.f32.mrb[0].mxu0
        %1511 = vmatprep.mubr.f32.mxu0 0.0
        %1512 = vmatmul.mubr.f32.gmra.mrb[0].mxu0 %v1374
        %v1513 = vpop.f32.mrb[0].mxu0
        %v1514 = vadd.f32 0.0, %v1513
        %v1515 = vpop.f32.mrb[0].mxu0
        %1516 = vmatprep.mubr.f32.mxu0 0.0
        %1517 = vmatmul.mubr.f32.gmra.mrb[0].mxu0 %v1377
        %v1518 = vpop.f32.mrb[0].mxu0
        %v1519 = vadd.f32 0.0, %v1518
        %v1520 = vpop.f32.mrb[0].mxu0
        %1521 = vmatprep.mubr.f32.mxu0 0.0
        %1522 = vmatmul.mubr.f32.gmra.mrb[0].mxu0 %v1380
        %v1523 = vpop.f32.mrb[0].mxu0
        %v1524 = vadd.f32 0.0, %v1523
        %v1525 = vpop.f32.mrb[0].mxu0
        %1526 = vdwg.mxu0
        %v1527 = vadd.f32 %v1288, %v1449
        %v1528 = vadd.f32 %v1289, %v1454
        %v1529 = vadd.f32 %v1290, %v1459
        %v1530 = vadd.f32 %v1291, %v1464
        %v1531 = vadd.f32 %v1292, %v1469
        %v1532 = vadd.f32 %v1293, %v1474
        %v1533 = vadd.f32 %v1294, %v1479
        %v1534 = vadd.f32 %v1295, %v1484
        %v1535 = vadd.f32 %v1296, %v1489
        %v1536 = vadd.f32 %v1297, %v1494
        %v1537 = vadd.f32 %v1298, %v1499
        %v1538 = vadd.f32 %v1299, %v1504
        %v1539 = vadd.f32 %v1300, %v1509
        %v1540 = vadd.f32 %v1301, %v1514
        %v1541 = vadd.f32 %v1302, %v1519
        %v1542 = vadd.f32 %v1303, %v1524
        %s1543 = scalar_lea.vmem %s1, 640
        %v1544 = vld [vmem:[%s1543] sm:$0xff]
        %v1545 = vld [vmem:[%s1543 + $0x8] sm:$0xff]
        %v1546 = vld [vmem:[%s1543 + $0x10] sm:$0xff]
        %v1547 = vld [vmem:[%s1543 + $0x18] sm:$0xff]
        %v1548 = vld [vmem:[%s1543 + $0x20] sm:$0xff]
        %v1549 = vld [vmem:[%s1543 + $0x28] sm:$0xff]
        %v1550 = vld [vmem:[%s1543 + $0x30] sm:$0xff]
        %v1551 = vld [vmem:[%s1543 + $0x38] sm:$0xff]
        %v1552 = vld [vmem:[%s1543 + $0x40] sm:$0xff]
        %v1553 = vld [vmem:[%s1543 + $0x48] sm:$0xff]
        %v1554 = vld [vmem:[%s1543 + $0x50] sm:$0xff]
        %v1555 = vld [vmem:[%s1543 + $0x58] sm:$0xff]
        %v1556 = vld [vmem:[%s1543 + $0x60] sm:$0xff]
        %v1557 = vld [vmem:[%s1543 + $0x68] sm:$0xff]
        %v1558 = vld [vmem:[%s1543 + $0x70] sm:$0xff]
        %v1559 = vld [vmem:[%s1543 + $0x78] sm:$0xff]
        %1560 = vrot.lane.b32.xlu0 %v385, 123
        %v1561 = vpop.permute.xlu0 %1560
        %1562 = vrot.lane.b32.xlu0 %v386, 123
        %v1563 = vpop.permute.xlu0 %1562
        %1564 = vrot.lane.b32.xlu0 %v387, 123
        %v1565 = vpop.permute.xlu0 %1564
        %1566 = vrot.lane.b32.xlu0 %v388, 123
        %v1567 = vpop.permute.xlu0 %1566
        %vm1568 = vcmask 1006592
        %v1569 = vsel %vm1568, %v1561, %v1563
        %v1570 = vsel %vm1568, %v1565, %v1567
        %v1574 = vsel %vm439, %v1544, 0
        %v1577 = vsel %vm439, %v1545, 0
        %v1580 = vsel %vm439, %v1546, 0
        %v1583 = vsel %vm439, %v1547, 0
        %v1586 = vsel %vm439, %v1548, 0
        %v1589 = vsel %vm439, %v1549, 0
        %v1592 = vsel %vm439, %v1550, 0
        %v1595 = vsel %vm439, %v1551, 0
        %v1598 = vsel %vm439, %v1552, 0
        %v1601 = vsel %vm439, %v1553, 0
        %v1604 = vsel %vm439, %v1554, 0
        %v1607 = vsel %vm439, %v1555, 0
        %v1610 = vsel %vm439, %v1556, 0
        %v1613 = vsel %vm439, %v1557, 0
        %v1616 = vsel %vm439, %v1558, 0
        %v1619 = vsel %vm439, %v1559, 0
        %1621 = vmatprep.subr.mxu0 0.0
        %1622 = vmatpush1.msra.mxu0 %v1569
        %1623 = vmatprep.subr.mxu0 0.0
        %1624 = vmatpush1.msra.mxu0 %v1570
        %1625 = vmatprep.subr.mxu0 0.0
        %1626 = vmatpush1.msra.mxu0 0.0
        %1627 = vmatprep.subr.mxu0 0.0
        %1628 = vmatpush1.msra.mxu0 0.0
        %1629 = vmatprep.subr.mxu0 0.0
        %1630 = vmatpush1.msra.mxu0 0.0
        %1631 = vmatprep.subr.mxu0 0.0
        %1632 = vmatpush1.msra.mxu0 0.0
        %1633 = vmatprep.subr.mxu0 0.0
        %1634 = vmatpush1.msra.mxu0 0.0
        %1635 = vmatprep.subr.mxu0 0.0
        %1636 = vmatpush1.msra.mxu0 0.0
        %1637 = vmatprep.subr.mxu0 0.0
        %1638 = vmatpush1.msra.mxu0 0.0
        %1639 = vmatprep.subr.mxu0 0.0
        %1640 = vmatpush1.msra.mxu0 0.0
        %1641 = vmatprep.subr.mxu0 0.0
        %1642 = vmatpush1.msra.mxu0 0.0
        %1643 = vmatprep.subr.mxu0 0.0
        %1644 = vmatpush1.msra.mxu0 0.0
        %1645 = vmatprep.subr.mxu0 0.0
        %1646 = vmatpush1.msra.mxu0 0.0
        %1647 = vmatprep.subr.mxu0 0.0
        %1648 = vmatpush1.msra.mxu0 0.0
        %1649 = vmatprep.subr.mxu0 0.0
        %1650 = vmatpush1.msra.mxu0 0.0
        %1651 = vmatprep.subr.mxu0 0.0
        %1652 = vmatpush1.msra.mxu0 0.0
        %1653 = vmatprep.subr.mxu0 0.0
        %1654 = vmatpush1.msra.mxu0 0.0
        %1655 = vmatprep.subr.mxu0 0.0
        %1656 = vmatpush1.msra.mxu0 0.0
        %1657 = vmatprep.subr.mxu0 0.0
        %1658 = vmatpush1.msra.mxu0 0.0
        %1659 = vmatprep.subr.mxu0 0.0
        %1660 = vmatpush1.msra.mxu0 0.0
        %1661 = vmatprep.subr.mxu0 0.0
        %1662 = vmatpush1.msra.mxu0 0.0
        %1663 = vmatprep.subr.mxu0 0.0
        %1664 = vmatpush1.msra.mxu0 0.0
        %1665 = vmatprep.subr.mxu0 0.0
        %1666 = vmatpush1.msra.mxu0 0.0
        %1667 = vmatprep.subr.mxu0 0.0
        %1668 = vmatpush1.msra.mxu0 0.0
        %1669 = vmatprep.subr.mxu0 0.0
        %1670 = vmatpush1.msra.mxu0 0.0
        %1671 = vmatprep.subr.mxu0 0.0
        %1672 = vmatpush1.msra.mxu0 0.0
        %1673 = vmatprep.subr.mxu0 0.0
        %1674 = vmatpush1.msra.mxu0 0.0
        %1675 = vmatprep.subr.mxu0 0.0
        %1676 = vmatpush1.msra.mxu0 0.0
        %1677 = vmatprep.subr.mxu0 0.0
        %1678 = vmatpush1.msra.mxu0 0.0
        %1679 = vmatprep.subr.mxu0 0.0
        %1680 = vmatpush1.msra.mxu0 0.0
        %1681 = vmatprep.subr.mxu0 0.0
        %1682 = vmatpush1.msra.mxu0 0.0
        %1683 = vmatprep.subr.mxu0 0.0
        %1684 = vmatpush1.msra.mxu0 0.0
        %1685 = vmatprep.mubr.f32.mxu0 0.0
        %1686 = vmatmul.mubr.f32.gmra.mrb[0].mxu0 %v1574
        %v1687 = vpop.f32.mrb[0].mxu0
        %v1688 = vadd.f32 0.0, %v1687
        %v1689 = vpop.f32.mrb[0].mxu0
        %1690 = vmatprep.mubr.f32.mxu0 0.0
        %1691 = vmatmul.mubr.f32.gmra.mrb[0].mxu0 %v1577
        %v1692 = vpop.f32.mrb[0].mxu0
        %v1693 = vadd.f32 0.0, %v1692
        %v1694 = vpop.f32.mrb[0].mxu0
        %1695 = vmatprep.mubr.f32.mxu0 0.0
        %1696 = vmatmul.mubr.f32.gmra.mrb[0].mxu0 %v1580
        %v1697 = vpop.f32.mrb[0].mxu0
        %v1698 = vadd.f32 0.0, %v1697
        %v1699 = vpop.f32.mrb[0].mxu0
        %1700 = vmatprep.mubr.f32.mxu0 0.0
        %1701 = vmatmul.mubr.f32.gmra.mrb[0].mxu0 %v1583
        %v1702 = vpop.f32.mrb[0].mxu0
        %v1703 = vadd.f32 0.0, %v1702
        %v1704 = vpop.f32.mrb[0].mxu0
        %1705 = vmatprep.mubr.f32.mxu0 0.0
        %1706 = vmatmul.mubr.f32.gmra.mrb[0].mxu0 %v1586
        %v1707 = vpop.f32.mrb[0].mxu0
        %v1708 = vadd.f32 0.0, %v1707
        %v1709 = vpop.f32.mrb[0].mxu0
        %1710 = vmatprep.mubr.f32.mxu0 0.0
        %1711 = vmatmul.mubr.f32.gmra.mrb[0].mxu0 %v1589
        %v1712 = vpop.f32.mrb[0].mxu0
        %v1713 = vadd.f32 0.0, %v1712
        %v1714 = vpop.f32.mrb[0].mxu0
        %1715 = vmatprep.mubr.f32.mxu0 0.0
        %1716 = vmatmul.mubr.f32.gmra.mrb[0].mxu0 %v1592
        %v1717 = vpop.f32.mrb[0].mxu0
        %v1718 = vadd.f32 0.0, %v1717
        %v1719 = vpop.f32.mrb[0].mxu0
        %1720 = vmatprep.mubr.f32.mxu0 0.0
        %1721 = vmatmul.mubr.f32.gmra.mrb[0].mxu0 %v1595
        %v1722 = vpop.f32.mrb[0].mxu0
        %v1723 = vadd.f32 0.0, %v1722
        %v1724 = vpop.f32.mrb[0].mxu0
        %1725 = vmatprep.mubr.f32.mxu0 0.0
        %1726 = vmatmul.mubr.f32.gmra.mrb[0].mxu0 %v1598
        %v1727 = vpop.f32.mrb[0].mxu0
        %v1728 = vadd.f32 0.0, %v1727
        %v1729 = vpop.f32.mrb[0].mxu0
        %1730 = vmatprep.mubr.f32.mxu0 0.0
        %1731 = vmatmul.mubr.f32.gmra.mrb[0].mxu0 %v1601
        %v1732 = vpop.f32.mrb[0].mxu0
        %v1733 = vadd.f32 0.0, %v1732
        %v1734 = vpop.f32.mrb[0].mxu0
        %1735 = vmatprep.mubr.f32.mxu0 0.0
        %1736 = vmatmul.mubr.f32.gmra.mrb[0].mxu0 %v1604
        %v1737 = vpop.f32.mrb[0].mxu0
        %v1738 = vadd.f32 0.0, %v1737
        %v1739 = vpop.f32.mrb[0].mxu0
        %1740 = vmatprep.mubr.f32.mxu0 0.0
        %1741 = vmatmul.mubr.f32.gmra.mrb[0].mxu0 %v1607
        %v1742 = vpop.f32.mrb[0].mxu0
        %v1743 = vadd.f32 0.0, %v1742
        %v1744 = vpop.f32.mrb[0].mxu0
        %1745 = vmatprep.mubr.f32.mxu0 0.0
        %1746 = vmatmul.mubr.f32.gmra.mrb[0].mxu0 %v1610
        %v1747 = vpop.f32.mrb[0].mxu0
        %v1748 = vadd.f32 0.0, %v1747
        %v1749 = vpop.f32.mrb[0].mxu0
        %1750 = vmatprep.mubr.f32.mxu0 0.0
        %1751 = vmatmul.mubr.f32.gmra.mrb[0].mxu0 %v1613
        %v1752 = vpop.f32.mrb[0].mxu0
        %v1753 = vadd.f32 0.0, %v1752
        %v1754 = vpop.f32.mrb[0].mxu0
        %1755 = vmatprep.mubr.f32.mxu0 0.0
        %1756 = vmatmul.mubr.f32.gmra.mrb[0].mxu0 %v1616
        %v1757 = vpop.f32.mrb[0].mxu0
        %v1758 = vadd.f32 0.0, %v1757
        %v1759 = vpop.f32.mrb[0].mxu0
        %1760 = vmatprep.mubr.f32.mxu0 0.0
        %1761 = vmatmul.mubr.f32.gmra.mrb[0].mxu0 %v1619
        %v1762 = vpop.f32.mrb[0].mxu0
        %v1763 = vadd.f32 0.0, %v1762
        %v1764 = vpop.f32.mrb[0].mxu0
        %1765 = vdwg.mxu0
        %v1766 = vadd.f32 %v1527, %v1688
        %v1767 = vadd.f32 %v1528, %v1693
        %v1768 = vadd.f32 %v1529, %v1698
        %v1769 = vadd.f32 %v1530, %v1703
        %v1770 = vadd.f32 %v1531, %v1708
        %v1771 = vadd.f32 %v1532, %v1713
        %v1772 = vadd.f32 %v1533, %v1718
        %v1773 = vadd.f32 %v1534, %v1723
        %v1774 = vadd.f32 %v1535, %v1728
        %v1775 = vadd.f32 %v1536, %v1733
        %v1776 = vadd.f32 %v1537, %v1738
        %v1777 = vadd.f32 %v1538, %v1743
        %v1778 = vadd.f32 %v1539, %v1748
        %v1779 = vadd.f32 %v1540, %v1753
        %v1780 = vadd.f32 %v1541, %v1758
        %v1781 = vadd.f32 %v1542, %v1763
        %s1782 = scalar_lea.vmem %s1, 768
        %v1783 = vld [vmem:[%s1782] sm:$0xff]
        %v1784 = vld [vmem:[%s1782 + $0x8] sm:$0xff]
        %v1785 = vld [vmem:[%s1782 + $0x10] sm:$0xff]
        %v1786 = vld [vmem:[%s1782 + $0x18] sm:$0xff]
        %v1787 = vld [vmem:[%s1782 + $0x20] sm:$0xff]
        %v1788 = vld [vmem:[%s1782 + $0x28] sm:$0xff]
        %v1789 = vld [vmem:[%s1782 + $0x30] sm:$0xff]
        %v1790 = vld [vmem:[%s1782 + $0x38] sm:$0xff]
        %v1791 = vld [vmem:[%s1782 + $0x40] sm:$0xff]
        %v1792 = vld [vmem:[%s1782 + $0x48] sm:$0xff]
        %v1793 = vld [vmem:[%s1782 + $0x50] sm:$0xff]
        %v1794 = vld [vmem:[%s1782 + $0x58] sm:$0xff]
        %v1795 = vld [vmem:[%s1782 + $0x60] sm:$0xff]
        %v1796 = vld [vmem:[%s1782 + $0x68] sm:$0xff]
        %v1797 = vld [vmem:[%s1782 + $0x70] sm:$0xff]
        %v1798 = vld [vmem:[%s1782 + $0x78] sm:$0xff]
        %1799 = vrot.lane.b32.xlu0 %v385, 122
        %v1800 = vpop.permute.xlu0 %1799
        %1801 = vrot.lane.b32.xlu0 %v386, 122
        %v1802 = vpop.permute.xlu0 %1801
        %1803 = vrot.lane.b32.xlu0 %v387, 122
        %v1804 = vpop.permute.xlu0 %1803
        %1805 = vrot.lane.b32.xlu0 %v388, 122
        %v1806 = vpop.permute.xlu0 %1805
        %vm1807 = vcmask 998400
        %v1808 = vsel %vm1807, %v1800, %v1802
        %v1809 = vsel %vm1807, %v1804, %v1806
        %v1813 = vsel %vm439, %v1783, 0
        %v1816 = vsel %vm439, %v1784, 0
        %v1819 = vsel %vm439, %v1785, 0
        %v1822 = vsel %vm439, %v1786, 0
        %v1825 = vsel %vm439, %v1787, 0
        %v1828 = vsel %vm439, %v1788, 0
        %v1831 = vsel %vm439, %v1789, 0
        %v1834 = vsel %vm439, %v1790, 0
        %v1837 = vsel %vm439, %v1791, 0
        %v1840 = vsel %vm439, %v1792, 0
        %v1843 = vsel %vm439, %v1793, 0
        %v1846 = vsel %vm439, %v1794, 0
        %v1849 = vsel %vm439, %v1795, 0
        %v1852 = vsel %vm439, %v1796, 0
        %v1855 = vsel %vm439, %v1797, 0
        %v1858 = vsel %vm439, %v1798, 0
        %1860 = vmatprep.subr.mxu0 0.0
        %1861 = vmatpush1.msra.mxu0 %v1808
        %1862 = vmatprep.subr.mxu0 0.0
        %1863 = vmatpush1.msra.mxu0 %v1809
        %1864 = vmatprep.subr.mxu0 0.0
        %1865 = vmatpush1.msra.mxu0 0.0
        %1866 = vmatprep.subr.mxu0 0.0
        %1867 = vmatpush1.msra.mxu0 0.0
        %1868 = vmatprep.subr.mxu0 0.0
        %1869 = vmatpush1.msra.mxu0 0.0
        %1870 = vmatprep.subr.mxu0 0.0
        %1871 = vmatpush1.msra.mxu0 0.0
        %1872 = vmatprep.subr.mxu0 0.0
        %1873 = vmatpush1.msra.mxu0 0.0
        %1874 = vmatprep.subr.mxu0 0.0
        %1875 = vmatpush1.msra.mxu0 0.0
        %1876 = vmatprep.subr.mxu0 0.0
        %1877 = vmatpush1.msra.mxu0 0.0
        %1878 = vmatprep.subr.mxu0 0.0
        %1879 = vmatpush1.msra.mxu0 0.0
        %1880 = vmatprep.subr.mxu0 0.0
        %1881 = vmatpush1.msra.mxu0 0.0
        %1882 = vmatprep.subr.mxu0 0.0
        %1883 = vmatpush1.msra.mxu0 0.0
        %1884 = vmatprep.subr.mxu0 0.0
        %1885 = vmatpush1.msra.mxu0 0.0
        %1886 = vmatprep.subr.mxu0 0.0
        %1887 = vmatpush1.msra.mxu0 0.0
        %1888 = vmatprep.subr.mxu0 0.0
        %1889 = vmatpush1.msra.mxu0 0.0
        %1890 = vmatprep.subr.mxu0 0.0
        %1891 = vmatpush1.msra.mxu0 0.0
        %1892 = vmatprep.subr.mxu0 0.0
        %1893 = vmatpush1.msra.mxu0 0.0
        %1894 = vmatprep.subr.mxu0 0.0
        %1895 = vmatpush1.msra.mxu0 0.0
        %1896 = vmatprep.subr.mxu0 0.0
        %1897 = vmatpush1.msra.mxu0 0.0
        %1898 = vmatprep.subr.mxu0 0.0
        %1899 = vmatpush1.msra.mxu0 0.0
        %1900 = vmatprep.subr.mxu0 0.0
        %1901 = vmatpush1.msra.mxu0 0.0
        %1902 = vmatprep.subr.mxu0 0.0
        %1903 = vmatpush1.msra.mxu0 0.0
        %1904 = vmatprep.subr.mxu0 0.0
        %1905 = vmatpush1.msra.mxu0 0.0
        %1906 = vmatprep.subr.mxu0 0.0
        %1907 = vmatpush1.msra.mxu0 0.0
        %1908 = vmatprep.subr.mxu0 0.0
        %1909 = vmatpush1.msra.mxu0 0.0
        %1910 = vmatprep.subr.mxu0 0.0
        %1911 = vmatpush1.msra.mxu0 0.0
        %1912 = vmatprep.subr.mxu0 0.0
        %1913 = vmatpush1.msra.mxu0 0.0
        %1914 = vmatprep.subr.mxu0 0.0
        %1915 = vmatpush1.msra.mxu0 0.0
        %1916 = vmatprep.subr.mxu0 0.0
        %1917 = vmatpush1.msra.mxu0 0.0
        %1918 = vmatprep.subr.mxu0 0.0
        %1919 = vmatpush1.msra.mxu0 0.0
        %1920 = vmatprep.subr.mxu0 0.0
        %1921 = vmatpush1.msra.mxu0 0.0
        %1922 = vmatprep.subr.mxu0 0.0
        %1923 = vmatpush1.msra.mxu0 0.0
        %1924 = vmatprep.mubr.f32.mxu0 0.0
        %1925 = vmatmul.mubr.f32.gmra.mrb[0].mxu0 %v1813
        %v1926 = vpop.f32.mrb[0].mxu0
        %v1927 = vadd.f32 0.0, %v1926
        %v1928 = vpop.f32.mrb[0].mxu0
        %1929 = vmatprep.mubr.f32.mxu0 0.0
        %1930 = vmatmul.mubr.f32.gmra.mrb[0].mxu0 %v1816
        %v1931 = vpop.f32.mrb[0].mxu0
        %v1932 = vadd.f32 0.0, %v1931
        %v1933 = vpop.f32.mrb[0].mxu0
        %1934 = vmatprep.mubr.f32.mxu0 0.0
        %1935 = vmatmul.mubr.f32.gmra.mrb[0].mxu0 %v1819
        %v1936 = vpop.f32.mrb[0].mxu0
        %v1937 = vadd.f32 0.0, %v1936
        %v1938 = vpop.f32.mrb[0].mxu0
        %1939 = vmatprep.mubr.f32.mxu0 0.0
        %1940 = vmatmul.mubr.f32.gmra.mrb[0].mxu0 %v1822
        %v1941 = vpop.f32.mrb[0].mxu0
        %v1942 = vadd.f32 0.0, %v1941
        %v1943 = vpop.f32.mrb[0].mxu0
        %1944 = vmatprep.mubr.f32.mxu0 0.0
        %1945 = vmatmul.mubr.f32.gmra.mrb[0].mxu0 %v1825
        %v1946 = vpop.f32.mrb[0].mxu0
        %v1947 = vadd.f32 0.0, %v1946
        %v1948 = vpop.f32.mrb[0].mxu0
        %1949 = vmatprep.mubr.f32.mxu0 0.0
        %1950 = vmatmul.mubr.f32.gmra.mrb[0].mxu0 %v1828
        %v1951 = vpop.f32.mrb[0].mxu0
        %v1952 = vadd.f32 0.0, %v1951
        %v1953 = vpop.f32.mrb[0].mxu0
        %1954 = vmatprep.mubr.f32.mxu0 0.0
        %1955 = vmatmul.mubr.f32.gmra.mrb[0].mxu0 %v1831
        %v1956 = vpop.f32.mrb[0].mxu0
        %v1957 = vadd.f32 0.0, %v1956
        %v1958 = vpop.f32.mrb[0].mxu0
        %1959 = vmatprep.mubr.f32.mxu0 0.0
        %1960 = vmatmul.mubr.f32.gmra.mrb[0].mxu0 %v1834
        %v1961 = vpop.f32.mrb[0].mxu0
        %v1962 = vadd.f32 0.0, %v1961
        %v1963 = vpop.f32.mrb[0].mxu0
        %1964 = vmatprep.mubr.f32.mxu0 0.0
        %1965 = vmatmul.mubr.f32.gmra.mrb[0].mxu0 %v1837
        %v1966 = vpop.f32.mrb[0].mxu0
        %v1967 = vadd.f32 0.0, %v1966
        %v1968 = vpop.f32.mrb[0].mxu0
        %1969 = vmatprep.mubr.f32.mxu0 0.0
        %1970 = vmatmul.mubr.f32.gmra.mrb[0].mxu0 %v1840
        %v1971 = vpop.f32.mrb[0].mxu0
        %v1972 = vadd.f32 0.0, %v1971
        %v1973 = vpop.f32.mrb[0].mxu0
        %1974 = vmatprep.mubr.f32.mxu0 0.0
        %1975 = vmatmul.mubr.f32.gmra.mrb[0].mxu0 %v1843
        %v1976 = vpop.f32.mrb[0].mxu0
        %v1977 = vadd.f32 0.0, %v1976
        %v1978 = vpop.f32.mrb[0].mxu0
        %1979 = vmatprep.mubr.f32.mxu0 0.0
        %1980 = vmatmul.mubr.f32.gmra.mrb[0].mxu0 %v1846
        %v1981 = vpop.f32.mrb[0].mxu0
        %v1982 = vadd.f32 0.0, %v1981
        %v1983 = vpop.f32.mrb[0].mxu0
        %1984 = vmatprep.mubr.f32.mxu0 0.0
        %1985 = vmatmul.mubr.f32.gmra.mrb[0].mxu0 %v1849
        %v1986 = vpop.f32.mrb[0].mxu0
        %v1987 = vadd.f32 0.0, %v1986
        %v1988 = vpop.f32.mrb[0].mxu0
        %1989 = vmatprep.mubr.f32.mxu0 0.0
        %1990 = vmatmul.mubr.f32.gmra.mrb[0].mxu0 %v1852
        %v1991 = vpop.f32.mrb[0].mxu0
        %v1992 = vadd.f32 0.0, %v1991
        %v1993 = vpop.f32.mrb[0].mxu0
        %1994 = vmatprep.mubr.f32.mxu0 0.0
        %1995 = vmatmul.mubr.f32.gmra.mrb[0].mxu0 %v1855
        %v1996 = vpop.f32.mrb[0].mxu0
        %v1997 = vadd.f32 0.0, %v1996
        %v1998 = vpop.f32.mrb[0].mxu0
        %1999 = vmatprep.mubr.f32.mxu0 0.0
        %2000 = vmatmul.mubr.f32.gmra.mrb[0].mxu0 %v1858
        %v2001 = vpop.f32.mrb[0].mxu0
        %v2002 = vadd.f32 0.0, %v2001
        %v2003 = vpop.f32.mrb[0].mxu0
        %2004 = vdwg.mxu0
        %v2005 = vadd.f32 %v1766, %v1927
        %v2006 = vadd.f32 %v1767, %v1932
        %v2007 = vadd.f32 %v1768, %v1937
        %v2008 = vadd.f32 %v1769, %v1942
        %v2009 = vadd.f32 %v1770, %v1947
        %v2010 = vadd.f32 %v1771, %v1952
        %v2011 = vadd.f32 %v1772, %v1957
        %v2012 = vadd.f32 %v1773, %v1962
        %v2013 = vadd.f32 %v1774, %v1967
        %v2014 = vadd.f32 %v1775, %v1972
        %v2015 = vadd.f32 %v1776, %v1977
        %v2016 = vadd.f32 %v1777, %v1982
        %v2017 = vadd.f32 %v1778, %v1987
        %v2018 = vadd.f32 %v1779, %v1992
        %v2019 = vadd.f32 %v1780, %v1997
        %v2020 = vadd.f32 %v1781, %v2002
        %s2021 = scalar_lea.vmem %s1, 896
        %v2022 = vld [vmem:[%s2021] sm:$0xff]
        %v2023 = vld [vmem:[%s2021 + $0x8] sm:$0xff]
        %v2024 = vld [vmem:[%s2021 + $0x10] sm:$0xff]
        %v2025 = vld [vmem:[%s2021 + $0x18] sm:$0xff]
        %v2026 = vld [vmem:[%s2021 + $0x20] sm:$0xff]
        %v2027 = vld [vmem:[%s2021 + $0x28] sm:$0xff]
        %v2028 = vld [vmem:[%s2021 + $0x30] sm:$0xff]
        %v2029 = vld [vmem:[%s2021 + $0x38] sm:$0xff]
        %v2030 = vld [vmem:[%s2021 + $0x40] sm:$0xff]
        %v2031 = vld [vmem:[%s2021 + $0x48] sm:$0xff]
        %v2032 = vld [vmem:[%s2021 + $0x50] sm:$0xff]
        %v2033 = vld [vmem:[%s2021 + $0x58] sm:$0xff]
        %v2034 = vld [vmem:[%s2021 + $0x60] sm:$0xff]
        %v2035 = vld [vmem:[%s2021 + $0x68] sm:$0xff]
        %v2036 = vld [vmem:[%s2021 + $0x70] sm:$0xff]
        %v2037 = vld [vmem:[%s2021 + $0x78] sm:$0xff]
        %2038 = vrot.lane.b32.xlu0 %v385, 121
        %v2039 = vpop.permute.xlu0 %2038
        %2040 = vrot.lane.b32.xlu0 %v386, 121
        %v2041 = vpop.permute.xlu0 %2040
        %2042 = vrot.lane.b32.xlu0 %v387, 121
        %v2043 = vpop.permute.xlu0 %2042
        %2044 = vrot.lane.b32.xlu0 %v388, 121
        %v2045 = vpop.permute.xlu0 %2044
        %vm2046 = vcmask 990208
        %v2047 = vsel %vm2046, %v2039, %v2041
        %v2048 = vsel %vm2046, %v2043, %v2045
        %v2052 = vsel %vm439, %v2022, 0
        %v2055 = vsel %vm439, %v2023, 0
        %v2058 = vsel %vm439, %v2024, 0
        %v2061 = vsel %vm439, %v2025, 0
        %v2064 = vsel %vm439, %v2026, 0
        %v2067 = vsel %vm439, %v2027, 0
        %v2070 = vsel %vm439, %v2028, 0
        %v2073 = vsel %vm439, %v2029, 0
        %v2076 = vsel %vm439, %v2030, 0
        %v2079 = vsel %vm439, %v2031, 0
        %v2082 = vsel %vm439, %v2032, 0
        %v2085 = vsel %vm439, %v2033, 0
        %v2088 = vsel %vm439, %v2034, 0
        %v2091 = vsel %vm439, %v2035, 0
        %v2094 = vsel %vm439, %v2036, 0
        %v2097 = vsel %vm439, %v2037, 0
        %2099 = vmatprep.subr.mxu0 0.0
        %2100 = vmatpush1.msra.mxu0 %v2047
        %2101 = vmatprep.subr.mxu0 0.0
        %2102 = vmatpush1.msra.mxu0 %v2048
        %2103 = vmatprep.subr.mxu0 0.0
        %2104 = vmatpush1.msra.mxu0 0.0
        %2105 = vmatprep.subr.mxu0 0.0
        %2106 = vmatpush1.msra.mxu0 0.0
        %2107 = vmatprep.subr.mxu0 0.0
        %2108 = vmatpush1.msra.mxu0 0.0
        %2109 = vmatprep.subr.mxu0 0.0
        %2110 = vmatpush1.msra.mxu0 0.0
        %2111 = vmatprep.subr.mxu0 0.0
        %2112 = vmatpush1.msra.mxu0 0.0
        %2113 = vmatprep.subr.mxu0 0.0
        %2114 = vmatpush1.msra.mxu0 0.0
        %2115 = vmatprep.subr.mxu0 0.0
        %2116 = vmatpush1.msra.mxu0 0.0
        %2117 = vmatprep.subr.mxu0 0.0
        %2118 = vmatpush1.msra.mxu0 0.0
        %2119 = vmatprep.subr.mxu0 0.0
        %2120 = vmatpush1.msra.mxu0 0.0
        %2121 = vmatprep.subr.mxu0 0.0
        %2122 = vmatpush1.msra.mxu0 0.0
        %2123 = vmatprep.subr.mxu0 0.0
        %2124 = vmatpush1.msra.mxu0 0.0
        %2125 = vmatprep.subr.mxu0 0.0
        %2126 = vmatpush1.msra.mxu0 0.0
        %2127 = vmatprep.subr.mxu0 0.0
        %2128 = vmatpush1.msra.mxu0 0.0
        %2129 = vmatprep.subr.mxu0 0.0
        %2130 = vmatpush1.msra.mxu0 0.0
        %2131 = vmatprep.subr.mxu0 0.0
        %2132 = vmatpush1.msra.mxu0 0.0
        %2133 = vmatprep.subr.mxu0 0.0
        %2134 = vmatpush1.msra.mxu0 0.0
        %2135 = vmatprep.subr.mxu0 0.0
        %2136 = vmatpush1.msra.mxu0 0.0
        %2137 = vmatprep.subr.mxu0 0.0
        %2138 = vmatpush1.msra.mxu0 0.0
        %2139 = vmatprep.subr.mxu0 0.0
        %2140 = vmatpush1.msra.mxu0 0.0
        %2141 = vmatprep.subr.mxu0 0.0
        %2142 = vmatpush1.msra.mxu0 0.0
        %2143 = vmatprep.subr.mxu0 0.0
        %2144 = vmatpush1.msra.mxu0 0.0
        %2145 = vmatprep.subr.mxu0 0.0
        %2146 = vmatpush1.msra.mxu0 0.0
        %2147 = vmatprep.subr.mxu0 0.0
        %2148 = vmatpush1.msra.mxu0 0.0
        %2149 = vmatprep.subr.mxu0 0.0
        %2150 = vmatpush1.msra.mxu0 0.0
        %2151 = vmatprep.subr.mxu0 0.0
        %2152 = vmatpush1.msra.mxu0 0.0
        %2153 = vmatprep.subr.mxu0 0.0
        %2154 = vmatpush1.msra.mxu0 0.0
        %2155 = vmatprep.subr.mxu0 0.0
        %2156 = vmatpush1.msra.mxu0 0.0
        %2157 = vmatprep.subr.mxu0 0.0
        %2158 = vmatpush1.msra.mxu0 0.0
        %2159 = vmatprep.subr.mxu0 0.0
        %2160 = vmatpush1.msra.mxu0 0.0
        %2161 = vmatprep.subr.mxu0 0.0
        %2162 = vmatpush1.msra.mxu0 0.0
        %2163 = vmatprep.mubr.f32.mxu0 0.0
        %2164 = vmatmul.mubr.f32.gmra.mrb[0].mxu0 %v2052
        %v2165 = vpop.f32.mrb[0].mxu0
        %v2166 = vadd.f32 0.0, %v2165
        %v2167 = vpop.f32.mrb[0].mxu0
        %2168 = vmatprep.mubr.f32.mxu0 0.0
        %2169 = vmatmul.mubr.f32.gmra.mrb[0].mxu0 %v2055
        %v2170 = vpop.f32.mrb[0].mxu0
        %v2171 = vadd.f32 0.0, %v2170
        %v2172 = vpop.f32.mrb[0].mxu0
        %2173 = vmatprep.mubr.f32.mxu0 0.0
        %2174 = vmatmul.mubr.f32.gmra.mrb[0].mxu0 %v2058
        %v2175 = vpop.f32.mrb[0].mxu0
        %v2176 = vadd.f32 0.0, %v2175
        %v2177 = vpop.f32.mrb[0].mxu0
        %2178 = vmatprep.mubr.f32.mxu0 0.0
        %2179 = vmatmul.mubr.f32.gmra.mrb[0].mxu0 %v2061
        %v2180 = vpop.f32.mrb[0].mxu0
        %v2181 = vadd.f32 0.0, %v2180
        %v2182 = vpop.f32.mrb[0].mxu0
        %2183 = vmatprep.mubr.f32.mxu0 0.0
        %2184 = vmatmul.mubr.f32.gmra.mrb[0].mxu0 %v2064
        %v2185 = vpop.f32.mrb[0].mxu0
        %v2186 = vadd.f32 0.0, %v2185
        %v2187 = vpop.f32.mrb[0].mxu0
        %2188 = vmatprep.mubr.f32.mxu0 0.0
        %2189 = vmatmul.mubr.f32.gmra.mrb[0].mxu0 %v2067
        %v2190 = vpop.f32.mrb[0].mxu0
        %v2191 = vadd.f32 0.0, %v2190
        %v2192 = vpop.f32.mrb[0].mxu0
        %2193 = vmatprep.mubr.f32.mxu0 0.0
        %2194 = vmatmul.mubr.f32.gmra.mrb[0].mxu0 %v2070
        %v2195 = vpop.f32.mrb[0].mxu0
        %v2196 = vadd.f32 0.0, %v2195
        %v2197 = vpop.f32.mrb[0].mxu0
        %2198 = vmatprep.mubr.f32.mxu0 0.0
        %2199 = vmatmul.mubr.f32.gmra.mrb[0].mxu0 %v2073
        %v2200 = vpop.f32.mrb[0].mxu0
        %v2201 = vadd.f32 0.0, %v2200
        %v2202 = vpop.f32.mrb[0].mxu0
        %2203 = vmatprep.mubr.f32.mxu0 0.0
        %2204 = vmatmul.mubr.f32.gmra.mrb[0].mxu0 %v2076
        %v2205 = vpop.f32.mrb[0].mxu0
        %v2206 = vadd.f32 0.0, %v2205
        %v2207 = vpop.f32.mrb[0].mxu0
        %2208 = vmatprep.mubr.f32.mxu0 0.0
        %2209 = vmatmul.mubr.f32.gmra.mrb[0].mxu0 %v2079
        %v2210 = vpop.f32.mrb[0].mxu0
        %v2211 = vadd.f32 0.0, %v2210
        %v2212 = vpop.f32.mrb[0].mxu0
        %2213 = vmatprep.mubr.f32.mxu0 0.0
        %2214 = vmatmul.mubr.f32.gmra.mrb[0].mxu0 %v2082
        %v2215 = vpop.f32.mrb[0].mxu0
        %v2216 = vadd.f32 0.0, %v2215
        %v2217 = vpop.f32.mrb[0].mxu0
        %2218 = vmatprep.mubr.f32.mxu0 0.0
        %2219 = vmatmul.mubr.f32.gmra.mrb[0].mxu0 %v2085
        %v2220 = vpop.f32.mrb[0].mxu0
        %v2221 = vadd.f32 0.0, %v2220
        %v2222 = vpop.f32.mrb[0].mxu0
        %2223 = vmatprep.mubr.f32.mxu0 0.0
        %2224 = vmatmul.mubr.f32.gmra.mrb[0].mxu0 %v2088
        %v2225 = vpop.f32.mrb[0].mxu0
        %v2226 = vadd.f32 0.0, %v2225
        %v2227 = vpop.f32.mrb[0].mxu0
        %2228 = vmatprep.mubr.f32.mxu0 0.0
        %2229 = vmatmul.mubr.f32.gmra.mrb[0].mxu0 %v2091
        %v2230 = vpop.f32.mrb[0].mxu0
        %v2231 = vadd.f32 0.0, %v2230
        %v2232 = vpop.f32.mrb[0].mxu0
        %2233 = vmatprep.mubr.f32.mxu0 0.0
        %2234 = vmatmul.mubr.f32.gmra.mrb[0].mxu0 %v2094
        %v2235 = vpop.f32.mrb[0].mxu0
        %v2236 = vadd.f32 0.0, %v2235
        %v2237 = vpop.f32.mrb[0].mxu0
        %2238 = vmatprep.mubr.f32.mxu0 0.0
        %2239 = vmatmul.mubr.f32.gmra.mrb[0].mxu0 %v2097
        %v2240 = vpop.f32.mrb[0].mxu0
        %v2241 = vadd.f32 0.0, %v2240
        %v2242 = vpop.f32.mrb[0].mxu0
        %2243 = vdwg.mxu0
        %v2244 = vadd.f32 %v2005, %v2166
        %v2245 = vadd.f32 %v2006, %v2171
        %v2246 = vadd.f32 %v2007, %v2176
        %v2247 = vadd.f32 %v2008, %v2181
        %v2248 = vadd.f32 %v2009, %v2186
        %v2249 = vadd.f32 %v2010, %v2191
        %v2250 = vadd.f32 %v2011, %v2196
        %v2251 = vadd.f32 %v2012, %v2201
        %v2252 = vadd.f32 %v2013, %v2206
        %v2253 = vadd.f32 %v2014, %v2211
        %v2254 = vadd.f32 %v2015, %v2216
        %v2255 = vadd.f32 %v2016, %v2221
        %v2256 = vadd.f32 %v2017, %v2226
        %v2257 = vadd.f32 %v2018, %v2231
        %v2258 = vadd.f32 %v2019, %v2236
        %v2259 = vadd.f32 %v2020, %v2241
        %s2260 = scalar_lea.vmem %s1, 1024
        %v2261 = vld [vmem:[%s2260] sm:$0xff]
        %v2262 = vld [vmem:[%s2260 + $0x8] sm:$0xff]
        %v2263 = vld [vmem:[%s2260 + $0x10] sm:$0xff]
        %v2264 = vld [vmem:[%s2260 + $0x18] sm:$0xff]
        %v2265 = vld [vmem:[%s2260 + $0x20] sm:$0xff]
        %v2266 = vld [vmem:[%s2260 + $0x28] sm:$0xff]
        %v2267 = vld [vmem:[%s2260 + $0x30] sm:$0xff]
        %v2268 = vld [vmem:[%s2260 + $0x38] sm:$0xff]
        %v2269 = vld [vmem:[%s2260 + $0x40] sm:$0xff]
        %v2270 = vld [vmem:[%s2260 + $0x48] sm:$0xff]
        %v2271 = vld [vmem:[%s2260 + $0x50] sm:$0xff]
        %v2272 = vld [vmem:[%s2260 + $0x58] sm:$0xff]
        %v2273 = vld [vmem:[%s2260 + $0x60] sm:$0xff]
        %v2274 = vld [vmem:[%s2260 + $0x68] sm:$0xff]
        %v2275 = vld [vmem:[%s2260 + $0x70] sm:$0xff]
        %v2276 = vld [vmem:[%s2260 + $0x78] sm:$0xff]
        %2277 = vrot.lane.b32.xlu0 %v385, 120
        %v2278 = vpop.permute.xlu0 %2277
        %2279 = vrot.lane.b32.xlu0 %v386, 120
        %v2280 = vpop.permute.xlu0 %2279
        %2281 = vrot.lane.b32.xlu0 %v387, 120
        %v2282 = vpop.permute.xlu0 %2281
        %2283 = vrot.lane.b32.xlu0 %v388, 120
        %v2284 = vpop.permute.xlu0 %2283
        %vm2285 = vcmask 982016
        %v2286 = vsel %vm2285, %v2278, %v2280
        %v2287 = vsel %vm2285, %v2282, %v2284
        %v2291 = vsel %vm439, %v2261, 0
        %v2294 = vsel %vm439, %v2262, 0
        %v2297 = vsel %vm439, %v2263, 0
        %v2300 = vsel %vm439, %v2264, 0
        %v2303 = vsel %vm439, %v2265, 0
        %v2306 = vsel %vm439, %v2266, 0
        %v2309 = vsel %vm439, %v2267, 0
        %v2312 = vsel %vm439, %v2268, 0
        %v2315 = vsel %vm439, %v2269, 0
        %v2318 = vsel %vm439, %v2270, 0
        %v2321 = vsel %vm439, %v2271, 0
        %v2324 = vsel %vm439, %v2272, 0
        %v2327 = vsel %vm439, %v2273, 0
        %v2330 = vsel %vm439, %v2274, 0
        %v2333 = vsel %vm439, %v2275, 0
        %v2336 = vsel %vm439, %v2276, 0
        %2338 = vmatprep.subr.mxu0 0.0
        %2339 = vmatpush1.msra.mxu0 %v2286
        %2340 = vmatprep.subr.mxu0 0.0
        %2341 = vmatpush1.msra.mxu0 %v2287
        %2342 = vmatprep.subr.mxu0 0.0
        %2343 = vmatpush1.msra.mxu0 0.0
        %2344 = vmatprep.subr.mxu0 0.0
        %2345 = vmatpush1.msra.mxu0 0.0
        %2346 = vmatprep.subr.mxu0 0.0
        %2347 = vmatpush1.msra.mxu0 0.0
        %2348 = vmatprep.subr.mxu0 0.0
        %2349 = vmatpush1.msra.mxu0 0.0
        %2350 = vmatprep.subr.mxu0 0.0
        %2351 = vmatpush1.msra.mxu0 0.0
        %2352 = vmatprep.subr.mxu0 0.0
        %2353 = vmatpush1.msra.mxu0 0.0
        %2354 = vmatprep.subr.mxu0 0.0
        %2355 = vmatpush1.msra.mxu0 0.0
        %2356 = vmatprep.subr.mxu0 0.0
        %2357 = vmatpush1.msra.mxu0 0.0
        %2358 = vmatprep.subr.mxu0 0.0
        %2359 = vmatpush1.msra.mxu0 0.0
        %2360 = vmatprep.subr.mxu0 0.0
        %2361 = vmatpush1.msra.mxu0 0.0
        %2362 = vmatprep.subr.mxu0 0.0
        %2363 = vmatpush1.msra.mxu0 0.0
        %2364 = vmatprep.subr.mxu0 0.0
        %2365 = vmatpush1.msra.mxu0 0.0
        %2366 = vmatprep.subr.mxu0 0.0
        %2367 = vmatpush1.msra.mxu0 0.0
        %2368 = vmatprep.subr.mxu0 0.0
        %2369 = vmatpush1.msra.mxu0 0.0
        %2370 = vmatprep.subr.mxu0 0.0
        %2371 = vmatpush1.msra.mxu0 0.0
        %2372 = vmatprep.subr.mxu0 0.0
        %2373 = vmatpush1.msra.mxu0 0.0
        %2374 = vmatprep.subr.mxu0 0.0
        %2375 = vmatpush1.msra.mxu0 0.0
        %2376 = vmatprep.subr.mxu0 0.0
        %2377 = vmatpush1.msra.mxu0 0.0
        %2378 = vmatprep.subr.mxu0 0.0
        %2379 = vmatpush1.msra.mxu0 0.0
        %2380 = vmatprep.subr.mxu0 0.0
        %2381 = vmatpush1.msra.mxu0 0.0
        %2382 = vmatprep.subr.mxu0 0.0
        %2383 = vmatpush1.msra.mxu0 0.0
        %2384 = vmatprep.subr.mxu0 0.0
        %2385 = vmatpush1.msra.mxu0 0.0
        %2386 = vmatprep.subr.mxu0 0.0
        %2387 = vmatpush1.msra.mxu0 0.0
        %2388 = vmatprep.subr.mxu0 0.0
        %2389 = vmatpush1.msra.mxu0 0.0
        %2390 = vmatprep.subr.mxu0 0.0
        %2391 = vmatpush1.msra.mxu0 0.0
        %2392 = vmatprep.subr.mxu0 0.0
        %2393 = vmatpush1.msra.mxu0 0.0
        %2394 = vmatprep.subr.mxu0 0.0
        %2395 = vmatpush1.msra.mxu0 0.0
        %2396 = vmatprep.subr.mxu0 0.0
        %2397 = vmatpush1.msra.mxu0 0.0
        %2398 = vmatprep.subr.mxu0 0.0
        %2399 = vmatpush1.msra.mxu0 0.0
        %2400 = vmatprep.subr.mxu0 0.0
        %2401 = vmatpush1.msra.mxu0 0.0
        %2402 = vmatprep.mubr.f32.mxu0 0.0
        %2403 = vmatmul.mubr.f32.gmra.mrb[0].mxu0 %v2291
        %v2404 = vpop.f32.mrb[0].mxu0
        %v2405 = vadd.f32 0.0, %v2404
        %v2406 = vpop.f32.mrb[0].mxu0
        %2407 = vmatprep.mubr.f32.mxu0 0.0
        %2408 = vmatmul.mubr.f32.gmra.mrb[0].mxu0 %v2294
        %v2409 = vpop.f32.mrb[0].mxu0
        %v2410 = vadd.f32 0.0, %v2409
        %v2411 = vpop.f32.mrb[0].mxu0
        %2412 = vmatprep.mubr.f32.mxu0 0.0
        %2413 = vmatmul.mubr.f32.gmra.mrb[0].mxu0 %v2297
        %v2414 = vpop.f32.mrb[0].mxu0
        %v2415 = vadd.f32 0.0, %v2414
        %v2416 = vpop.f32.mrb[0].mxu0
        %2417 = vmatprep.mubr.f32.mxu0 0.0
        %2418 = vmatmul.mubr.f32.gmra.mrb[0].mxu0 %v2300
        %v2419 = vpop.f32.mrb[0].mxu0
        %v2420 = vadd.f32 0.0, %v2419
        %v2421 = vpop.f32.mrb[0].mxu0
        %2422 = vmatprep.mubr.f32.mxu0 0.0
        %2423 = vmatmul.mubr.f32.gmra.mrb[0].mxu0 %v2303
        %v2424 = vpop.f32.mrb[0].mxu0
        %v2425 = vadd.f32 0.0, %v2424
        %v2426 = vpop.f32.mrb[0].mxu0
        %2427 = vmatprep.mubr.f32.mxu0 0.0
        %2428 = vmatmul.mubr.f32.gmra.mrb[0].mxu0 %v2306
        %v2429 = vpop.f32.mrb[0].mxu0
        %v2430 = vadd.f32 0.0, %v2429
        %v2431 = vpop.f32.mrb[0].mxu0
        %2432 = vmatprep.mubr.f32.mxu0 0.0
        %2433 = vmatmul.mubr.f32.gmra.mrb[0].mxu0 %v2309
        %v2434 = vpop.f32.mrb[0].mxu0
        %v2435 = vadd.f32 0.0, %v2434
        %v2436 = vpop.f32.mrb[0].mxu0
        %2437 = vmatprep.mubr.f32.mxu0 0.0
        %2438 = vmatmul.mubr.f32.gmra.mrb[0].mxu0 %v2312
        %v2439 = vpop.f32.mrb[0].mxu0
        %v2440 = vadd.f32 0.0, %v2439
        %v2441 = vpop.f32.mrb[0].mxu0
        %2442 = vmatprep.mubr.f32.mxu0 0.0
        %2443 = vmatmul.mubr.f32.gmra.mrb[0].mxu0 %v2315
        %v2444 = vpop.f32.mrb[0].mxu0
        %v2445 = vadd.f32 0.0, %v2444
        %v2446 = vpop.f32.mrb[0].mxu0
        %2447 = vmatprep.mubr.f32.mxu0 0.0
        %2448 = vmatmul.mubr.f32.gmra.mrb[0].mxu0 %v2318
        %v2449 = vpop.f32.mrb[0].mxu0
        %v2450 = vadd.f32 0.0, %v2449
        %v2451 = vpop.f32.mrb[0].mxu0
        %2452 = vmatprep.mubr.f32.mxu0 0.0
        %2453 = vmatmul.mubr.f32.gmra.mrb[0].mxu0 %v2321
        %v2454 = vpop.f32.mrb[0].mxu0
        %v2455 = vadd.f32 0.0, %v2454
        %v2456 = vpop.f32.mrb[0].mxu0
        %2457 = vmatprep.mubr.f32.mxu0 0.0
        %2458 = vmatmul.mubr.f32.gmra.mrb[0].mxu0 %v2324
        %v2459 = vpop.f32.mrb[0].mxu0
        %v2460 = vadd.f32 0.0, %v2459
        %v2461 = vpop.f32.mrb[0].mxu0
        %2462 = vmatprep.mubr.f32.mxu0 0.0
        %2463 = vmatmul.mubr.f32.gmra.mrb[0].mxu0 %v2327
        %v2464 = vpop.f32.mrb[0].mxu0
        %v2465 = vadd.f32 0.0, %v2464
        %v2466 = vpop.f32.mrb[0].mxu0
        %2467 = vmatprep.mubr.f32.mxu0 0.0
        %2468 = vmatmul.mubr.f32.gmra.mrb[0].mxu0 %v2330
        %v2469 = vpop.f32.mrb[0].mxu0
        %v2470 = vadd.f32 0.0, %v2469
        %v2471 = vpop.f32.mrb[0].mxu0
        %2472 = vmatprep.mubr.f32.mxu0 0.0
        %2473 = vmatmul.mubr.f32.gmra.mrb[0].mxu0 %v2333
        %v2474 = vpop.f32.mrb[0].mxu0
        %v2475 = vadd.f32 0.0, %v2474
        %v2476 = vpop.f32.mrb[0].mxu0
        %2477 = vmatprep.mubr.f32.mxu0 0.0
        %2478 = vmatmul.mubr.f32.gmra.mrb[0].mxu0 %v2336
        %v2479 = vpop.f32.mrb[0].mxu0
        %v2480 = vadd.f32 0.0, %v2479
        %v2481 = vpop.f32.mrb[0].mxu0
        %2482 = vdwg.mxu0
        %v2483 = vadd.f32 %v2244, %v2405
        %v2484 = vadd.f32 %v2245, %v2410
        %v2485 = vadd.f32 %v2246, %v2415
        %v2486 = vadd.f32 %v2247, %v2420
        %v2487 = vadd.f32 %v2248, %v2425
        %v2488 = vadd.f32 %v2249, %v2430
        %v2489 = vadd.f32 %v2250, %v2435
        %v2490 = vadd.f32 %v2251, %v2440
        %v2491 = vadd.f32 %v2252, %v2445
        %v2492 = vadd.f32 %v2253, %v2450
        %v2493 = vadd.f32 %v2254, %v2455
        %v2494 = vadd.f32 %v2255, %v2460
        %v2495 = vadd.f32 %v2256, %v2465
        %v2496 = vadd.f32 %v2257, %v2470
        %v2497 = vadd.f32 %v2258, %v2475
        %v2498 = vadd.f32 %v2259, %v2480
        %s2499 = scalar_lea.vmem %s1, 1152
        %v2500 = vld [vmem:[%s2499] sm:$0xff]
        %v2501 = vld [vmem:[%s2499 + $0x8] sm:$0xff]
        %v2502 = vld [vmem:[%s2499 + $0x10] sm:$0xff]
        %v2503 = vld [vmem:[%s2499 + $0x18] sm:$0xff]
        %v2504 = vld [vmem:[%s2499 + $0x20] sm:$0xff]
        %v2505 = vld [vmem:[%s2499 + $0x28] sm:$0xff]
        %v2506 = vld [vmem:[%s2499 + $0x30] sm:$0xff]
        %v2507 = vld [vmem:[%s2499 + $0x38] sm:$0xff]
        %v2508 = vld [vmem:[%s2499 + $0x40] sm:$0xff]
        %v2509 = vld [vmem:[%s2499 + $0x48] sm:$0xff]
        %v2510 = vld [vmem:[%s2499 + $0x50] sm:$0xff]
        %v2511 = vld [vmem:[%s2499 + $0x58] sm:$0xff]
        %v2512 = vld [vmem:[%s2499 + $0x60] sm:$0xff]
        %v2513 = vld [vmem:[%s2499 + $0x68] sm:$0xff]
        %v2514 = vld [vmem:[%s2499 + $0x70] sm:$0xff]
        %v2515 = vld [vmem:[%s2499 + $0x78] sm:$0xff]
        %2516 = vrot.lane.b32.xlu0 %v385, 119
        %v2517 = vpop.permute.xlu0 %2516
        %2518 = vrot.lane.b32.xlu0 %v386, 119
        %v2519 = vpop.permute.xlu0 %2518
        %2520 = vrot.lane.b32.xlu0 %v387, 119
        %v2521 = vpop.permute.xlu0 %2520
        %2522 = vrot.lane.b32.xlu0 %v388, 119
        %v2523 = vpop.permute.xlu0 %2522
        %vm2524 = vcmask 973824
        %v2525 = vsel %vm2524, %v2517, %v2519
        %v2526 = vsel %vm2524, %v2521, %v2523
        %v2530 = vsel %vm439, %v2500, 0
        %v2533 = vsel %vm439, %v2501, 0
        %v2536 = vsel %vm439, %v2502, 0
        %v2539 = vsel %vm439, %v2503, 0
        %v2542 = vsel %vm439, %v2504, 0
        %v2545 = vsel %vm439, %v2505, 0
        %v2548 = vsel %vm439, %v2506, 0
        %v2551 = vsel %vm439, %v2507, 0
        %v2554 = vsel %vm439, %v2508, 0
        %v2557 = vsel %vm439, %v2509, 0
        %v2560 = vsel %vm439, %v2510, 0
        %v2563 = vsel %vm439, %v2511, 0
        %v2566 = vsel %vm439, %v2512, 0
        %v2569 = vsel %vm439, %v2513, 0
        %v2572 = vsel %vm439, %v2514, 0
        %v2575 = vsel %vm439, %v2515, 0
        %2577 = vmatprep.subr.mxu0 0.0
        %2578 = vmatpush1.msra.mxu0 %v2525
        %2579 = vmatprep.subr.mxu0 0.0
        %2580 = vmatpush1.msra.mxu0 %v2526
        %2581 = vmatprep.subr.mxu0 0.0
        %2582 = vmatpush1.msra.mxu0 0.0
        %2583 = vmatprep.subr.mxu0 0.0
        %2584 = vmatpush1.msra.mxu0 0.0
        %2585 = vmatprep.subr.mxu0 0.0
        %2586 = vmatpush1.msra.mxu0 0.0
        %2587 = vmatprep.subr.mxu0 0.0
        %2588 = vmatpush1.msra.mxu0 0.0
        %2589 = vmatprep.subr.mxu0 0.0
        %2590 = vmatpush1.msra.mxu0 0.0
        %2591 = vmatprep.subr.mxu0 0.0
        %2592 = vmatpush1.msra.mxu0 0.0
        %2593 = vmatprep.subr.mxu0 0.0
        %2594 = vmatpush1.msra.mxu0 0.0
        %2595 = vmatprep.subr.mxu0 0.0
        %2596 = vmatpush1.msra.mxu0 0.0
        %2597 = vmatprep.subr.mxu0 0.0
        %2598 = vmatpush1.msra.mxu0 0.0
        %2599 = vmatprep.subr.mxu0 0.0
        %2600 = vmatpush1.msra.mxu0 0.0
        %2601 = vmatprep.subr.mxu0 0.0
        %2602 = vmatpush1.msra.mxu0 0.0
        %2603 = vmatprep.subr.mxu0 0.0
        %2604 = vmatpush1.msra.mxu0 0.0
        %2605 = vmatprep.subr.mxu0 0.0
        %2606 = vmatpush1.msra.mxu0 0.0
        %2607 = vmatprep.subr.mxu0 0.0
        %2608 = vmatpush1.msra.mxu0 0.0
        %2609 = vmatprep.subr.mxu0 0.0
        %2610 = vmatpush1.msra.mxu0 0.0
        %2611 = vmatprep.subr.mxu0 0.0
        %2612 = vmatpush1.msra.mxu0 0.0
        %2613 = vmatprep.subr.mxu0 0.0
        %2614 = vmatpush1.msra.mxu0 0.0
        %2615 = vmatprep.subr.mxu0 0.0
        %2616 = vmatpush1.msra.mxu0 0.0
        %2617 = vmatprep.subr.mxu0 0.0
        %2618 = vmatpush1.msra.mxu0 0.0
        %2619 = vmatprep.subr.mxu0 0.0
        %2620 = vmatpush1.msra.mxu0 0.0
        %2621 = vmatprep.subr.mxu0 0.0
        %2622 = vmatpush1.msra.mxu0 0.0
        %2623 = vmatprep.subr.mxu0 0.0
        %2624 = vmatpush1.msra.mxu0 0.0
        %2625 = vmatprep.subr.mxu0 0.0
        %2626 = vmatpush1.msra.mxu0 0.0
        %2627 = vmatprep.subr.mxu0 0.0
        %2628 = vmatpush1.msra.mxu0 0.0
        %2629 = vmatprep.subr.mxu0 0.0
        %2630 = vmatpush1.msra.mxu0 0.0
        %2631 = vmatprep.subr.mxu0 0.0
        %2632 = vmatpush1.msra.mxu0 0.0
        %2633 = vmatprep.subr.mxu0 0.0
        %2634 = vmatpush1.msra.mxu0 0.0
        %2635 = vmatprep.subr.mxu0 0.0
        %2636 = vmatpush1.msra.mxu0 0.0
        %2637 = vmatprep.subr.mxu0 0.0
        %2638 = vmatpush1.msra.mxu0 0.0
        %2639 = vmatprep.subr.mxu0 0.0
        %2640 = vmatpush1.msra.mxu0 0.0
        %2641 = vmatprep.mubr.f32.mxu0 0.0
        %2642 = vmatmul.mubr.f32.gmra.mrb[0].mxu0 %v2530
        %v2643 = vpop.f32.mrb[0].mxu0
        %v2644 = vadd.f32 0.0, %v2643
        %v2645 = vpop.f32.mrb[0].mxu0
        %2646 = vmatprep.mubr.f32.mxu0 0.0
        %2647 = vmatmul.mubr.f32.gmra.mrb[0].mxu0 %v2533
        %v2648 = vpop.f32.mrb[0].mxu0
        %v2649 = vadd.f32 0.0, %v2648
        %v2650 = vpop.f32.mrb[0].mxu0
        %2651 = vmatprep.mubr.f32.mxu0 0.0
        %2652 = vmatmul.mubr.f32.gmra.mrb[0].mxu0 %v2536
        %v2653 = vpop.f32.mrb[0].mxu0
        %v2654 = vadd.f32 0.0, %v2653
        %v2655 = vpop.f32.mrb[0].mxu0
        %2656 = vmatprep.mubr.f32.mxu0 0.0
        %2657 = vmatmul.mubr.f32.gmra.mrb[0].mxu0 %v2539
        %v2658 = vpop.f32.mrb[0].mxu0
        %v2659 = vadd.f32 0.0, %v2658
        %v2660 = vpop.f32.mrb[0].mxu0
        %2661 = vmatprep.mubr.f32.mxu0 0.0
        %2662 = vmatmul.mubr.f32.gmra.mrb[0].mxu0 %v2542
        %v2663 = vpop.f32.mrb[0].mxu0
        %v2664 = vadd.f32 0.0, %v2663
        %v2665 = vpop.f32.mrb[0].mxu0
        %2666 = vmatprep.mubr.f32.mxu0 0.0
        %2667 = vmatmul.mubr.f32.gmra.mrb[0].mxu0 %v2545
        %v2668 = vpop.f32.mrb[0].mxu0
        %v2669 = vadd.f32 0.0, %v2668
        %v2670 = vpop.f32.mrb[0].mxu0
        %2671 = vmatprep.mubr.f32.mxu0 0.0
        %2672 = vmatmul.mubr.f32.gmra.mrb[0].mxu0 %v2548
        %v2673 = vpop.f32.mrb[0].mxu0
        %v2674 = vadd.f32 0.0, %v2673
        %v2675 = vpop.f32.mrb[0].mxu0
        %2676 = vmatprep.mubr.f32.mxu0 0.0
        %2677 = vmatmul.mubr.f32.gmra.mrb[0].mxu0 %v2551
        %v2678 = vpop.f32.mrb[0].mxu0
        %v2679 = vadd.f32 0.0, %v2678
        %v2680 = vpop.f32.mrb[0].mxu0
        %2681 = vmatprep.mubr.f32.mxu0 0.0
        %2682 = vmatmul.mubr.f32.gmra.mrb[0].mxu0 %v2554
        %v2683 = vpop.f32.mrb[0].mxu0
        %v2684 = vadd.f32 0.0, %v2683
        %v2685 = vpop.f32.mrb[0].mxu0
        %2686 = vmatprep.mubr.f32.mxu0 0.0
        %2687 = vmatmul.mubr.f32.gmra.mrb[0].mxu0 %v2557
        %v2688 = vpop.f32.mrb[0].mxu0
        %v2689 = vadd.f32 0.0, %v2688
        %v2690 = vpop.f32.mrb[0].mxu0
        %2691 = vmatprep.mubr.f32.mxu0 0.0
        %2692 = vmatmul.mubr.f32.gmra.mrb[0].mxu0 %v2560
        %v2693 = vpop.f32.mrb[0].mxu0
        %v2694 = vadd.f32 0.0, %v2693
        %v2695 = vpop.f32.mrb[0].mxu0
        %2696 = vmatprep.mubr.f32.mxu0 0.0
        %2697 = vmatmul.mubr.f32.gmra.mrb[0].mxu0 %v2563
        %v2698 = vpop.f32.mrb[0].mxu0
        %v2699 = vadd.f32 0.0, %v2698
        %v2700 = vpop.f32.mrb[0].mxu0
        %2701 = vmatprep.mubr.f32.mxu0 0.0
        %2702 = vmatmul.mubr.f32.gmra.mrb[0].mxu0 %v2566
        %v2703 = vpop.f32.mrb[0].mxu0
        %v2704 = vadd.f32 0.0, %v2703
        %v2705 = vpop.f32.mrb[0].mxu0
        %2706 = vmatprep.mubr.f32.mxu0 0.0
        %2707 = vmatmul.mubr.f32.gmra.mrb[0].mxu0 %v2569
        %v2708 = vpop.f32.mrb[0].mxu0
        %v2709 = vadd.f32 0.0, %v2708
        %v2710 = vpop.f32.mrb[0].mxu0
        %2711 = vmatprep.mubr.f32.mxu0 0.0
        %2712 = vmatmul.mubr.f32.gmra.mrb[0].mxu0 %v2572
        %v2713 = vpop.f32.mrb[0].mxu0
        %v2714 = vadd.f32 0.0, %v2713
        %v2715 = vpop.f32.mrb[0].mxu0
        %2716 = vmatprep.mubr.f32.mxu0 0.0
        %2717 = vmatmul.mubr.f32.gmra.mrb[0].mxu0 %v2575
        %v2718 = vpop.f32.mrb[0].mxu0
        %v2719 = vadd.f32 0.0, %v2718
        %v2720 = vpop.f32.mrb[0].mxu0
        %2721 = vdwg.mxu0
        %v2722 = vadd.f32 %v2483, %v2644
        %v2723 = vadd.f32 %v2484, %v2649
        %v2724 = vadd.f32 %v2485, %v2654
        %v2725 = vadd.f32 %v2486, %v2659
        %v2726 = vadd.f32 %v2487, %v2664
        %v2727 = vadd.f32 %v2488, %v2669
        %v2728 = vadd.f32 %v2489, %v2674
        %v2729 = vadd.f32 %v2490, %v2679
        %v2730 = vadd.f32 %v2491, %v2684
        %v2731 = vadd.f32 %v2492, %v2689
        %v2732 = vadd.f32 %v2493, %v2694
        %v2733 = vadd.f32 %v2494, %v2699
        %v2734 = vadd.f32 %v2495, %v2704
        %v2735 = vadd.f32 %v2496, %v2709
        %v2736 = vadd.f32 %v2497, %v2714
        %v2737 = vadd.f32 %v2498, %v2719
        %s2738 = scalar_lea.vmem %s1, 1280
        %v2739 = vld [vmem:[%s2738] sm:$0xff]
        %v2740 = vld [vmem:[%s2738 + $0x8] sm:$0xff]
        %v2741 = vld [vmem:[%s2738 + $0x10] sm:$0xff]
        %v2742 = vld [vmem:[%s2738 + $0x18] sm:$0xff]
        %v2743 = vld [vmem:[%s2738 + $0x20] sm:$0xff]
        %v2744 = vld [vmem:[%s2738 + $0x28] sm:$0xff]
        %v2745 = vld [vmem:[%s2738 + $0x30] sm:$0xff]
        %v2746 = vld [vmem:[%s2738 + $0x38] sm:$0xff]
        %v2747 = vld [vmem:[%s2738 + $0x40] sm:$0xff]
        %v2748 = vld [vmem:[%s2738 + $0x48] sm:$0xff]
        %v2749 = vld [vmem:[%s2738 + $0x50] sm:$0xff]
        %v2750 = vld [vmem:[%s2738 + $0x58] sm:$0xff]
        %v2751 = vld [vmem:[%s2738 + $0x60] sm:$0xff]
        %v2752 = vld [vmem:[%s2738 + $0x68] sm:$0xff]
        %v2753 = vld [vmem:[%s2738 + $0x70] sm:$0xff]
        %v2754 = vld [vmem:[%s2738 + $0x78] sm:$0xff]
        %2755 = vrot.lane.b32.xlu0 %v385, 118
        %v2756 = vpop.permute.xlu0 %2755
        %2757 = vrot.lane.b32.xlu0 %v386, 118
        %v2758 = vpop.permute.xlu0 %2757
        %2759 = vrot.lane.b32.xlu0 %v387, 118
        %v2760 = vpop.permute.xlu0 %2759
        %2761 = vrot.lane.b32.xlu0 %v388, 118
        %v2762 = vpop.permute.xlu0 %2761
        %vm2763 = vcmask 965632
        %v2764 = vsel %vm2763, %v2756, %v2758
        %v2765 = vsel %vm2763, %v2760, %v2762
        %v2769 = vsel %vm439, %v2739, 0
        %v2772 = vsel %vm439, %v2740, 0
        %v2775 = vsel %vm439, %v2741, 0
        %v2778 = vsel %vm439, %v2742, 0
        %v2781 = vsel %vm439, %v2743, 0
        %v2784 = vsel %vm439, %v2744, 0
        %v2787 = vsel %vm439, %v2745, 0
        %v2790 = vsel %vm439, %v2746, 0
        %v2793 = vsel %vm439, %v2747, 0
        %v2796 = vsel %vm439, %v2748, 0
        %v2799 = vsel %vm439, %v2749, 0
        %v2802 = vsel %vm439, %v2750, 0
        %v2805 = vsel %vm439, %v2751, 0
        %v2808 = vsel %vm439, %v2752, 0
        %v2811 = vsel %vm439, %v2753, 0
        %v2814 = vsel %vm439, %v2754, 0
        %2816 = vmatprep.subr.mxu0 0.0
        %2817 = vmatpush1.msra.mxu0 %v2764
        %2818 = vmatprep.subr.mxu0 0.0
        %2819 = vmatpush1.msra.mxu0 %v2765
        %2820 = vmatprep.subr.mxu0 0.0
        %2821 = vmatpush1.msra.mxu0 0.0
        %2822 = vmatprep.subr.mxu0 0.0
        %2823 = vmatpush1.msra.mxu0 0.0
        %2824 = vmatprep.subr.mxu0 0.0
        %2825 = vmatpush1.msra.mxu0 0.0
        %2826 = vmatprep.subr.mxu0 0.0
        %2827 = vmatpush1.msra.mxu0 0.0
        %2828 = vmatprep.subr.mxu0 0.0
        %2829 = vmatpush1.msra.mxu0 0.0
        %2830 = vmatprep.subr.mxu0 0.0
        %2831 = vmatpush1.msra.mxu0 0.0
        %2832 = vmatprep.subr.mxu0 0.0
        %2833 = vmatpush1.msra.mxu0 0.0
        %2834 = vmatprep.subr.mxu0 0.0
        %2835 = vmatpush1.msra.mxu0 0.0
        %2836 = vmatprep.subr.mxu0 0.0
        %2837 = vmatpush1.msra.mxu0 0.0
        %2838 = vmatprep.subr.mxu0 0.0
        %2839 = vmatpush1.msra.mxu0 0.0
        %2840 = vmatprep.subr.mxu0 0.0
        %2841 = vmatpush1.msra.mxu0 0.0
        %2842 = vmatprep.subr.mxu0 0.0
        %2843 = vmatpush1.msra.mxu0 0.0
        %2844 = vmatprep.subr.mxu0 0.0
        %2845 = vmatpush1.msra.mxu0 0.0
        %2846 = vmatprep.subr.mxu0 0.0
        %2847 = vmatpush1.msra.mxu0 0.0
        %2848 = vmatprep.subr.mxu0 0.0
        %2849 = vmatpush1.msra.mxu0 0.0
        %2850 = vmatprep.subr.mxu0 0.0
        %2851 = vmatpush1.msra.mxu0 0.0
        %2852 = vmatprep.subr.mxu0 0.0
        %2853 = vmatpush1.msra.mxu0 0.0
        %2854 = vmatprep.subr.mxu0 0.0
        %2855 = vmatpush1.msra.mxu0 0.0
        %2856 = vmatprep.subr.mxu0 0.0
        %2857 = vmatpush1.msra.mxu0 0.0
        %2858 = vmatprep.subr.mxu0 0.0
        %2859 = vmatpush1.msra.mxu0 0.0
        %2860 = vmatprep.subr.mxu0 0.0
        %2861 = vmatpush1.msra.mxu0 0.0
        %2862 = vmatprep.subr.mxu0 0.0
        %2863 = vmatpush1.msra.mxu0 0.0
        %2864 = vmatprep.subr.mxu0 0.0
        %2865 = vmatpush1.msra.mxu0 0.0
        %2866 = vmatprep.subr.mxu0 0.0
        %2867 = vmatpush1.msra.mxu0 0.0
        %2868 = vmatprep.subr.mxu0 0.0
        %2869 = vmatpush1.msra.mxu0 0.0
        %2870 = vmatprep.subr.mxu0 0.0
        %2871 = vmatpush1.msra.mxu0 0.0
        %2872 = vmatprep.subr.mxu0 0.0
        %2873 = vmatpush1.msra.mxu0 0.0
        %2874 = vmatprep.subr.mxu0 0.0
        %2875 = vmatpush1.msra.mxu0 0.0
        %2876 = vmatprep.subr.mxu0 0.0
        %2877 = vmatpush1.msra.mxu0 0.0
        %2878 = vmatprep.subr.mxu0 0.0
        %2879 = vmatpush1.msra.mxu0 0.0
        %2880 = vmatprep.mubr.f32.mxu0 0.0
        %2881 = vmatmul.mubr.f32.gmra.mrb[0].mxu0 %v2769
        %v2882 = vpop.f32.mrb[0].mxu0
        %v2883 = vadd.f32 0.0, %v2882
        %v2884 = vpop.f32.mrb[0].mxu0
        %2885 = vmatprep.mubr.f32.mxu0 0.0
        %2886 = vmatmul.mubr.f32.gmra.mrb[0].mxu0 %v2772
        %v2887 = vpop.f32.mrb[0].mxu0
        %v2888 = vadd.f32 0.0, %v2887
        %v2889 = vpop.f32.mrb[0].mxu0
        %2890 = vmatprep.mubr.f32.mxu0 0.0
        %2891 = vmatmul.mubr.f32.gmra.mrb[0].mxu0 %v2775
        %v2892 = vpop.f32.mrb[0].mxu0
        %v2893 = vadd.f32 0.0, %v2892
        %v2894 = vpop.f32.mrb[0].mxu0
        %2895 = vmatprep.mubr.f32.mxu0 0.0
        %2896 = vmatmul.mubr.f32.gmra.mrb[0].mxu0 %v2778
        %v2897 = vpop.f32.mrb[0].mxu0
        %v2898 = vadd.f32 0.0, %v2897
        %v2899 = vpop.f32.mrb[0].mxu0
        %2900 = vmatprep.mubr.f32.mxu0 0.0
        %2901 = vmatmul.mubr.f32.gmra.mrb[0].mxu0 %v2781
        %v2902 = vpop.f32.mrb[0].mxu0
        %v2903 = vadd.f32 0.0, %v2902
        %v2904 = vpop.f32.mrb[0].mxu0
        %2905 = vmatprep.mubr.f32.mxu0 0.0
        %2906 = vmatmul.mubr.f32.gmra.mrb[0].mxu0 %v2784
        %v2907 = vpop.f32.mrb[0].mxu0
        %v2908 = vadd.f32 0.0, %v2907
        %v2909 = vpop.f32.mrb[0].mxu0
        %2910 = vmatprep.mubr.f32.mxu0 0.0
        %2911 = vmatmul.mubr.f32.gmra.mrb[0].mxu0 %v2787
        %v2912 = vpop.f32.mrb[0].mxu0
        %v2913 = vadd.f32 0.0, %v2912
        %v2914 = vpop.f32.mrb[0].mxu0
        %2915 = vmatprep.mubr.f32.mxu0 0.0
        %2916 = vmatmul.mubr.f32.gmra.mrb[0].mxu0 %v2790
        %v2917 = vpop.f32.mrb[0].mxu0
        %v2918 = vadd.f32 0.0, %v2917
        %v2919 = vpop.f32.mrb[0].mxu0
        %2920 = vmatprep.mubr.f32.mxu0 0.0
        %2921 = vmatmul.mubr.f32.gmra.mrb[0].mxu0 %v2793
        %v2922 = vpop.f32.mrb[0].mxu0
        %v2923 = vadd.f32 0.0, %v2922
        %v2924 = vpop.f32.mrb[0].mxu0
        %2925 = vmatprep.mubr.f32.mxu0 0.0
        %2926 = vmatmul.mubr.f32.gmra.mrb[0].mxu0 %v2796
        %v2927 = vpop.f32.mrb[0].mxu0
        %v2928 = vadd.f32 0.0, %v2927
        %v2929 = vpop.f32.mrb[0].mxu0
        %2930 = vmatprep.mubr.f32.mxu0 0.0
        %2931 = vmatmul.mubr.f32.gmra.mrb[0].mxu0 %v2799
        %v2932 = vpop.f32.mrb[0].mxu0
        %v2933 = vadd.f32 0.0, %v2932
        %v2934 = vpop.f32.mrb[0].mxu0
        %2935 = vmatprep.mubr.f32.mxu0 0.0
        %2936 = vmatmul.mubr.f32.gmra.mrb[0].mxu0 %v2802
        %v2937 = vpop.f32.mrb[0].mxu0
        %v2938 = vadd.f32 0.0, %v2937
        %v2939 = vpop.f32.mrb[0].mxu0
        %2940 = vmatprep.mubr.f32.mxu0 0.0
        %2941 = vmatmul.mubr.f32.gmra.mrb[0].mxu0 %v2805
        %v2942 = vpop.f32.mrb[0].mxu0
        %v2943 = vadd.f32 0.0, %v2942
        %v2944 = vpop.f32.mrb[0].mxu0
        %2945 = vmatprep.mubr.f32.mxu0 0.0
        %2946 = vmatmul.mubr.f32.gmra.mrb[0].mxu0 %v2808
        %v2947 = vpop.f32.mrb[0].mxu0
        %v2948 = vadd.f32 0.0, %v2947
        %v2949 = vpop.f32.mrb[0].mxu0
        %2950 = vmatprep.mubr.f32.mxu0 0.0
        %2951 = vmatmul.mubr.f32.gmra.mrb[0].mxu0 %v2811
        %v2952 = vpop.f32.mrb[0].mxu0
        %v2953 = vadd.f32 0.0, %v2952
        %v2954 = vpop.f32.mrb[0].mxu0
        %2955 = vmatprep.mubr.f32.mxu0 0.0
        %2956 = vmatmul.mubr.f32.gmra.mrb[0].mxu0 %v2814
        %v2957 = vpop.f32.mrb[0].mxu0
        %v2958 = vadd.f32 0.0, %v2957
        %v2959 = vpop.f32.mrb[0].mxu0
        %2960 = vdwg.mxu0
        %v2961 = vadd.f32 %v2722, %v2883
        %v2962 = vadd.f32 %v2723, %v2888
        %v2963 = vadd.f32 %v2724, %v2893
        %v2964 = vadd.f32 %v2725, %v2898
        %v2965 = vadd.f32 %v2726, %v2903
        %v2966 = vadd.f32 %v2727, %v2908
        %v2967 = vadd.f32 %v2728, %v2913
        %v2968 = vadd.f32 %v2729, %v2918
        %v2969 = vadd.f32 %v2730, %v2923
        %v2970 = vadd.f32 %v2731, %v2928
        %v2971 = vadd.f32 %v2732, %v2933
        %v2972 = vadd.f32 %v2733, %v2938
        %v2973 = vadd.f32 %v2734, %v2943
        %v2974 = vadd.f32 %v2735, %v2948
        %v2975 = vadd.f32 %v2736, %v2953
        %v2976 = vadd.f32 %v2737, %v2958
        %s2977 = scalar_lea.vmem %s1, 1408
        %v2978 = vld [vmem:[%s2977] sm:$0xff]
        %v2979 = vld [vmem:[%s2977 + $0x8] sm:$0xff]
        %v2980 = vld [vmem:[%s2977 + $0x10] sm:$0xff]
        %v2981 = vld [vmem:[%s2977 + $0x18] sm:$0xff]
        %v2982 = vld [vmem:[%s2977 + $0x20] sm:$0xff]
        %v2983 = vld [vmem:[%s2977 + $0x28] sm:$0xff]
        %v2984 = vld [vmem:[%s2977 + $0x30] sm:$0xff]
        %v2985 = vld [vmem:[%s2977 + $0x38] sm:$0xff]
        %v2986 = vld [vmem:[%s2977 + $0x40] sm:$0xff]
        %v2987 = vld [vmem:[%s2977 + $0x48] sm:$0xff]
        %v2988 = vld [vmem:[%s2977 + $0x50] sm:$0xff]
        %v2989 = vld [vmem:[%s2977 + $0x58] sm:$0xff]
        %v2990 = vld [vmem:[%s2977 + $0x60] sm:$0xff]
        %v2991 = vld [vmem:[%s2977 + $0x68] sm:$0xff]
        %v2992 = vld [vmem:[%s2977 + $0x70] sm:$0xff]
        %v2993 = vld [vmem:[%s2977 + $0x78] sm:$0xff]
        %2994 = vrot.lane.b32.xlu0 %v385, 117
        %v2995 = vpop.permute.xlu0 %2994
        %2996 = vrot.lane.b32.xlu0 %v386, 117
        %v2997 = vpop.permute.xlu0 %2996
        %2998 = vrot.lane.b32.xlu0 %v387, 117
        %v2999 = vpop.permute.xlu0 %2998
        %3000 = vrot.lane.b32.xlu0 %v388, 117
        %v3001 = vpop.permute.xlu0 %3000
        %vm3002 = vcmask 957440
        %v3003 = vsel %vm3002, %v2995, %v2997
        %v3004 = vsel %vm3002, %v2999, %v3001
        %v3008 = vsel %vm439, %v2978, 0
        %v3011 = vsel %vm439, %v2979, 0
        %v3014 = vsel %vm439, %v2980, 0
        %v3017 = vsel %vm439, %v2981, 0
        %v3020 = vsel %vm439, %v2982, 0
        %v3023 = vsel %vm439, %v2983, 0
        %v3026 = vsel %vm439, %v2984, 0
        %v3029 = vsel %vm439, %v2985, 0
        %v3032 = vsel %vm439, %v2986, 0
        %v3035 = vsel %vm439, %v2987, 0
        %v3038 = vsel %vm439, %v2988, 0
        %v3041 = vsel %vm439, %v2989, 0
        %v3044 = vsel %vm439, %v2990, 0
        %v3047 = vsel %vm439, %v2991, 0
        %v3050 = vsel %vm439, %v2992, 0
        %v3053 = vsel %vm439, %v2993, 0
        %3055 = vmatprep.subr.mxu0 0.0
        %3056 = vmatpush1.msra.mxu0 %v3003
        %3057 = vmatprep.subr.mxu0 0.0
        %3058 = vmatpush1.msra.mxu0 %v3004
        %3059 = vmatprep.subr.mxu0 0.0
        %3060 = vmatpush1.msra.mxu0 0.0
        %3061 = vmatprep.subr.mxu0 0.0
        %3062 = vmatpush1.msra.mxu0 0.0
        %3063 = vmatprep.subr.mxu0 0.0
        %3064 = vmatpush1.msra.mxu0 0.0
        %3065 = vmatprep.subr.mxu0 0.0
        %3066 = vmatpush1.msra.mxu0 0.0
        %3067 = vmatprep.subr.mxu0 0.0
        %3068 = vmatpush1.msra.mxu0 0.0
        %3069 = vmatprep.subr.mxu0 0.0
        %3070 = vmatpush1.msra.mxu0 0.0
        %3071 = vmatprep.subr.mxu0 0.0
        %3072 = vmatpush1.msra.mxu0 0.0
        %3073 = vmatprep.subr.mxu0 0.0
        %3074 = vmatpush1.msra.mxu0 0.0
        %3075 = vmatprep.subr.mxu0 0.0
        %3076 = vmatpush1.msra.mxu0 0.0
        %3077 = vmatprep.subr.mxu0 0.0
        %3078 = vmatpush1.msra.mxu0 0.0
        %3079 = vmatprep.subr.mxu0 0.0
        %3080 = vmatpush1.msra.mxu0 0.0
        %3081 = vmatprep.subr.mxu0 0.0
        %3082 = vmatpush1.msra.mxu0 0.0
        %3083 = vmatprep.subr.mxu0 0.0
        %3084 = vmatpush1.msra.mxu0 0.0
        %3085 = vmatprep.subr.mxu0 0.0
        %3086 = vmatpush1.msra.mxu0 0.0
        %3087 = vmatprep.subr.mxu0 0.0
        %3088 = vmatpush1.msra.mxu0 0.0
        %3089 = vmatprep.subr.mxu0 0.0
        %3090 = vmatpush1.msra.mxu0 0.0
        %3091 = vmatprep.subr.mxu0 0.0
        %3092 = vmatpush1.msra.mxu0 0.0
        %3093 = vmatprep.subr.mxu0 0.0
        %3094 = vmatpush1.msra.mxu0 0.0
        %3095 = vmatprep.subr.mxu0 0.0
        %3096 = vmatpush1.msra.mxu0 0.0
        %3097 = vmatprep.subr.mxu0 0.0
        %3098 = vmatpush1.msra.mxu0 0.0
        %3099 = vmatprep.subr.mxu0 0.0
        %3100 = vmatpush1.msra.mxu0 0.0
        %3101 = vmatprep.subr.mxu0 0.0
        %3102 = vmatpush1.msra.mxu0 0.0
        %3103 = vmatprep.subr.mxu0 0.0
        %3104 = vmatpush1.msra.mxu0 0.0
        %3105 = vmatprep.subr.mxu0 0.0
        %3106 = vmatpush1.msra.mxu0 0.0
        %3107 = vmatprep.subr.mxu0 0.0
        %3108 = vmatpush1.msra.mxu0 0.0
        %3109 = vmatprep.subr.mxu0 0.0
        %3110 = vmatpush1.msra.mxu0 0.0
        %3111 = vmatprep.subr.mxu0 0.0
        %3112 = vmatpush1.msra.mxu0 0.0
        %3113 = vmatprep.subr.mxu0 0.0
        %3114 = vmatpush1.msra.mxu0 0.0
        %3115 = vmatprep.subr.mxu0 0.0
        %3116 = vmatpush1.msra.mxu0 0.0
        %3117 = vmatprep.subr.mxu0 0.0
        %3118 = vmatpush1.msra.mxu0 0.0
        %3119 = vmatprep.mubr.f32.mxu0 0.0
        %3120 = vmatmul.mubr.f32.gmra.mrb[0].mxu0 %v3008
        %v3121 = vpop.f32.mrb[0].mxu0
        %v3122 = vadd.f32 0.0, %v3121
        %v3123 = vpop.f32.mrb[0].mxu0
        %3124 = vmatprep.mubr.f32.mxu0 0.0
        %3125 = vmatmul.mubr.f32.gmra.mrb[0].mxu0 %v3011
        %v3126 = vpop.f32.mrb[0].mxu0
        %v3127 = vadd.f32 0.0, %v3126
        %v3128 = vpop.f32.mrb[0].mxu0
        %3129 = vmatprep.mubr.f32.mxu0 0.0
        %3130 = vmatmul.mubr.f32.gmra.mrb[0].mxu0 %v3014
        %v3131 = vpop.f32.mrb[0].mxu0
        %v3132 = vadd.f32 0.0, %v3131
        %v3133 = vpop.f32.mrb[0].mxu0
        %3134 = vmatprep.mubr.f32.mxu0 0.0
        %3135 = vmatmul.mubr.f32.gmra.mrb[0].mxu0 %v3017
        %v3136 = vpop.f32.mrb[0].mxu0
        %v3137 = vadd.f32 0.0, %v3136
        %v3138 = vpop.f32.mrb[0].mxu0
        %3139 = vmatprep.mubr.f32.mxu0 0.0
        %3140 = vmatmul.mubr.f32.gmra.mrb[0].mxu0 %v3020
        %v3141 = vpop.f32.mrb[0].mxu0
        %v3142 = vadd.f32 0.0, %v3141
        %v3143 = vpop.f32.mrb[0].mxu0
        %3144 = vmatprep.mubr.f32.mxu0 0.0
        %3145 = vmatmul.mubr.f32.gmra.mrb[0].mxu0 %v3023
        %v3146 = vpop.f32.mrb[0].mxu0
        %v3147 = vadd.f32 0.0, %v3146
        %v3148 = vpop.f32.mrb[0].mxu0
        %3149 = vmatprep.mubr.f32.mxu0 0.0
        %3150 = vmatmul.mubr.f32.gmra.mrb[0].mxu0 %v3026
        %v3151 = vpop.f32.mrb[0].mxu0
        %v3152 = vadd.f32 0.0, %v3151
        %v3153 = vpop.f32.mrb[0].mxu0
        %3154 = vmatprep.mubr.f32.mxu0 0.0
        %3155 = vmatmul.mubr.f32.gmra.mrb[0].mxu0 %v3029
        %v3156 = vpop.f32.mrb[0].mxu0
        %v3157 = vadd.f32 0.0, %v3156
        %v3158 = vpop.f32.mrb[0].mxu0
        %3159 = vmatprep.mubr.f32.mxu0 0.0
        %3160 = vmatmul.mubr.f32.gmra.mrb[0].mxu0 %v3032
        %v3161 = vpop.f32.mrb[0].mxu0
        %v3162 = vadd.f32 0.0, %v3161
        %v3163 = vpop.f32.mrb[0].mxu0
        %3164 = vmatprep.mubr.f32.mxu0 0.0
        %3165 = vmatmul.mubr.f32.gmra.mrb[0].mxu0 %v3035
        %v3166 = vpop.f32.mrb[0].mxu0
        %v3167 = vadd.f32 0.0, %v3166
        %v3168 = vpop.f32.mrb[0].mxu0
        %3169 = vmatprep.mubr.f32.mxu0 0.0
        %3170 = vmatmul.mubr.f32.gmra.mrb[0].mxu0 %v3038
        %v3171 = vpop.f32.mrb[0].mxu0
        %v3172 = vadd.f32 0.0, %v3171
        %v3173 = vpop.f32.mrb[0].mxu0
        %3174 = vmatprep.mubr.f32.mxu0 0.0
        %3175 = vmatmul.mubr.f32.gmra.mrb[0].mxu0 %v3041
        %v3176 = vpop.f32.mrb[0].mxu0
        %v3177 = vadd.f32 0.0, %v3176
        %v3178 = vpop.f32.mrb[0].mxu0
        %3179 = vmatprep.mubr.f32.mxu0 0.0
        %3180 = vmatmul.mubr.f32.gmra.mrb[0].mxu0 %v3044
        %v3181 = vpop.f32.mrb[0].mxu0
        %v3182 = vadd.f32 0.0, %v3181
        %v3183 = vpop.f32.mrb[0].mxu0
        %3184 = vmatprep.mubr.f32.mxu0 0.0
        %3185 = vmatmul.mubr.f32.gmra.mrb[0].mxu0 %v3047
        %v3186 = vpop.f32.mrb[0].mxu0
        %v3187 = vadd.f32 0.0, %v3186
        %v3188 = vpop.f32.mrb[0].mxu0
        %3189 = vmatprep.mubr.f32.mxu0 0.0
        %3190 = vmatmul.mubr.f32.gmra.mrb[0].mxu0 %v3050
        %v3191 = vpop.f32.mrb[0].mxu0
        %v3192 = vadd.f32 0.0, %v3191
        %v3193 = vpop.f32.mrb[0].mxu0
        %3194 = vmatprep.mubr.f32.mxu0 0.0
        %3195 = vmatmul.mubr.f32.gmra.mrb[0].mxu0 %v3053
        %v3196 = vpop.f32.mrb[0].mxu0
        %v3197 = vadd.f32 0.0, %v3196
        %v3198 = vpop.f32.mrb[0].mxu0
        %3199 = vdwg.mxu0
        %v3200 = vadd.f32 %v2961, %v3122
        %v3201 = vadd.f32 %v2962, %v3127
        %v3202 = vadd.f32 %v2963, %v3132
        %v3203 = vadd.f32 %v2964, %v3137
        %v3204 = vadd.f32 %v2965, %v3142
        %v3205 = vadd.f32 %v2966, %v3147
        %v3206 = vadd.f32 %v2967, %v3152
        %v3207 = vadd.f32 %v2968, %v3157
        %v3208 = vadd.f32 %v2969, %v3162
        %v3209 = vadd.f32 %v2970, %v3167
        %v3210 = vadd.f32 %v2971, %v3172
        %v3211 = vadd.f32 %v2972, %v3177
        %v3212 = vadd.f32 %v2973, %v3182
        %v3213 = vadd.f32 %v2974, %v3187
        %v3214 = vadd.f32 %v2975, %v3192
        %v3215 = vadd.f32 %v2976, %v3197
        %s3216 = scalar_lea.vmem %s1, 1536
        %v3217 = vld [vmem:[%s3216] sm:$0xff]
        %v3218 = vld [vmem:[%s3216 + $0x8] sm:$0xff]
        %v3219 = vld [vmem:[%s3216 + $0x10] sm:$0xff]
        %v3220 = vld [vmem:[%s3216 + $0x18] sm:$0xff]
        %v3221 = vld [vmem:[%s3216 + $0x20] sm:$0xff]
        %v3222 = vld [vmem:[%s3216 + $0x28] sm:$0xff]
        %v3223 = vld [vmem:[%s3216 + $0x30] sm:$0xff]
        %v3224 = vld [vmem:[%s3216 + $0x38] sm:$0xff]
        %v3225 = vld [vmem:[%s3216 + $0x40] sm:$0xff]
        %v3226 = vld [vmem:[%s3216 + $0x48] sm:$0xff]
        %v3227 = vld [vmem:[%s3216 + $0x50] sm:$0xff]
        %v3228 = vld [vmem:[%s3216 + $0x58] sm:$0xff]
        %v3229 = vld [vmem:[%s3216 + $0x60] sm:$0xff]
        %v3230 = vld [vmem:[%s3216 + $0x68] sm:$0xff]
        %v3231 = vld [vmem:[%s3216 + $0x70] sm:$0xff]
        %v3232 = vld [vmem:[%s3216 + $0x78] sm:$0xff]
        %3233 = vrot.lane.b32.xlu0 %v385, 116
        %v3234 = vpop.permute.xlu0 %3233
        %3235 = vrot.lane.b32.xlu0 %v386, 116
        %v3236 = vpop.permute.xlu0 %3235
        %3237 = vrot.lane.b32.xlu0 %v387, 116
        %v3238 = vpop.permute.xlu0 %3237
        %3239 = vrot.lane.b32.xlu0 %v388, 116
        %v3240 = vpop.permute.xlu0 %3239
        %vm3241 = vcmask 949248
        %v3242 = vsel %vm3241, %v3234, %v3236
        %v3243 = vsel %vm3241, %v3238, %v3240
        %v3247 = vsel %vm439, %v3217, 0
        %v3250 = vsel %vm439, %v3218, 0
        %v3253 = vsel %vm439, %v3219, 0
        %v3256 = vsel %vm439, %v3220, 0
        %v3259 = vsel %vm439, %v3221, 0
        %v3262 = vsel %vm439, %v3222, 0
        %v3265 = vsel %vm439, %v3223, 0
        %v3268 = vsel %vm439, %v3224, 0
        %v3271 = vsel %vm439, %v3225, 0
        %v3274 = vsel %vm439, %v3226, 0
        %v3277 = vsel %vm439, %v3227, 0
        %v3280 = vsel %vm439, %v3228, 0
        %v3283 = vsel %vm439, %v3229, 0
        %v3286 = vsel %vm439, %v3230, 0
        %v3289 = vsel %vm439, %v3231, 0
        %v3292 = vsel %vm439, %v3232, 0
        %3294 = vmatprep.subr.mxu0 0.0
        %3295 = vmatpush1.msra.mxu0 %v3242
        %3296 = vmatprep.subr.mxu0 0.0
        %3297 = vmatpush1.msra.mxu0 %v3243
        %3298 = vmatprep.subr.mxu0 0.0
        %3299 = vmatpush1.msra.mxu0 0.0
        %3300 = vmatprep.subr.mxu0 0.0
        %3301 = vmatpush1.msra.mxu0 0.0
        %3302 = vmatprep.subr.mxu0 0.0
        %3303 = vmatpush1.msra.mxu0 0.0
        %3304 = vmatprep.subr.mxu0 0.0
        %3305 = vmatpush1.msra.mxu0 0.0
        %3306 = vmatprep.subr.mxu0 0.0
        %3307 = vmatpush1.msra.mxu0 0.0
        %3308 = vmatprep.subr.mxu0 0.0
        %3309 = vmatpush1.msra.mxu0 0.0
        %3310 = vmatprep.subr.mxu0 0.0
        %3311 = vmatpush1.msra.mxu0 0.0
        %3312 = vmatprep.subr.mxu0 0.0
        %3313 = vmatpush1.msra.mxu0 0.0
        %3314 = vmatprep.subr.mxu0 0.0
        %3315 = vmatpush1.msra.mxu0 0.0
        %3316 = vmatprep.subr.mxu0 0.0
        %3317 = vmatpush1.msra.mxu0 0.0
        %3318 = vmatprep.subr.mxu0 0.0
        %3319 = vmatpush1.msra.mxu0 0.0
        %3320 = vmatprep.subr.mxu0 0.0
        %3321 = vmatpush1.msra.mxu0 0.0
        %3322 = vmatprep.subr.mxu0 0.0
        %3323 = vmatpush1.msra.mxu0 0.0
        %3324 = vmatprep.subr.mxu0 0.0
        %3325 = vmatpush1.msra.mxu0 0.0
        %3326 = vmatprep.subr.mxu0 0.0
        %3327 = vmatpush1.msra.mxu0 0.0
        %3328 = vmatprep.subr.mxu0 0.0
        %3329 = vmatpush1.msra.mxu0 0.0
        %3330 = vmatprep.subr.mxu0 0.0
        %3331 = vmatpush1.msra.mxu0 0.0
        %3332 = vmatprep.subr.mxu0 0.0
        %3333 = vmatpush1.msra.mxu0 0.0
        %3334 = vmatprep.subr.mxu0 0.0
        %3335 = vmatpush1.msra.mxu0 0.0
        %3336 = vmatprep.subr.mxu0 0.0
        %3337 = vmatpush1.msra.mxu0 0.0
        %3338 = vmatprep.subr.mxu0 0.0
        %3339 = vmatpush1.msra.mxu0 0.0
        %3340 = vmatprep.subr.mxu0 0.0
        %3341 = vmatpush1.msra.mxu0 0.0
        %3342 = vmatprep.subr.mxu0 0.0
        %3343 = vmatpush1.msra.mxu0 0.0
        %3344 = vmatprep.subr.mxu0 0.0
        %3345 = vmatpush1.msra.mxu0 0.0
        %3346 = vmatprep.subr.mxu0 0.0
        %3347 = vmatpush1.msra.mxu0 0.0
        %3348 = vmatprep.subr.mxu0 0.0
        %3349 = vmatpush1.msra.mxu0 0.0
        %3350 = vmatprep.subr.mxu0 0.0
        %3351 = vmatpush1.msra.mxu0 0.0
        %3352 = vmatprep.subr.mxu0 0.0
        %3353 = vmatpush1.msra.mxu0 0.0
        %3354 = vmatprep.subr.mxu0 0.0
        %3355 = vmatpush1.msra.mxu0 0.0
        %3356 = vmatprep.subr.mxu0 0.0
        %3357 = vmatpush1.msra.mxu0 0.0
        %3358 = vmatprep.mubr.f32.mxu0 0.0
        %3359 = vmatmul.mubr.f32.gmra.mrb[0].mxu0 %v3247
        %v3360 = vpop.f32.mrb[0].mxu0
        %v3361 = vadd.f32 0.0, %v3360
        %v3362 = vpop.f32.mrb[0].mxu0
        %3363 = vmatprep.mubr.f32.mxu0 0.0
        %3364 = vmatmul.mubr.f32.gmra.mrb[0].mxu0 %v3250
        %v3365 = vpop.f32.mrb[0].mxu0
        %v3366 = vadd.f32 0.0, %v3365
        %v3367 = vpop.f32.mrb[0].mxu0
        %3368 = vmatprep.mubr.f32.mxu0 0.0
        %3369 = vmatmul.mubr.f32.gmra.mrb[0].mxu0 %v3253
        %v3370 = vpop.f32.mrb[0].mxu0
        %v3371 = vadd.f32 0.0, %v3370
        %v3372 = vpop.f32.mrb[0].mxu0
        %3373 = vmatprep.mubr.f32.mxu0 0.0
        %3374 = vmatmul.mubr.f32.gmra.mrb[0].mxu0 %v3256
        %v3375 = vpop.f32.mrb[0].mxu0
        %v3376 = vadd.f32 0.0, %v3375
        %v3377 = vpop.f32.mrb[0].mxu0
        %3378 = vmatprep.mubr.f32.mxu0 0.0
        %3379 = vmatmul.mubr.f32.gmra.mrb[0].mxu0 %v3259
        %v3380 = vpop.f32.mrb[0].mxu0
        %v3381 = vadd.f32 0.0, %v3380
        %v3382 = vpop.f32.mrb[0].mxu0
        %3383 = vmatprep.mubr.f32.mxu0 0.0
        %3384 = vmatmul.mubr.f32.gmra.mrb[0].mxu0 %v3262
        %v3385 = vpop.f32.mrb[0].mxu0
        %v3386 = vadd.f32 0.0, %v3385
        %v3387 = vpop.f32.mrb[0].mxu0
        %3388 = vmatprep.mubr.f32.mxu0 0.0
        %3389 = vmatmul.mubr.f32.gmra.mrb[0].mxu0 %v3265
        %v3390 = vpop.f32.mrb[0].mxu0
        %v3391 = vadd.f32 0.0, %v3390
        %v3392 = vpop.f32.mrb[0].mxu0
        %3393 = vmatprep.mubr.f32.mxu0 0.0
        %3394 = vmatmul.mubr.f32.gmra.mrb[0].mxu0 %v3268
        %v3395 = vpop.f32.mrb[0].mxu0
        %v3396 = vadd.f32 0.0, %v3395
        %v3397 = vpop.f32.mrb[0].mxu0
        %3398 = vmatprep.mubr.f32.mxu0 0.0
        %3399 = vmatmul.mubr.f32.gmra.mrb[0].mxu0 %v3271
        %v3400 = vpop.f32.mrb[0].mxu0
        %v3401 = vadd.f32 0.0, %v3400
        %v3402 = vpop.f32.mrb[0].mxu0
        %3403 = vmatprep.mubr.f32.mxu0 0.0
        %3404 = vmatmul.mubr.f32.gmra.mrb[0].mxu0 %v3274
        %v3405 = vpop.f32.mrb[0].mxu0
        %v3406 = vadd.f32 0.0, %v3405
        %v3407 = vpop.f32.mrb[0].mxu0
        %3408 = vmatprep.mubr.f32.mxu0 0.0
        %3409 = vmatmul.mubr.f32.gmra.mrb[0].mxu0 %v3277
        %v3410 = vpop.f32.mrb[0].mxu0
        %v3411 = vadd.f32 0.0, %v3410
        %v3412 = vpop.f32.mrb[0].mxu0
        %3413 = vmatprep.mubr.f32.mxu0 0.0
        %3414 = vmatmul.mubr.f32.gmra.mrb[0].mxu0 %v3280
        %v3415 = vpop.f32.mrb[0].mxu0
        %v3416 = vadd.f32 0.0, %v3415
        %v3417 = vpop.f32.mrb[0].mxu0
        %3418 = vmatprep.mubr.f32.mxu0 0.0
        %3419 = vmatmul.mubr.f32.gmra.mrb[0].mxu0 %v3283
        %v3420 = vpop.f32.mrb[0].mxu0
        %v3421 = vadd.f32 0.0, %v3420
        %v3422 = vpop.f32.mrb[0].mxu0
        %3423 = vmatprep.mubr.f32.mxu0 0.0
        %3424 = vmatmul.mubr.f32.gmra.mrb[0].mxu0 %v3286
        %v3425 = vpop.f32.mrb[0].mxu0
        %v3426 = vadd.f32 0.0, %v3425
        %v3427 = vpop.f32.mrb[0].mxu0
        %3428 = vmatprep.mubr.f32.mxu0 0.0
        %3429 = vmatmul.mubr.f32.gmra.mrb[0].mxu0 %v3289
        %v3430 = vpop.f32.mrb[0].mxu0
        %v3431 = vadd.f32 0.0, %v3430
        %v3432 = vpop.f32.mrb[0].mxu0
        %3433 = vmatprep.mubr.f32.mxu0 0.0
        %3434 = vmatmul.mubr.f32.gmra.mrb[0].mxu0 %v3292
        %v3435 = vpop.f32.mrb[0].mxu0
        %v3436 = vadd.f32 0.0, %v3435
        %v3437 = vpop.f32.mrb[0].mxu0
        %3438 = vdwg.mxu0
        %v3439 = vadd.f32 %v3200, %v3361
        %v3440 = vadd.f32 %v3201, %v3366
        %v3441 = vadd.f32 %v3202, %v3371
        %v3442 = vadd.f32 %v3203, %v3376
        %v3443 = vadd.f32 %v3204, %v3381
        %v3444 = vadd.f32 %v3205, %v3386
        %v3445 = vadd.f32 %v3206, %v3391
        %v3446 = vadd.f32 %v3207, %v3396
        %v3447 = vadd.f32 %v3208, %v3401
        %v3448 = vadd.f32 %v3209, %v3406
        %v3449 = vadd.f32 %v3210, %v3411
        %v3450 = vadd.f32 %v3211, %v3416
        %v3451 = vadd.f32 %v3212, %v3421
        %v3452 = vadd.f32 %v3213, %v3426
        %v3453 = vadd.f32 %v3214, %v3431
        %v3454 = vadd.f32 %v3215, %v3436
        %s3455 = scalar_lea.vmem %s1, 1664
        %v3456 = vld [vmem:[%s3455] sm:$0xff]
        %v3457 = vld [vmem:[%s3455 + $0x8] sm:$0xff]
        %v3458 = vld [vmem:[%s3455 + $0x10] sm:$0xff]
        %v3459 = vld [vmem:[%s3455 + $0x18] sm:$0xff]
        %v3460 = vld [vmem:[%s3455 + $0x20] sm:$0xff]
        %v3461 = vld [vmem:[%s3455 + $0x28] sm:$0xff]
        %v3462 = vld [vmem:[%s3455 + $0x30] sm:$0xff]
        %v3463 = vld [vmem:[%s3455 + $0x38] sm:$0xff]
        %v3464 = vld [vmem:[%s3455 + $0x40] sm:$0xff]
        %v3465 = vld [vmem:[%s3455 + $0x48] sm:$0xff]
        %v3466 = vld [vmem:[%s3455 + $0x50] sm:$0xff]
        %v3467 = vld [vmem:[%s3455 + $0x58] sm:$0xff]
        %v3468 = vld [vmem:[%s3455 + $0x60] sm:$0xff]
        %v3469 = vld [vmem:[%s3455 + $0x68] sm:$0xff]
        %v3470 = vld [vmem:[%s3455 + $0x70] sm:$0xff]
        %v3471 = vld [vmem:[%s3455 + $0x78] sm:$0xff]
        %3472 = vrot.lane.b32.xlu0 %v385, 115
        %v3473 = vpop.permute.xlu0 %3472
        %3474 = vrot.lane.b32.xlu0 %v386, 115
        %v3475 = vpop.permute.xlu0 %3474
        %3476 = vrot.lane.b32.xlu0 %v387, 115
        %v3477 = vpop.permute.xlu0 %3476
        %3478 = vrot.lane.b32.xlu0 %v388, 115
        %v3479 = vpop.permute.xlu0 %3478
        %vm3480 = vcmask 941056
        %v3481 = vsel %vm3480, %v3473, %v3475
        %v3482 = vsel %vm3480, %v3477, %v3479
        %v3486 = vsel %vm439, %v3456, 0
        %v3489 = vsel %vm439, %v3457, 0
        %v3492 = vsel %vm439, %v3458, 0
        %v3495 = vsel %vm439, %v3459, 0
        %v3498 = vsel %vm439, %v3460, 0
        %v3501 = vsel %vm439, %v3461, 0
        %v3504 = vsel %vm439, %v3462, 0
        %v3507 = vsel %vm439, %v3463, 0
        %v3510 = vsel %vm439, %v3464, 0
        %v3513 = vsel %vm439, %v3465, 0
        %v3516 = vsel %vm439, %v3466, 0
        %v3519 = vsel %vm439, %v3467, 0
        %v3522 = vsel %vm439, %v3468, 0
        %v3525 = vsel %vm439, %v3469, 0
        %v3528 = vsel %vm439, %v3470, 0
        %v3531 = vsel %vm439, %v3471, 0
        %3533 = vmatprep.subr.mxu0 0.0
        %3534 = vmatpush1.msra.mxu0 %v3481
        %3535 = vmatprep.subr.mxu0 0.0
        %3536 = vmatpush1.msra.mxu0 %v3482
        %3537 = vmatprep.subr.mxu0 0.0
        %3538 = vmatpush1.msra.mxu0 0.0
        %3539 = vmatprep.subr.mxu0 0.0
        %3540 = vmatpush1.msra.mxu0 0.0
        %3541 = vmatprep.subr.mxu0 0.0
        %3542 = vmatpush1.msra.mxu0 0.0
        %3543 = vmatprep.subr.mxu0 0.0
        %3544 = vmatpush1.msra.mxu0 0.0
        %3545 = vmatprep.subr.mxu0 0.0
        %3546 = vmatpush1.msra.mxu0 0.0
        %3547 = vmatprep.subr.mxu0 0.0
        %3548 = vmatpush1.msra.mxu0 0.0
        %3549 = vmatprep.subr.mxu0 0.0
        %3550 = vmatpush1.msra.mxu0 0.0
        %3551 = vmatprep.subr.mxu0 0.0
        %3552 = vmatpush1.msra.mxu0 0.0
        %3553 = vmatprep.subr.mxu0 0.0
        %3554 = vmatpush1.msra.mxu0 0.0
        %3555 = vmatprep.subr.mxu0 0.0
        %3556 = vmatpush1.msra.mxu0 0.0
        %3557 = vmatprep.subr.mxu0 0.0
        %3558 = vmatpush1.msra.mxu0 0.0
        %3559 = vmatprep.subr.mxu0 0.0
        %3560 = vmatpush1.msra.mxu0 0.0
        %3561 = vmatprep.subr.mxu0 0.0
        %3562 = vmatpush1.msra.mxu0 0.0
        %3563 = vmatprep.subr.mxu0 0.0
        %3564 = vmatpush1.msra.mxu0 0.0
        %3565 = vmatprep.subr.mxu0 0.0
        %3566 = vmatpush1.msra.mxu0 0.0
        %3567 = vmatprep.subr.mxu0 0.0
        %3568 = vmatpush1.msra.mxu0 0.0
        %3569 = vmatprep.subr.mxu0 0.0
        %3570 = vmatpush1.msra.mxu0 0.0
        %3571 = vmatprep.subr.mxu0 0.0
        %3572 = vmatpush1.msra.mxu0 0.0
        %3573 = vmatprep.subr.mxu0 0.0
        %3574 = vmatpush1.msra.mxu0 0.0
        %3575 = vmatprep.subr.mxu0 0.0
        %3576 = vmatpush1.msra.mxu0 0.0
        %3577 = vmatprep.subr.mxu0 0.0
        %3578 = vmatpush1.msra.mxu0 0.0
        %3579 = vmatprep.subr.mxu0 0.0
        %3580 = vmatpush1.msra.mxu0 0.0
        %3581 = vmatprep.subr.mxu0 0.0
        %3582 = vmatpush1.msra.mxu0 0.0
        %3583 = vmatprep.subr.mxu0 0.0
        %3584 = vmatpush1.msra.mxu0 0.0
        %3585 = vmatprep.subr.mxu0 0.0
        %3586 = vmatpush1.msra.mxu0 0.0
        %3587 = vmatprep.subr.mxu0 0.0
        %3588 = vmatpush1.msra.mxu0 0.0
        %3589 = vmatprep.subr.mxu0 0.0
        %3590 = vmatpush1.msra.mxu0 0.0
        %3591 = vmatprep.subr.mxu0 0.0
        %3592 = vmatpush1.msra.mxu0 0.0
        %3593 = vmatprep.subr.mxu0 0.0
        %3594 = vmatpush1.msra.mxu0 0.0
        %3595 = vmatprep.subr.mxu0 0.0
        %3596 = vmatpush1.msra.mxu0 0.0
        %3597 = vmatprep.mubr.f32.mxu0 0.0
        %3598 = vmatmul.mubr.f32.gmra.mrb[0].mxu0 %v3486
        %v3599 = vpop.f32.mrb[0].mxu0
        %v3600 = vadd.f32 0.0, %v3599
        %v3601 = vpop.f32.mrb[0].mxu0
        %3602 = vmatprep.mubr.f32.mxu0 0.0
        %3603 = vmatmul.mubr.f32.gmra.mrb[0].mxu0 %v3489
        %v3604 = vpop.f32.mrb[0].mxu0
        %v3605 = vadd.f32 0.0, %v3604
        %v3606 = vpop.f32.mrb[0].mxu0
        %3607 = vmatprep.mubr.f32.mxu0 0.0
        %3608 = vmatmul.mubr.f32.gmra.mrb[0].mxu0 %v3492
        %v3609 = vpop.f32.mrb[0].mxu0
        %v3610 = vadd.f32 0.0, %v3609
        %v3611 = vpop.f32.mrb[0].mxu0
        %3612 = vmatprep.mubr.f32.mxu0 0.0
        %3613 = vmatmul.mubr.f32.gmra.mrb[0].mxu0 %v3495
        %v3614 = vpop.f32.mrb[0].mxu0
        %v3615 = vadd.f32 0.0, %v3614
        %v3616 = vpop.f32.mrb[0].mxu0
        %3617 = vmatprep.mubr.f32.mxu0 0.0
        %3618 = vmatmul.mubr.f32.gmra.mrb[0].mxu0 %v3498
        %v3619 = vpop.f32.mrb[0].mxu0
        %v3620 = vadd.f32 0.0, %v3619
        %v3621 = vpop.f32.mrb[0].mxu0
        %3622 = vmatprep.mubr.f32.mxu0 0.0
        %3623 = vmatmul.mubr.f32.gmra.mrb[0].mxu0 %v3501
        %v3624 = vpop.f32.mrb[0].mxu0
        %v3625 = vadd.f32 0.0, %v3624
        %v3626 = vpop.f32.mrb[0].mxu0
        %3627 = vmatprep.mubr.f32.mxu0 0.0
        %3628 = vmatmul.mubr.f32.gmra.mrb[0].mxu0 %v3504
        %v3629 = vpop.f32.mrb[0].mxu0
        %v3630 = vadd.f32 0.0, %v3629
        %v3631 = vpop.f32.mrb[0].mxu0
        %3632 = vmatprep.mubr.f32.mxu0 0.0
        %3633 = vmatmul.mubr.f32.gmra.mrb[0].mxu0 %v3507
        %v3634 = vpop.f32.mrb[0].mxu0
        %v3635 = vadd.f32 0.0, %v3634
        %v3636 = vpop.f32.mrb[0].mxu0
        %3637 = vmatprep.mubr.f32.mxu0 0.0
        %3638 = vmatmul.mubr.f32.gmra.mrb[0].mxu0 %v3510
        %v3639 = vpop.f32.mrb[0].mxu0
        %v3640 = vadd.f32 0.0, %v3639
        %v3641 = vpop.f32.mrb[0].mxu0
        %3642 = vmatprep.mubr.f32.mxu0 0.0
        %3643 = vmatmul.mubr.f32.gmra.mrb[0].mxu0 %v3513
        %v3644 = vpop.f32.mrb[0].mxu0
        %v3645 = vadd.f32 0.0, %v3644
        %v3646 = vpop.f32.mrb[0].mxu0
        %3647 = vmatprep.mubr.f32.mxu0 0.0
        %3648 = vmatmul.mubr.f32.gmra.mrb[0].mxu0 %v3516
        %v3649 = vpop.f32.mrb[0].mxu0
        %v3650 = vadd.f32 0.0, %v3649
        %v3651 = vpop.f32.mrb[0].mxu0
        %3652 = vmatprep.mubr.f32.mxu0 0.0
        %3653 = vmatmul.mubr.f32.gmra.mrb[0].mxu0 %v3519
        %v3654 = vpop.f32.mrb[0].mxu0
        %v3655 = vadd.f32 0.0, %v3654
        %v3656 = vpop.f32.mrb[0].mxu0
        %3657 = vmatprep.mubr.f32.mxu0 0.0
        %3658 = vmatmul.mubr.f32.gmra.mrb[0].mxu0 %v3522
        %v3659 = vpop.f32.mrb[0].mxu0
        %v3660 = vadd.f32 0.0, %v3659
        %v3661 = vpop.f32.mrb[0].mxu0
        %3662 = vmatprep.mubr.f32.mxu0 0.0
        %3663 = vmatmul.mubr.f32.gmra.mrb[0].mxu0 %v3525
        %v3664 = vpop.f32.mrb[0].mxu0
        %v3665 = vadd.f32 0.0, %v3664
        %v3666 = vpop.f32.mrb[0].mxu0
        %3667 = vmatprep.mubr.f32.mxu0 0.0
        %3668 = vmatmul.mubr.f32.gmra.mrb[0].mxu0 %v3528
        %v3669 = vpop.f32.mrb[0].mxu0
        %v3670 = vadd.f32 0.0, %v3669
        %v3671 = vpop.f32.mrb[0].mxu0
        %3672 = vmatprep.mubr.f32.mxu0 0.0
        %3673 = vmatmul.mubr.f32.gmra.mrb[0].mxu0 %v3531
        %v3674 = vpop.f32.mrb[0].mxu0
        %v3675 = vadd.f32 0.0, %v3674
        %v3676 = vpop.f32.mrb[0].mxu0
        %3677 = vdwg.mxu0
        %v3678 = vadd.f32 %v3439, %v3600
        %v3679 = vadd.f32 %v3440, %v3605
        %v3680 = vadd.f32 %v3441, %v3610
        %v3681 = vadd.f32 %v3442, %v3615
        %v3682 = vadd.f32 %v3443, %v3620
        %v3683 = vadd.f32 %v3444, %v3625
        %v3684 = vadd.f32 %v3445, %v3630
        %v3685 = vadd.f32 %v3446, %v3635
        %v3686 = vadd.f32 %v3447, %v3640
        %v3687 = vadd.f32 %v3448, %v3645
        %v3688 = vadd.f32 %v3449, %v3650
        %v3689 = vadd.f32 %v3450, %v3655
        %v3690 = vadd.f32 %v3451, %v3660
        %v3691 = vadd.f32 %v3452, %v3665
        %v3692 = vadd.f32 %v3453, %v3670
        %v3693 = vadd.f32 %v3454, %v3675
        %s3694 = scalar_lea.vmem %s1, 1792
        %v3695 = vld [vmem:[%s3694] sm:$0xff]
        %v3696 = vld [vmem:[%s3694 + $0x8] sm:$0xff]
        %v3697 = vld [vmem:[%s3694 + $0x10] sm:$0xff]
        %v3698 = vld [vmem:[%s3694 + $0x18] sm:$0xff]
        %v3699 = vld [vmem:[%s3694 + $0x20] sm:$0xff]
        %v3700 = vld [vmem:[%s3694 + $0x28] sm:$0xff]
        %v3701 = vld [vmem:[%s3694 + $0x30] sm:$0xff]
        %v3702 = vld [vmem:[%s3694 + $0x38] sm:$0xff]
        %v3703 = vld [vmem:[%s3694 + $0x40] sm:$0xff]
        %v3704 = vld [vmem:[%s3694 + $0x48] sm:$0xff]
        %v3705 = vld [vmem:[%s3694 + $0x50] sm:$0xff]
        %v3706 = vld [vmem:[%s3694 + $0x58] sm:$0xff]
        %v3707 = vld [vmem:[%s3694 + $0x60] sm:$0xff]
        %v3708 = vld [vmem:[%s3694 + $0x68] sm:$0xff]
        %v3709 = vld [vmem:[%s3694 + $0x70] sm:$0xff]
        %v3710 = vld [vmem:[%s3694 + $0x78] sm:$0xff]
        %3711 = vrot.lane.b32.xlu0 %v385, 114
        %v3712 = vpop.permute.xlu0 %3711
        %3713 = vrot.lane.b32.xlu0 %v386, 114
        %v3714 = vpop.permute.xlu0 %3713
        %3715 = vrot.lane.b32.xlu0 %v387, 114
        %v3716 = vpop.permute.xlu0 %3715
        %3717 = vrot.lane.b32.xlu0 %v388, 114
        %v3718 = vpop.permute.xlu0 %3717
        %vm3719 = vcmask 932864
        %v3720 = vsel %vm3719, %v3712, %v3714
        %v3721 = vsel %vm3719, %v3716, %v3718
        %v3725 = vsel %vm439, %v3695, 0
        %v3728 = vsel %vm439, %v3696, 0
        %v3731 = vsel %vm439, %v3697, 0
        %v3734 = vsel %vm439, %v3698, 0
        %v3737 = vsel %vm439, %v3699, 0
        %v3740 = vsel %vm439, %v3700, 0
        %v3743 = vsel %vm439, %v3701, 0
        %v3746 = vsel %vm439, %v3702, 0
        %v3749 = vsel %vm439, %v3703, 0
        %v3752 = vsel %vm439, %v3704, 0
        %v3755 = vsel %vm439, %v3705, 0
        %v3758 = vsel %vm439, %v3706, 0
        %v3761 = vsel %vm439, %v3707, 0
        %v3764 = vsel %vm439, %v3708, 0
        %v3767 = vsel %vm439, %v3709, 0
        %v3770 = vsel %vm439, %v3710, 0
        %3772 = vmatprep.subr.mxu0 0.0
        %3773 = vmatpush1.msra.mxu0 %v3720
        %3774 = vmatprep.subr.mxu0 0.0
        %3775 = vmatpush1.msra.mxu0 %v3721
        %3776 = vmatprep.subr.mxu0 0.0
        %3777 = vmatpush1.msra.mxu0 0.0
        %3778 = vmatprep.subr.mxu0 0.0
        %3779 = vmatpush1.msra.mxu0 0.0
        %3780 = vmatprep.subr.mxu0 0.0
        %3781 = vmatpush1.msra.mxu0 0.0
        %3782 = vmatprep.subr.mxu0 0.0
        %3783 = vmatpush1.msra.mxu0 0.0
        %3784 = vmatprep.subr.mxu0 0.0
        %3785 = vmatpush1.msra.mxu0 0.0
        %3786 = vmatprep.subr.mxu0 0.0
        %3787 = vmatpush1.msra.mxu0 0.0
        %3788 = vmatprep.subr.mxu0 0.0
        %3789 = vmatpush1.msra.mxu0 0.0
        %3790 = vmatprep.subr.mxu0 0.0
        %3791 = vmatpush1.msra.mxu0 0.0
        %3792 = vmatprep.subr.mxu0 0.0
        %3793 = vmatpush1.msra.mxu0 0.0
        %3794 = vmatprep.subr.mxu0 0.0
        %3795 = vmatpush1.msra.mxu0 0.0
        %3796 = vmatprep.subr.mxu0 0.0
        %3797 = vmatpush1.msra.mxu0 0.0
        %3798 = vmatprep.subr.mxu0 0.0
        %3799 = vmatpush1.msra.mxu0 0.0
        %3800 = vmatprep.subr.mxu0 0.0
        %3801 = vmatpush1.msra.mxu0 0.0
        %3802 = vmatprep.subr.mxu0 0.0
        %3803 = vmatpush1.msra.mxu0 0.0
        %3804 = vmatprep.subr.mxu0 0.0
        %3805 = vmatpush1.msra.mxu0 0.0
        %3806 = vmatprep.subr.mxu0 0.0
        %3807 = vmatpush1.msra.mxu0 0.0
        %3808 = vmatprep.subr.mxu0 0.0
        %3809 = vmatpush1.msra.mxu0 0.0
        %3810 = vmatprep.subr.mxu0 0.0
        %3811 = vmatpush1.msra.mxu0 0.0
        %3812 = vmatprep.subr.mxu0 0.0
        %3813 = vmatpush1.msra.mxu0 0.0
        %3814 = vmatprep.subr.mxu0 0.0
        %3815 = vmatpush1.msra.mxu0 0.0
        %3816 = vmatprep.subr.mxu0 0.0
        %3817 = vmatpush1.msra.mxu0 0.0
        %3818 = vmatprep.subr.mxu0 0.0
        %3819 = vmatpush1.msra.mxu0 0.0
        %3820 = vmatprep.subr.mxu0 0.0
        %3821 = vmatpush1.msra.mxu0 0.0
        %3822 = vmatprep.subr.mxu0 0.0
        %3823 = vmatpush1.msra.mxu0 0.0
        %3824 = vmatprep.subr.mxu0 0.0
        %3825 = vmatpush1.msra.mxu0 0.0
        %3826 = vmatprep.subr.mxu0 0.0
        %3827 = vmatpush1.msra.mxu0 0.0
        %3828 = vmatprep.subr.mxu0 0.0
        %3829 = vmatpush1.msra.mxu0 0.0
        %3830 = vmatprep.subr.mxu0 0.0
        %3831 = vmatpush1.msra.mxu0 0.0
        %3832 = vmatprep.subr.mxu0 0.0
        %3833 = vmatpush1.msra.mxu0 0.0
        %3834 = vmatprep.subr.mxu0 0.0
        %3835 = vmatpush1.msra.mxu0 0.0
        %3836 = vmatprep.mubr.f32.mxu0 0.0
        %3837 = vmatmul.mubr.f32.gmra.mrb[0].mxu0 %v3725
        %v3838 = vpop.f32.mrb[0].mxu0
        %v3839 = vadd.f32 0.0, %v3838
        %v3840 = vpop.f32.mrb[0].mxu0
        %3841 = vmatprep.mubr.f32.mxu0 0.0
        %3842 = vmatmul.mubr.f32.gmra.mrb[0].mxu0 %v3728
        %v3843 = vpop.f32.mrb[0].mxu0
        %v3844 = vadd.f32 0.0, %v3843
        %v3845 = vpop.f32.mrb[0].mxu0
        %3846 = vmatprep.mubr.f32.mxu0 0.0
        %3847 = vmatmul.mubr.f32.gmra.mrb[0].mxu0 %v3731
        %v3848 = vpop.f32.mrb[0].mxu0
        %v3849 = vadd.f32 0.0, %v3848
        %v3850 = vpop.f32.mrb[0].mxu0
        %3851 = vmatprep.mubr.f32.mxu0 0.0
        %3852 = vmatmul.mubr.f32.gmra.mrb[0].mxu0 %v3734
        %v3853 = vpop.f32.mrb[0].mxu0
        %v3854 = vadd.f32 0.0, %v3853
        %v3855 = vpop.f32.mrb[0].mxu0
        %3856 = vmatprep.mubr.f32.mxu0 0.0
        %3857 = vmatmul.mubr.f32.gmra.mrb[0].mxu0 %v3737
        %v3858 = vpop.f32.mrb[0].mxu0
        %v3859 = vadd.f32 0.0, %v3858
        %v3860 = vpop.f32.mrb[0].mxu0
        %3861 = vmatprep.mubr.f32.mxu0 0.0
        %3862 = vmatmul.mubr.f32.gmra.mrb[0].mxu0 %v3740
        %v3863 = vpop.f32.mrb[0].mxu0
        %v3864 = vadd.f32 0.0, %v3863
        %v3865 = vpop.f32.mrb[0].mxu0
        %3866 = vmatprep.mubr.f32.mxu0 0.0
        %3867 = vmatmul.mubr.f32.gmra.mrb[0].mxu0 %v3743
        %v3868 = vpop.f32.mrb[0].mxu0
        %v3869 = vadd.f32 0.0, %v3868
        %v3870 = vpop.f32.mrb[0].mxu0
        %3871 = vmatprep.mubr.f32.mxu0 0.0
        %3872 = vmatmul.mubr.f32.gmra.mrb[0].mxu0 %v3746
        %v3873 = vpop.f32.mrb[0].mxu0
        %v3874 = vadd.f32 0.0, %v3873
        %v3875 = vpop.f32.mrb[0].mxu0
        %3876 = vmatprep.mubr.f32.mxu0 0.0
        %3877 = vmatmul.mubr.f32.gmra.mrb[0].mxu0 %v3749
        %v3878 = vpop.f32.mrb[0].mxu0
        %v3879 = vadd.f32 0.0, %v3878
        %v3880 = vpop.f32.mrb[0].mxu0
        %3881 = vmatprep.mubr.f32.mxu0 0.0
        %3882 = vmatmul.mubr.f32.gmra.mrb[0].mxu0 %v3752
        %v3883 = vpop.f32.mrb[0].mxu0
        %v3884 = vadd.f32 0.0, %v3883
        %v3885 = vpop.f32.mrb[0].mxu0
        %3886 = vmatprep.mubr.f32.mxu0 0.0
        %3887 = vmatmul.mubr.f32.gmra.mrb[0].mxu0 %v3755
        %v3888 = vpop.f32.mrb[0].mxu0
        %v3889 = vadd.f32 0.0, %v3888
        %v3890 = vpop.f32.mrb[0].mxu0
        %3891 = vmatprep.mubr.f32.mxu0 0.0
        %3892 = vmatmul.mubr.f32.gmra.mrb[0].mxu0 %v3758
        %v3893 = vpop.f32.mrb[0].mxu0
        %v3894 = vadd.f32 0.0, %v3893
        %v3895 = vpop.f32.mrb[0].mxu0
        %3896 = vmatprep.mubr.f32.mxu0 0.0
        %3897 = vmatmul.mubr.f32.gmra.mrb[0].mxu0 %v3761
        %v3898 = vpop.f32.mrb[0].mxu0
        %v3899 = vadd.f32 0.0, %v3898
        %v3900 = vpop.f32.mrb[0].mxu0
        %3901 = vmatprep.mubr.f32.mxu0 0.0
        %3902 = vmatmul.mubr.f32.gmra.mrb[0].mxu0 %v3764
        %v3903 = vpop.f32.mrb[0].mxu0
        %v3904 = vadd.f32 0.0, %v3903
        %v3905 = vpop.f32.mrb[0].mxu0
        %3906 = vmatprep.mubr.f32.mxu0 0.0
        %3907 = vmatmul.mubr.f32.gmra.mrb[0].mxu0 %v3767
        %v3908 = vpop.f32.mrb[0].mxu0
        %v3909 = vadd.f32 0.0, %v3908
        %v3910 = vpop.f32.mrb[0].mxu0
        %3911 = vmatprep.mubr.f32.mxu0 0.0
        %3912 = vmatmul.mubr.f32.gmra.mrb[0].mxu0 %v3770
        %v3913 = vpop.f32.mrb[0].mxu0
        %v3914 = vadd.f32 0.0, %v3913
        %v3915 = vpop.f32.mrb[0].mxu0
        %3916 = vdwg.mxu0
        %v3917 = vadd.f32 %v3678, %v3839
        %v3918 = vadd.f32 %v3679, %v3844
        %v3919 = vadd.f32 %v3680, %v3849
        %v3920 = vadd.f32 %v3681, %v3854
        %v3921 = vadd.f32 %v3682, %v3859
        %v3922 = vadd.f32 %v3683, %v3864
        %v3923 = vadd.f32 %v3684, %v3869
        %v3924 = vadd.f32 %v3685, %v3874
        %v3925 = vadd.f32 %v3686, %v3879
        %v3926 = vadd.f32 %v3687, %v3884
        %v3927 = vadd.f32 %v3688, %v3889
        %v3928 = vadd.f32 %v3689, %v3894
        %v3929 = vadd.f32 %v3690, %v3899
        %v3930 = vadd.f32 %v3691, %v3904
        %v3931 = vadd.f32 %v3692, %v3909
        %v3932 = vadd.f32 %v3693, %v3914
        %v3933 = vld [vmem:[%s2] sm:$0xff]
        %v3934 = vld [vmem:[%s2 + $0x8] sm:$0xff]
        %v3935 = vld [vmem:[%s2 + $0x10] sm:$0xff]
        %v3936 = vld [vmem:[%s2 + $0x18] sm:$0xff]
        %v3937 = vld [vmem:[%s2 + $0x20] sm:$0xff]
        %v3938 = vld [vmem:[%s2 + $0x28] sm:$0xff]
        %v3939 = vld [vmem:[%s2 + $0x30] sm:$0xff]
        %v3940 = vld [vmem:[%s2 + $0x38] sm:$0xff]
        %v3941 = vld [vmem:[%s2 + $0x40] sm:$0xff]
        %v3942 = vld [vmem:[%s2 + $0x48] sm:$0xff]
        %v3943 = vld [vmem:[%s2 + $0x50] sm:$0xff]
        %v3944 = vld [vmem:[%s2 + $0x58] sm:$0xff]
        %v3945 = vld [vmem:[%s2 + $0x60] sm:$0xff]
        %v3946 = vld [vmem:[%s2 + $0x68] sm:$0xff]
        %v3947 = vld [vmem:[%s2 + $0x70] sm:$0xff]
        %v3948 = vld [vmem:[%s2 + $0x78] sm:$0xff]
        %3950 = vset.pattern.permute.xlu0 0
        %3951 = vperm.xlu0 %3950, %v3933
        %v3952 = vpop.permute.xlu0 %3951
        %3955 = vset.pattern.permute.xlu0 0
        %3956 = vperm.xlu0 %3955, %v3934
        %v3957 = vpop.permute.xlu0 %3956
        %3960 = vset.pattern.permute.xlu0 0
        %3961 = vperm.xlu0 %3960, %v3935
        %v3962 = vpop.permute.xlu0 %3961
        %3965 = vset.pattern.permute.xlu0 0
        %3966 = vperm.xlu0 %3965, %v3936
        %v3967 = vpop.permute.xlu0 %3966
        %3970 = vset.pattern.permute.xlu0 0
        %3971 = vperm.xlu0 %3970, %v3937
        %v3972 = vpop.permute.xlu0 %3971
        %3975 = vset.pattern.permute.xlu0 0
        %3976 = vperm.xlu0 %3975, %v3938
        %v3977 = vpop.permute.xlu0 %3976
        %3980 = vset.pattern.permute.xlu0 0
        %3981 = vperm.xlu0 %3980, %v3939
        %v3982 = vpop.permute.xlu0 %3981
        %3985 = vset.pattern.permute.xlu0 0
        %3986 = vperm.xlu0 %3985, %v3940
        %v3987 = vpop.permute.xlu0 %3986
        %3990 = vset.pattern.permute.xlu0 0
        %3991 = vperm.xlu0 %3990, %v3941
        %v3992 = vpop.permute.xlu0 %3991
        %3995 = vset.pattern.permute.xlu0 0
        %3996 = vperm.xlu0 %3995, %v3942
        %v3997 = vpop.permute.xlu0 %3996
        %4000 = vset.pattern.permute.xlu0 0
        %4001 = vperm.xlu0 %4000, %v3943
        %v4002 = vpop.permute.xlu0 %4001
        %4005 = vset.pattern.permute.xlu0 0
        %4006 = vperm.xlu0 %4005, %v3944
        %v4007 = vpop.permute.xlu0 %4006
        %4010 = vset.pattern.permute.xlu0 0
        %4011 = vperm.xlu0 %4010, %v3945
        %v4012 = vpop.permute.xlu0 %4011
        %4015 = vset.pattern.permute.xlu0 0
        %4016 = vperm.xlu0 %4015, %v3946
        %v4017 = vpop.permute.xlu0 %4016
        %4020 = vset.pattern.permute.xlu0 0
        %4021 = vperm.xlu0 %4020, %v3947
        %v4022 = vpop.permute.xlu0 %4021
        %4025 = vset.pattern.permute.xlu0 0
        %4026 = vperm.xlu0 %4025, %v3948
        %v4027 = vpop.permute.xlu0 %4026
        %v4029 = vadd.f32 %v3917, %v3952
        %v4030 = vadd.f32 %v3918, %v3957
        %v4031 = vadd.f32 %v3919, %v3962
        %v4032 = vadd.f32 %v3920, %v3967
        %v4033 = vadd.f32 %v3921, %v3972
        %v4034 = vadd.f32 %v3922, %v3977
        %v4035 = vadd.f32 %v3923, %v3982
        %v4036 = vadd.f32 %v3924, %v3987
        %v4037 = vadd.f32 %v3925, %v3992
        %v4038 = vadd.f32 %v3926, %v3997
        %v4039 = vadd.f32 %v3927, %v4002
        %v4040 = vadd.f32 %v3928, %v4007
        %v4041 = vadd.f32 %v3929, %v4012
        %v4042 = vadd.f32 %v3930, %v4017
        %v4043 = vadd.f32 %v3931, %v4022
        %v4044 = vadd.f32 %v3932, %v4027
        %v4045 = vld [vmem:[%s5] sm:$0xff]
        %4046 = vmatprep.subr.mxu0 0.0
        %4047 = vmatpush1.msra.mxu0 %v4029
        %4048 = vmatprep.subr.mxu0 0.0
        %4049 = vmatpush1.msra.mxu0 %v4030
        %4050 = vmatprep.subr.mxu0 0.0
        %4051 = vmatpush1.msra.mxu0 %v4031
        %4052 = vmatprep.subr.mxu0 0.0
        %4053 = vmatpush1.msra.mxu0 %v4032
        %4054 = vmatprep.subr.mxu0 0.0
        %4055 = vmatpush1.msra.mxu0 %v4033
        %4056 = vmatprep.subr.mxu0 0.0
        %4057 = vmatpush1.msra.mxu0 %v4034
        %4058 = vmatprep.subr.mxu0 0.0
        %4059 = vmatpush1.msra.mxu0 %v4035
        %4060 = vmatprep.subr.mxu0 0.0
        %4061 = vmatpush1.msra.mxu0 %v4036
        %4062 = vmatprep.subr.mxu0 0.0
        %4063 = vmatpush1.msra.mxu0 %v4037
        %4064 = vmatprep.subr.mxu0 0.0
        %4065 = vmatpush1.msra.mxu0 %v4038
        %4066 = vmatprep.subr.mxu0 0.0
        %4067 = vmatpush1.msra.mxu0 %v4039
        %4068 = vmatprep.subr.mxu0 0.0
        %4069 = vmatpush1.msra.mxu0 %v4040
        %4070 = vmatprep.subr.mxu0 0.0
        %4071 = vmatpush1.msra.mxu0 %v4041
        %4072 = vmatprep.subr.mxu0 0.0
        %4073 = vmatpush1.msra.mxu0 %v4042
        %4074 = vmatprep.subr.mxu0 0.0
        %4075 = vmatpush1.msra.mxu0 %v4043
        %4076 = vmatprep.subr.mxu0 0.0
        %4077 = vmatpush1.msra.mxu0 %v4044
        %4078 = vmatprep.subr.mxu0 0.0
        %4079 = vmatpush1.msra.mxu0 0.0
        %4080 = vmatprep.subr.mxu0 0.0
        %4081 = vmatpush1.msra.mxu0 0.0
        %4082 = vmatprep.subr.mxu0 0.0
        %4083 = vmatpush1.msra.mxu0 0.0
        %4084 = vmatprep.subr.mxu0 0.0
        %4085 = vmatpush1.msra.mxu0 0.0
        %4086 = vmatprep.subr.mxu0 0.0
        %4087 = vmatpush1.msra.mxu0 0.0
        %4088 = vmatprep.subr.mxu0 0.0
        %4089 = vmatpush1.msra.mxu0 0.0
        %4090 = vmatprep.subr.mxu0 0.0
        %4091 = vmatpush1.msra.mxu0 0.0
        %4092 = vmatprep.subr.mxu0 0.0
        %4093 = vmatpush1.msra.mxu0 0.0
        %4094 = vmatprep.subr.mxu0 0.0
        %4095 = vmatpush1.msra.mxu0 0.0
        %4096 = vmatprep.subr.mxu0 0.0
        %4097 = vmatpush1.msra.mxu0 0.0
        %4098 = vmatprep.subr.mxu0 0.0
        %4099 = vmatpush1.msra.mxu0 0.0
        %4100 = vmatprep.subr.mxu0 0.0
        %4101 = vmatpush1.msra.mxu0 0.0
        %4102 = vmatprep.subr.mxu0 0.0
        %4103 = vmatpush1.msra.mxu0 0.0
        %4104 = vmatprep.subr.mxu0 0.0
        %4105 = vmatpush1.msra.mxu0 0.0
        %4106 = vmatprep.subr.mxu0 0.0
        %4107 = vmatpush1.msra.mxu0 0.0
        %4108 = vmatprep.subr.mxu0 0.0
        %4109 = vmatpush1.msra.mxu0 0.0
        %4110 = vmatprep.mubr.f32.mxu0 0.0
        %4111 = vmatmul.mubr.f32.gmra.mrb[0].mxu0 %v4045
        %v4112 = vpop.f32.mrb[0].mxu0
        %v4113 = vadd.f32 0.0, %v4112
        %v4114 = vpop.f32.mrb[0].mxu0
        %4115 = vdwg.mxu0
        %4116 = vadd.xlane.f32.xlu0 %v4113
        %v4117 = vpop.xlane.xlu0 %4116
        %v4118 = vmul.f32 %v4029, %v4029
        %v4119 = vmul.f32 %v4030, %v4030
        %v4120 = vmul.f32 %v4031, %v4031
        %v4121 = vmul.f32 %v4032, %v4032
        %v4122 = vmul.f32 %v4033, %v4033
        %v4123 = vmul.f32 %v4034, %v4034
        %v4124 = vmul.f32 %v4035, %v4035
        %v4125 = vmul.f32 %v4036, %v4036
        %v4126 = vmul.f32 %v4037, %v4037
        %v4127 = vmul.f32 %v4038, %v4038
        %v4128 = vmul.f32 %v4039, %v4039
        %v4129 = vmul.f32 %v4040, %v4040
        %v4130 = vmul.f32 %v4041, %v4041
        %v4131 = vmul.f32 %v4042, %v4042
        %v4132 = vmul.f32 %v4043, %v4043
        %v4133 = vmul.f32 %v4044, %v4044
        %4134 = vmatprep.subr.mxu0 0.0
        %4135 = vmatpush1.msra.mxu0 %v4118
        %4136 = vmatprep.subr.mxu0 0.0
        %4137 = vmatpush1.msra.mxu0 %v4119
        %4138 = vmatprep.subr.mxu0 0.0
        %4139 = vmatpush1.msra.mxu0 %v4120
        %4140 = vmatprep.subr.mxu0 0.0
        %4141 = vmatpush1.msra.mxu0 %v4121
        %4142 = vmatprep.subr.mxu0 0.0
        %4143 = vmatpush1.msra.mxu0 %v4122
        %4144 = vmatprep.subr.mxu0 0.0
        %4145 = vmatpush1.msra.mxu0 %v4123
        %4146 = vmatprep.subr.mxu0 0.0
        %4147 = vmatpush1.msra.mxu0 %v4124
        %4148 = vmatprep.subr.mxu0 0.0
        %4149 = vmatpush1.msra.mxu0 %v4125
        %4150 = vmatprep.subr.mxu0 0.0
        %4151 = vmatpush1.msra.mxu0 %v4126
        %4152 = vmatprep.subr.mxu0 0.0
        %4153 = vmatpush1.msra.mxu0 %v4127
        %4154 = vmatprep.subr.mxu0 0.0
        %4155 = vmatpush1.msra.mxu0 %v4128
        %4156 = vmatprep.subr.mxu0 0.0
        %4157 = vmatpush1.msra.mxu0 %v4129
        %4158 = vmatprep.subr.mxu0 0.0
        %4159 = vmatpush1.msra.mxu0 %v4130
        %4160 = vmatprep.subr.mxu0 0.0
        %4161 = vmatpush1.msra.mxu0 %v4131
        %4162 = vmatprep.subr.mxu0 0.0
        %4163 = vmatpush1.msra.mxu0 %v4132
        %4164 = vmatprep.subr.mxu0 0.0
        %4165 = vmatpush1.msra.mxu0 %v4133
        %4166 = vmatprep.subr.mxu0 0.0
        %4167 = vmatpush1.msra.mxu0 0.0
        %4168 = vmatprep.subr.mxu0 0.0
        %4169 = vmatpush1.msra.mxu0 0.0
        %4170 = vmatprep.subr.mxu0 0.0
        %4171 = vmatpush1.msra.mxu0 0.0
        %4172 = vmatprep.subr.mxu0 0.0
        %4173 = vmatpush1.msra.mxu0 0.0
        %4174 = vmatprep.subr.mxu0 0.0
        %4175 = vmatpush1.msra.mxu0 0.0
        %4176 = vmatprep.subr.mxu0 0.0
        %4177 = vmatpush1.msra.mxu0 0.0
        %4178 = vmatprep.subr.mxu0 0.0
        %4179 = vmatpush1.msra.mxu0 0.0
        %4180 = vmatprep.subr.mxu0 0.0
        %4181 = vmatpush1.msra.mxu0 0.0
        %4182 = vmatprep.subr.mxu0 0.0
        %4183 = vmatpush1.msra.mxu0 0.0
        %4184 = vmatprep.subr.mxu0 0.0
        %4185 = vmatpush1.msra.mxu0 0.0
        %4186 = vmatprep.subr.mxu0 0.0
        %4187 = vmatpush1.msra.mxu0 0.0
        %4188 = vmatprep.subr.mxu0 0.0
        %4189 = vmatpush1.msra.mxu0 0.0
        %4190 = vmatprep.subr.mxu0 0.0
        %4191 = vmatpush1.msra.mxu0 0.0
        %4192 = vmatprep.subr.mxu0 0.0
        %4193 = vmatpush1.msra.mxu0 0.0
        %4194 = vmatprep.subr.mxu0 0.0
        %4195 = vmatpush1.msra.mxu0 0.0
        %4196 = vmatprep.subr.mxu0 0.0
        %4197 = vmatpush1.msra.mxu0 0.0
        %4198 = vmatprep.mubr.f32.mxu0 0.0
        %4199 = vmatmul.mubr.f32.gmra.mrb[0].mxu0 %v4045
        %v4200 = vpop.f32.mrb[0].mxu0
        %v4201 = vadd.f32 0.0, %v4200
        %v4202 = vpop.f32.mrb[0].mxu0
        %4203 = vdwg.mxu0
        %4204 = vadd.xlane.f32.xlu0 %v4201
        %v4205 = vpop.xlane.xlu0 %4204
        %v4206 = vmul.f32 %v4117, 0.00048828125
        %v4207 = vmul.f32 %v4205, 0.00048828125
        %v4208 = vmul.f32 %v4206, %v4206
        %v4209 = vsub.f32 %v4207, %v4208
        %v4210 = vadd.f32 %v4209, 1e-05
        %v4211 = vrsqrt.pop %v4210
        %v4212 = vld [vmem:[%s6] sm:$0xff]
        %v4213 = vld [vmem:[%s6 + $0x8] sm:$0xff]
        %v4214 = vld [vmem:[%s6 + $0x10] sm:$0xff]
        %v4215 = vld [vmem:[%s6 + $0x18] sm:$0xff]
        %v4216 = vld [vmem:[%s6 + $0x20] sm:$0xff]
        %v4217 = vld [vmem:[%s6 + $0x28] sm:$0xff]
        %v4218 = vld [vmem:[%s6 + $0x30] sm:$0xff]
        %v4219 = vld [vmem:[%s6 + $0x38] sm:$0xff]
        %v4220 = vld [vmem:[%s6 + $0x40] sm:$0xff]
        %v4221 = vld [vmem:[%s6 + $0x48] sm:$0xff]
        %v4222 = vld [vmem:[%s6 + $0x50] sm:$0xff]
        %v4223 = vld [vmem:[%s6 + $0x58] sm:$0xff]
        %v4224 = vld [vmem:[%s6 + $0x60] sm:$0xff]
        %v4225 = vld [vmem:[%s6 + $0x68] sm:$0xff]
        %v4226 = vld [vmem:[%s6 + $0x70] sm:$0xff]
        %v4227 = vld [vmem:[%s6 + $0x78] sm:$0xff]
        %vm4228 = vcmask 64512
        %v4230 = vsel %vm4228, %v4212, 0
        %v4233 = vsel %vm4228, %v4213, 0
        %v4236 = vsel %vm4228, %v4214, 0
        %v4239 = vsel %vm4228, %v4215, 0
        %v4242 = vsel %vm4228, %v4216, 0
        %v4245 = vsel %vm4228, %v4217, 0
        %v4248 = vsel %vm4228, %v4218, 0
        %v4251 = vsel %vm4228, %v4219, 0
        %v4254 = vsel %vm4228, %v4220, 0
        %v4257 = vsel %vm4228, %v4221, 0
        %v4260 = vsel %vm4228, %v4222, 0
        %v4263 = vsel %vm4228, %v4223, 0
        %v4266 = vsel %vm4228, %v4224, 0
        %v4269 = vsel %vm4228, %v4225, 0
        %v4272 = vsel %vm4228, %v4226, 0
        %v4275 = vsel %vm4228, %v4227, 0
        %4277 = vmatprep.subr.mxu0 0.0
        %4278 = vmatpush1.msra.mxu0 %v4206
        %4279 = vmatprep.subr.mxu0 0.0
        %4280 = vmatpush1.msra.mxu0 0.0
        %4281 = vmatprep.subr.mxu0 0.0
        %4282 = vmatpush1.msra.mxu0 0.0
        %4283 = vmatprep.subr.mxu0 0.0
        %4284 = vmatpush1.msra.mxu0 0.0
        %4285 = vmatprep.subr.mxu0 0.0
        %4286 = vmatpush1.msra.mxu0 0.0
        %4287 = vmatprep.subr.mxu0 0.0
        %4288 = vmatpush1.msra.mxu0 0.0
        %4289 = vmatprep.subr.mxu0 0.0
        %4290 = vmatpush1.msra.mxu0 0.0
        %4291 = vmatprep.subr.mxu0 0.0
        %4292 = vmatpush1.msra.mxu0 0.0
        %4293 = vmatprep.subr.mxu0 0.0
        %4294 = vmatpush1.msra.mxu0 0.0
        %4295 = vmatprep.subr.mxu0 0.0
        %4296 = vmatpush1.msra.mxu0 0.0
        %4297 = vmatprep.subr.mxu0 0.0
        %4298 = vmatpush1.msra.mxu0 0.0
        %4299 = vmatprep.subr.mxu0 0.0
        %4300 = vmatpush1.msra.mxu0 0.0
        %4301 = vmatprep.subr.mxu0 0.0
        %4302 = vmatpush1.msra.mxu0 0.0
        %4303 = vmatprep.subr.mxu0 0.0
        %4304 = vmatpush1.msra.mxu0 0.0
        %4305 = vmatprep.subr.mxu0 0.0
        %4306 = vmatpush1.msra.mxu0 0.0
        %4307 = vmatprep.subr.mxu0 0.0
        %4308 = vmatpush1.msra.mxu0 0.0
        %4309 = vmatprep.subr.mxu0 0.0
        %4310 = vmatpush1.msra.mxu0 0.0
        %4311 = vmatprep.subr.mxu0 0.0
        %4312 = vmatpush1.msra.mxu0 0.0
        %4313 = vmatprep.subr.mxu0 0.0
        %4314 = vmatpush1.msra.mxu0 0.0
        %4315 = vmatprep.subr.mxu0 0.0
        %4316 = vmatpush1.msra.mxu0 0.0
        %4317 = vmatprep.subr.mxu0 0.0
        %4318 = vmatpush1.msra.mxu0 0.0
        %4319 = vmatprep.subr.mxu0 0.0
        %4320 = vmatpush1.msra.mxu0 0.0
        %4321 = vmatprep.subr.mxu0 0.0
        %4322 = vmatpush1.msra.mxu0 0.0
        %4323 = vmatprep.subr.mxu0 0.0
        %4324 = vmatpush1.msra.mxu0 0.0
        %4325 = vmatprep.subr.mxu0 0.0
        %4326 = vmatpush1.msra.mxu0 0.0
        %4327 = vmatprep.subr.mxu0 0.0
        %4328 = vmatpush1.msra.mxu0 0.0
        %4329 = vmatprep.subr.mxu0 0.0
        %4330 = vmatpush1.msra.mxu0 0.0
        %4331 = vmatprep.subr.mxu0 0.0
        %4332 = vmatpush1.msra.mxu0 0.0
        %4333 = vmatprep.subr.mxu0 0.0
        %4334 = vmatpush1.msra.mxu0 0.0
        %4335 = vmatprep.subr.mxu0 0.0
        %4336 = vmatpush1.msra.mxu0 0.0
        %4337 = vmatprep.subr.mxu0 0.0
        %4338 = vmatpush1.msra.mxu0 0.0
        %4339 = vmatprep.subr.mxu0 0.0
        %4340 = vmatpush1.msra.mxu0 0.0
        %4341 = vmatprep.mubr.f32.mxu0 0.0
        %4342 = vmatmul.mubr.f32.gmra.mrb[0].mxu0 %v4230
        %v4343 = vpop.f32.mrb[0].mxu0
        %v4344 = vadd.f32 0.0, %v4343
        %v4345 = vpop.f32.mrb[0].mxu0
        %4346 = vmatprep.mubr.f32.mxu0 0.0
        %4347 = vmatmul.mubr.f32.gmra.mrb[0].mxu0 %v4233
        %v4348 = vpop.f32.mrb[0].mxu0
        %v4349 = vadd.f32 0.0, %v4348
        %v4350 = vpop.f32.mrb[0].mxu0
        %4351 = vmatprep.mubr.f32.mxu0 0.0
        %4352 = vmatmul.mubr.f32.gmra.mrb[0].mxu0 %v4236
        %v4353 = vpop.f32.mrb[0].mxu0
        %v4354 = vadd.f32 0.0, %v4353
        %v4355 = vpop.f32.mrb[0].mxu0
        %4356 = vmatprep.mubr.f32.mxu0 0.0
        %4357 = vmatmul.mubr.f32.gmra.mrb[0].mxu0 %v4239
        %v4358 = vpop.f32.mrb[0].mxu0
        %v4359 = vadd.f32 0.0, %v4358
        %v4360 = vpop.f32.mrb[0].mxu0
        %4361 = vmatprep.mubr.f32.mxu0 0.0
        %4362 = vmatmul.mubr.f32.gmra.mrb[0].mxu0 %v4242
        %v4363 = vpop.f32.mrb[0].mxu0
        %v4364 = vadd.f32 0.0, %v4363
        %v4365 = vpop.f32.mrb[0].mxu0
        %4366 = vmatprep.mubr.f32.mxu0 0.0
        %4367 = vmatmul.mubr.f32.gmra.mrb[0].mxu0 %v4245
        %v4368 = vpop.f32.mrb[0].mxu0
        %v4369 = vadd.f32 0.0, %v4368
        %v4370 = vpop.f32.mrb[0].mxu0
        %4371 = vmatprep.mubr.f32.mxu0 0.0
        %4372 = vmatmul.mubr.f32.gmra.mrb[0].mxu0 %v4248
        %v4373 = vpop.f32.mrb[0].mxu0
        %v4374 = vadd.f32 0.0, %v4373
        %v4375 = vpop.f32.mrb[0].mxu0
        %4376 = vmatprep.mubr.f32.mxu0 0.0
        %4377 = vmatmul.mubr.f32.gmra.mrb[0].mxu0 %v4251
        %v4378 = vpop.f32.mrb[0].mxu0
        %v4379 = vadd.f32 0.0, %v4378
        %v4380 = vpop.f32.mrb[0].mxu0
        %4381 = vmatprep.mubr.f32.mxu0 0.0
        %4382 = vmatmul.mubr.f32.gmra.mrb[0].mxu0 %v4254
        %v4383 = vpop.f32.mrb[0].mxu0
        %v4384 = vadd.f32 0.0, %v4383
        %v4385 = vpop.f32.mrb[0].mxu0
        %4386 = vmatprep.mubr.f32.mxu0 0.0
        %4387 = vmatmul.mubr.f32.gmra.mrb[0].mxu0 %v4257
        %v4388 = vpop.f32.mrb[0].mxu0
        %v4389 = vadd.f32 0.0, %v4388
        %v4390 = vpop.f32.mrb[0].mxu0
        %4391 = vmatprep.mubr.f32.mxu0 0.0
        %4392 = vmatmul.mubr.f32.gmra.mrb[0].mxu0 %v4260
        %v4393 = vpop.f32.mrb[0].mxu0
        %v4394 = vadd.f32 0.0, %v4393
        %v4395 = vpop.f32.mrb[0].mxu0
        %4396 = vmatprep.mubr.f32.mxu0 0.0
        %4397 = vmatmul.mubr.f32.gmra.mrb[0].mxu0 %v4263
        %v4398 = vpop.f32.mrb[0].mxu0
        %v4399 = vadd.f32 0.0, %v4398
        %v4400 = vpop.f32.mrb[0].mxu0
        %4401 = vmatprep.mubr.f32.mxu0 0.0
        %4402 = vmatmul.mubr.f32.gmra.mrb[0].mxu0 %v4266
        %v4403 = vpop.f32.mrb[0].mxu0
        %v4404 = vadd.f32 0.0, %v4403
        %v4405 = vpop.f32.mrb[0].mxu0
        %4406 = vmatprep.mubr.f32.mxu0 0.0
        %4407 = vmatmul.mubr.f32.gmra.mrb[0].mxu0 %v4269
        %v4408 = vpop.f32.mrb[0].mxu0
        %v4409 = vadd.f32 0.0, %v4408
        %v4410 = vpop.f32.mrb[0].mxu0
        %4411 = vmatprep.mubr.f32.mxu0 0.0
        %4412 = vmatmul.mubr.f32.gmra.mrb[0].mxu0 %v4272
        %v4413 = vpop.f32.mrb[0].mxu0
        %v4414 = vadd.f32 0.0, %v4413
        %v4415 = vpop.f32.mrb[0].mxu0
        %4416 = vmatprep.mubr.f32.mxu0 0.0
        %4417 = vmatmul.mubr.f32.gmra.mrb[0].mxu0 %v4275
        %v4418 = vpop.f32.mrb[0].mxu0
        %v4419 = vadd.f32 0.0, %v4418
        %v4420 = vpop.f32.mrb[0].mxu0
        %4421 = vdwg.mxu0
        %4422 = vmatprep.subr.mxu0 0.0
        %4423 = vmatpush1.msra.mxu0 %v4211
        %4424 = vmatprep.subr.mxu0 0.0
        %4425 = vmatpush1.msra.mxu0 0.0
        %4426 = vmatprep.subr.mxu0 0.0
        %4427 = vmatpush1.msra.mxu0 0.0
        %4428 = vmatprep.subr.mxu0 0.0
        %4429 = vmatpush1.msra.mxu0 0.0
        %4430 = vmatprep.subr.mxu0 0.0
        %4431 = vmatpush1.msra.mxu0 0.0
        %4432 = vmatprep.subr.mxu0 0.0
        %4433 = vmatpush1.msra.mxu0 0.0
        %4434 = vmatprep.subr.mxu0 0.0
        %4435 = vmatpush1.msra.mxu0 0.0
        %4436 = vmatprep.subr.mxu0 0.0
        %4437 = vmatpush1.msra.mxu0 0.0
        %4438 = vmatprep.subr.mxu0 0.0
        %4439 = vmatpush1.msra.mxu0 0.0
        %4440 = vmatprep.subr.mxu0 0.0
        %4441 = vmatpush1.msra.mxu0 0.0
        %4442 = vmatprep.subr.mxu0 0.0
        %4443 = vmatpush1.msra.mxu0 0.0
        %4444 = vmatprep.subr.mxu0 0.0
        %4445 = vmatpush1.msra.mxu0 0.0
        %4446 = vmatprep.subr.mxu0 0.0
        %4447 = vmatpush1.msra.mxu0 0.0
        %4448 = vmatprep.subr.mxu0 0.0
        %4449 = vmatpush1.msra.mxu0 0.0
        %4450 = vmatprep.subr.mxu0 0.0
        %4451 = vmatpush1.msra.mxu0 0.0
        %4452 = vmatprep.subr.mxu0 0.0
        %4453 = vmatpush1.msra.mxu0 0.0
        %4454 = vmatprep.subr.mxu0 0.0
        %4455 = vmatpush1.msra.mxu0 0.0
        %4456 = vmatprep.subr.mxu0 0.0
        %4457 = vmatpush1.msra.mxu0 0.0
        %4458 = vmatprep.subr.mxu0 0.0
        %4459 = vmatpush1.msra.mxu0 0.0
        %4460 = vmatprep.subr.mxu0 0.0
        %4461 = vmatpush1.msra.mxu0 0.0
        %4462 = vmatprep.subr.mxu0 0.0
        %4463 = vmatpush1.msra.mxu0 0.0
        %4464 = vmatprep.subr.mxu0 0.0
        %4465 = vmatpush1.msra.mxu0 0.0
        %4466 = vmatprep.subr.mxu0 0.0
        %4467 = vmatpush1.msra.mxu0 0.0
        %4468 = vmatprep.subr.mxu0 0.0
        %4469 = vmatpush1.msra.mxu0 0.0
        %4470 = vmatprep.subr.mxu0 0.0
        %4471 = vmatpush1.msra.mxu0 0.0
        %4472 = vmatprep.subr.mxu0 0.0
        %4473 = vmatpush1.msra.mxu0 0.0
        %4474 = vmatprep.subr.mxu0 0.0
        %4475 = vmatpush1.msra.mxu0 0.0
        %4476 = vmatprep.subr.mxu0 0.0
        %4477 = vmatpush1.msra.mxu0 0.0
        %4478 = vmatprep.subr.mxu0 0.0
        %4479 = vmatpush1.msra.mxu0 0.0
        %4480 = vmatprep.subr.mxu0 0.0
        %4481 = vmatpush1.msra.mxu0 0.0
        %4482 = vmatprep.subr.mxu0 0.0
        %4483 = vmatpush1.msra.mxu0 0.0
        %4484 = vmatprep.subr.mxu0 0.0
        %4485 = vmatpush1.msra.mxu0 0.0
        %4486 = vmatprep.mubr.f32.mxu0 0.0
        %4487 = vmatmul.mubr.f32.gmra.mrb[0].mxu0 %v4230
        %v4488 = vpop.f32.mrb[0].mxu0
        %v4489 = vadd.f32 0.0, %v4488
        %v4490 = vpop.f32.mrb[0].mxu0
        %4491 = vmatprep.mubr.f32.mxu0 0.0
        %4492 = vmatmul.mubr.f32.gmra.mrb[0].mxu0 %v4233
        %v4493 = vpop.f32.mrb[0].mxu0
        %v4494 = vadd.f32 0.0, %v4493
        %v4495 = vpop.f32.mrb[0].mxu0
        %4496 = vmatprep.mubr.f32.mxu0 0.0
        %4497 = vmatmul.mubr.f32.gmra.mrb[0].mxu0 %v4236
        %v4498 = vpop.f32.mrb[0].mxu0
        %v4499 = vadd.f32 0.0, %v4498
        %v4500 = vpop.f32.mrb[0].mxu0
        %4501 = vmatprep.mubr.f32.mxu0 0.0
        %4502 = vmatmul.mubr.f32.gmra.mrb[0].mxu0 %v4239
        %v4503 = vpop.f32.mrb[0].mxu0
        %v4504 = vadd.f32 0.0, %v4503
        %v4505 = vpop.f32.mrb[0].mxu0
        %4506 = vmatprep.mubr.f32.mxu0 0.0
        %4507 = vmatmul.mubr.f32.gmra.mrb[0].mxu0 %v4242
        %v4508 = vpop.f32.mrb[0].mxu0
        %v4509 = vadd.f32 0.0, %v4508
        %v4510 = vpop.f32.mrb[0].mxu0
        %4511 = vmatprep.mubr.f32.mxu0 0.0
        %4512 = vmatmul.mubr.f32.gmra.mrb[0].mxu0 %v4245
        %v4513 = vpop.f32.mrb[0].mxu0
        %v4514 = vadd.f32 0.0, %v4513
        %v4515 = vpop.f32.mrb[0].mxu0
        %4516 = vmatprep.mubr.f32.mxu0 0.0
        %4517 = vmatmul.mubr.f32.gmra.mrb[0].mxu0 %v4248
        %v4518 = vpop.f32.mrb[0].mxu0
        %v4519 = vadd.f32 0.0, %v4518
        %v4520 = vpop.f32.mrb[0].mxu0
        %4521 = vmatprep.mubr.f32.mxu0 0.0
        %4522 = vmatmul.mubr.f32.gmra.mrb[0].mxu0 %v4251
        %v4523 = vpop.f32.mrb[0].mxu0
        %v4524 = vadd.f32 0.0, %v4523
        %v4525 = vpop.f32.mrb[0].mxu0
        %4526 = vmatprep.mubr.f32.mxu0 0.0
        %4527 = vmatmul.mubr.f32.gmra.mrb[0].mxu0 %v4254
        %v4528 = vpop.f32.mrb[0].mxu0
        %v4529 = vadd.f32 0.0, %v4528
        %v4530 = vpop.f32.mrb[0].mxu0
        %4531 = vmatprep.mubr.f32.mxu0 0.0
        %4532 = vmatmul.mubr.f32.gmra.mrb[0].mxu0 %v4257
        %v4533 = vpop.f32.mrb[0].mxu0
        %v4534 = vadd.f32 0.0, %v4533
        %v4535 = vpop.f32.mrb[0].mxu0
        %4536 = vmatprep.mubr.f32.mxu0 0.0
        %4537 = vmatmul.mubr.f32.gmra.mrb[0].mxu0 %v4260
        %v4538 = vpop.f32.mrb[0].mxu0
        %v4539 = vadd.f32 0.0, %v4538
        %v4540 = vpop.f32.mrb[0].mxu0
        %4541 = vmatprep.mubr.f32.mxu0 0.0
        %4542 = vmatmul.mubr.f32.gmra.mrb[0].mxu0 %v4263
        %v4543 = vpop.f32.mrb[0].mxu0
        %v4544 = vadd.f32 0.0, %v4543
        %v4545 = vpop.f32.mrb[0].mxu0
        %4546 = vmatprep.mubr.f32.mxu0 0.0
        %4547 = vmatmul.mubr.f32.gmra.mrb[0].mxu0 %v4266
        %v4548 = vpop.f32.mrb[0].mxu0
        %v4549 = vadd.f32 0.0, %v4548
        %v4550 = vpop.f32.mrb[0].mxu0
        %4551 = vmatprep.mubr.f32.mxu0 0.0
        %4552 = vmatmul.mubr.f32.gmra.mrb[0].mxu0 %v4269
        %v4553 = vpop.f32.mrb[0].mxu0
        %v4554 = vadd.f32 0.0, %v4553
        %v4555 = vpop.f32.mrb[0].mxu0
        %4556 = vmatprep.mubr.f32.mxu0 0.0
        %4557 = vmatmul.mubr.f32.gmra.mrb[0].mxu0 %v4272
        %v4558 = vpop.f32.mrb[0].mxu0
        %v4559 = vadd.f32 0.0, %v4558
        %v4560 = vpop.f32.mrb[0].mxu0
        %4561 = vmatprep.mubr.f32.mxu0 0.0
        %4562 = vmatmul.mubr.f32.gmra.mrb[0].mxu0 %v4275
        %v4563 = vpop.f32.mrb[0].mxu0
        %v4564 = vadd.f32 0.0, %v4563
        %v4565 = vpop.f32.mrb[0].mxu0
        %4566 = vdwg.mxu0
        %v4567 = vsub.f32 %v4029, %v4344
        %v4568 = vsub.f32 %v4030, %v4349
        %v4569 = vsub.f32 %v4031, %v4354
        %v4570 = vsub.f32 %v4032, %v4359
        %v4571 = vsub.f32 %v4033, %v4364
        %v4572 = vsub.f32 %v4034, %v4369
        %v4573 = vsub.f32 %v4035, %v4374
        %v4574 = vsub.f32 %v4036, %v4379
        %v4575 = vsub.f32 %v4037, %v4384
        %v4576 = vsub.f32 %v4038, %v4389
        %v4577 = vsub.f32 %v4039, %v4394
        %v4578 = vsub.f32 %v4040, %v4399
        %v4579 = vsub.f32 %v4041, %v4404
        %v4580 = vsub.f32 %v4042, %v4409
        %v4581 = vsub.f32 %v4043, %v4414
        %v4582 = vsub.f32 %v4044, %v4419
        %v4583 = vmul.f32 %v4567, %v4489
        %v4584 = vmul.f32 %v4568, %v4494
        %v4585 = vmul.f32 %v4569, %v4499
        %v4586 = vmul.f32 %v4570, %v4504
        %v4587 = vmul.f32 %v4571, %v4509
        %v4588 = vmul.f32 %v4572, %v4514
        %v4589 = vmul.f32 %v4573, %v4519
        %v4590 = vmul.f32 %v4574, %v4524
        %v4591 = vmul.f32 %v4575, %v4529
        %v4592 = vmul.f32 %v4576, %v4534
        %v4593 = vmul.f32 %v4577, %v4539
        %v4594 = vmul.f32 %v4578, %v4544
        %v4595 = vmul.f32 %v4579, %v4549
        %v4596 = vmul.f32 %v4580, %v4554
        %v4597 = vmul.f32 %v4581, %v4559
        %v4598 = vmul.f32 %v4582, %v4564
        %v4599 = vld [vmem:[%s3] sm:$0xff]
        %v4600 = vld [vmem:[%s3 + $0x8] sm:$0xff]
        %v4601 = vld [vmem:[%s3 + $0x10] sm:$0xff]
        %v4602 = vld [vmem:[%s3 + $0x18] sm:$0xff]
        %v4603 = vld [vmem:[%s3 + $0x20] sm:$0xff]
        %v4604 = vld [vmem:[%s3 + $0x28] sm:$0xff]
        %v4605 = vld [vmem:[%s3 + $0x30] sm:$0xff]
        %v4606 = vld [vmem:[%s3 + $0x38] sm:$0xff]
        %v4607 = vld [vmem:[%s3 + $0x40] sm:$0xff]
        %v4608 = vld [vmem:[%s3 + $0x48] sm:$0xff]
        %v4609 = vld [vmem:[%s3 + $0x50] sm:$0xff]
        %v4610 = vld [vmem:[%s3 + $0x58] sm:$0xff]
        %v4611 = vld [vmem:[%s3 + $0x60] sm:$0xff]
        %v4612 = vld [vmem:[%s3 + $0x68] sm:$0xff]
        %v4613 = vld [vmem:[%s3 + $0x70] sm:$0xff]
        %v4614 = vld [vmem:[%s3 + $0x78] sm:$0xff]
        %4616 = vset.pattern.permute.xlu0 0
        %4617 = vperm.xlu0 %4616, %v4599
        %v4618 = vpop.permute.xlu0 %4617
        %4621 = vset.pattern.permute.xlu0 0
        %4622 = vperm.xlu0 %4621, %v4600
        %v4623 = vpop.permute.xlu0 %4622
        %4626 = vset.pattern.permute.xlu0 0
        %4627 = vperm.xlu0 %4626, %v4601
        %v4628 = vpop.permute.xlu0 %4627
        %4631 = vset.pattern.permute.xlu0 0
        %4632 = vperm.xlu0 %4631, %v4602
        %v4633 = vpop.permute.xlu0 %4632
        %4636 = vset.pattern.permute.xlu0 0
        %4637 = vperm.xlu0 %4636, %v4603
        %v4638 = vpop.permute.xlu0 %4637
        %4641 = vset.pattern.permute.xlu0 0
        %4642 = vperm.xlu0 %4641, %v4604
        %v4643 = vpop.permute.xlu0 %4642
        %4646 = vset.pattern.permute.xlu0 0
        %4647 = vperm.xlu0 %4646, %v4605
        %v4648 = vpop.permute.xlu0 %4647
        %4651 = vset.pattern.permute.xlu0 0
        %4652 = vperm.xlu0 %4651, %v4606
        %v4653 = vpop.permute.xlu0 %4652
        %4656 = vset.pattern.permute.xlu0 0
        %4657 = vperm.xlu0 %4656, %v4607
        %v4658 = vpop.permute.xlu0 %4657
        %4661 = vset.pattern.permute.xlu0 0
        %4662 = vperm.xlu0 %4661, %v4608
        %v4663 = vpop.permute.xlu0 %4662
        %4666 = vset.pattern.permute.xlu0 0
        %4667 = vperm.xlu0 %4666, %v4609
        %v4668 = vpop.permute.xlu0 %4667
        %4671 = vset.pattern.permute.xlu0 0
        %4672 = vperm.xlu0 %4671, %v4610
        %v4673 = vpop.permute.xlu0 %4672
        %4676 = vset.pattern.permute.xlu0 0
        %4677 = vperm.xlu0 %4676, %v4611
        %v4678 = vpop.permute.xlu0 %4677
        %4681 = vset.pattern.permute.xlu0 0
        %4682 = vperm.xlu0 %4681, %v4612
        %v4683 = vpop.permute.xlu0 %4682
        %4686 = vset.pattern.permute.xlu0 0
        %4687 = vperm.xlu0 %4686, %v4613
        %v4688 = vpop.permute.xlu0 %4687
        %4691 = vset.pattern.permute.xlu0 0
        %4692 = vperm.xlu0 %4691, %v4614
        %v4693 = vpop.permute.xlu0 %4692
        %v4695 = vmul.f32 %v4583, %v4618
        %v4696 = vmul.f32 %v4584, %v4623
        %v4697 = vmul.f32 %v4585, %v4628
        %v4698 = vmul.f32 %v4586, %v4633
        %v4699 = vmul.f32 %v4587, %v4638
        %v4700 = vmul.f32 %v4588, %v4643
        %v4701 = vmul.f32 %v4589, %v4648
        %v4702 = vmul.f32 %v4590, %v4653
        %v4703 = vmul.f32 %v4591, %v4658
        %v4704 = vmul.f32 %v4592, %v4663
        %v4705 = vmul.f32 %v4593, %v4668
        %v4706 = vmul.f32 %v4594, %v4673
        %v4707 = vmul.f32 %v4595, %v4678
        %v4708 = vmul.f32 %v4596, %v4683
        %v4709 = vmul.f32 %v4597, %v4688
        %v4710 = vmul.f32 %v4598, %v4693
        %v4711 = vld [vmem:[%s4] sm:$0xff]
        %v4712 = vld [vmem:[%s4 + $0x8] sm:$0xff]
        %v4713 = vld [vmem:[%s4 + $0x10] sm:$0xff]
        %v4714 = vld [vmem:[%s4 + $0x18] sm:$0xff]
        %v4715 = vld [vmem:[%s4 + $0x20] sm:$0xff]
        %v4716 = vld [vmem:[%s4 + $0x28] sm:$0xff]
        %v4717 = vld [vmem:[%s4 + $0x30] sm:$0xff]
        %v4718 = vld [vmem:[%s4 + $0x38] sm:$0xff]
        %v4719 = vld [vmem:[%s4 + $0x40] sm:$0xff]
        %v4720 = vld [vmem:[%s4 + $0x48] sm:$0xff]
        %v4721 = vld [vmem:[%s4 + $0x50] sm:$0xff]
        %v4722 = vld [vmem:[%s4 + $0x58] sm:$0xff]
        %v4723 = vld [vmem:[%s4 + $0x60] sm:$0xff]
        %v4724 = vld [vmem:[%s4 + $0x68] sm:$0xff]
        %v4725 = vld [vmem:[%s4 + $0x70] sm:$0xff]
        %v4726 = vld [vmem:[%s4 + $0x78] sm:$0xff]
        %4728 = vset.pattern.permute.xlu0 0
        %4729 = vperm.xlu0 %4728, %v4711
        %v4730 = vpop.permute.xlu0 %4729
        %4733 = vset.pattern.permute.xlu0 0
        %4734 = vperm.xlu0 %4733, %v4712
        %v4735 = vpop.permute.xlu0 %4734
        %4738 = vset.pattern.permute.xlu0 0
        %4739 = vperm.xlu0 %4738, %v4713
        %v4740 = vpop.permute.xlu0 %4739
        %4743 = vset.pattern.permute.xlu0 0
        %4744 = vperm.xlu0 %4743, %v4714
        %v4745 = vpop.permute.xlu0 %4744
        %4748 = vset.pattern.permute.xlu0 0
        %4749 = vperm.xlu0 %4748, %v4715
        %v4750 = vpop.permute.xlu0 %4749
        %4753 = vset.pattern.permute.xlu0 0
        %4754 = vperm.xlu0 %4753, %v4716
        %v4755 = vpop.permute.xlu0 %4754
        %4758 = vset.pattern.permute.xlu0 0
        %4759 = vperm.xlu0 %4758, %v4717
        %v4760 = vpop.permute.xlu0 %4759
        %4763 = vset.pattern.permute.xlu0 0
        %4764 = vperm.xlu0 %4763, %v4718
        %v4765 = vpop.permute.xlu0 %4764
        %4768 = vset.pattern.permute.xlu0 0
        %4769 = vperm.xlu0 %4768, %v4719
        %v4770 = vpop.permute.xlu0 %4769
        %4773 = vset.pattern.permute.xlu0 0
        %4774 = vperm.xlu0 %4773, %v4720
        %v4775 = vpop.permute.xlu0 %4774
        %4778 = vset.pattern.permute.xlu0 0
        %4779 = vperm.xlu0 %4778, %v4721
        %v4780 = vpop.permute.xlu0 %4779
        %4783 = vset.pattern.permute.xlu0 0
        %4784 = vperm.xlu0 %4783, %v4722
        %v4785 = vpop.permute.xlu0 %4784
        %4788 = vset.pattern.permute.xlu0 0
        %4789 = vperm.xlu0 %4788, %v4723
        %v4790 = vpop.permute.xlu0 %4789
        %4793 = vset.pattern.permute.xlu0 0
        %4794 = vperm.xlu0 %4793, %v4724
        %v4795 = vpop.permute.xlu0 %4794
        %4798 = vset.pattern.permute.xlu0 0
        %4799 = vperm.xlu0 %4798, %v4725
        %v4800 = vpop.permute.xlu0 %4799
        %4803 = vset.pattern.permute.xlu0 0
        %4804 = vperm.xlu0 %4803, %v4726
        %v4805 = vpop.permute.xlu0 %4804
        %v4807 = vadd.f32 %v4695, %v4730
        %v4808 = vadd.f32 %v4696, %v4735
        %v4809 = vadd.f32 %v4697, %v4740
        %v4810 = vadd.f32 %v4698, %v4745
        %v4811 = vadd.f32 %v4699, %v4750
        %v4812 = vadd.f32 %v4700, %v4755
        %v4813 = vadd.f32 %v4701, %v4760
        %v4814 = vadd.f32 %v4702, %v4765
        %v4815 = vadd.f32 %v4703, %v4770
        %v4816 = vadd.f32 %v4704, %v4775
        %v4817 = vadd.f32 %v4705, %v4780
        %v4818 = vadd.f32 %v4706, %v4785
        %v4819 = vadd.f32 %v4707, %v4790
        %v4820 = vadd.f32 %v4708, %v4795
        %v4821 = vadd.f32 %v4709, %v4800
        %v4822 = vadd.f32 %v4710, %v4805
        %4823 = vadd.xlane.f32.xlu0 %v4807
        %v4824 = vpop.xlane.xlu0 %4823
        %4825 = vadd.xlane.f32.xlu0 %v4808
        %v4826 = vpop.xlane.xlu0 %4825
        %4827 = vadd.xlane.f32.xlu0 %v4809
        %v4828 = vpop.xlane.xlu0 %4827
        %4829 = vadd.xlane.f32.xlu0 %v4810
        %v4830 = vpop.xlane.xlu0 %4829
        %4831 = vadd.xlane.f32.xlu0 %v4811
        %v4832 = vpop.xlane.xlu0 %4831
        %4833 = vadd.xlane.f32.xlu0 %v4812
        %v4834 = vpop.xlane.xlu0 %4833
        %4835 = vadd.xlane.f32.xlu0 %v4813
        %v4836 = vpop.xlane.xlu0 %4835
        %4837 = vadd.xlane.f32.xlu0 %v4814
        %v4838 = vpop.xlane.xlu0 %4837
        %4839 = vadd.xlane.f32.xlu0 %v4815
        %v4840 = vpop.xlane.xlu0 %4839
        %4841 = vadd.xlane.f32.xlu0 %v4816
        %v4842 = vpop.xlane.xlu0 %4841
        %4843 = vadd.xlane.f32.xlu0 %v4817
        %v4844 = vpop.xlane.xlu0 %4843
        %4845 = vadd.xlane.f32.xlu0 %v4818
        %v4846 = vpop.xlane.xlu0 %4845
        %4847 = vadd.xlane.f32.xlu0 %v4819
        %v4848 = vpop.xlane.xlu0 %4847
        %4849 = vadd.xlane.f32.xlu0 %v4820
        %v4850 = vpop.xlane.xlu0 %4849
        %4851 = vadd.xlane.f32.xlu0 %v4821
        %v4852 = vpop.xlane.xlu0 %4851
        %4853 = vadd.xlane.f32.xlu0 %v4822
        %v4854 = vpop.xlane.xlu0 %4853
        %v4855 = vmul.f32 %v4824, 0.0078125
        %v4856 = vmul.f32 %v4826, 0.0078125
        %v4857 = vmul.f32 %v4828, 0.0078125
        %v4858 = vmul.f32 %v4830, 0.0078125
        %v4859 = vmul.f32 %v4832, 0.0078125
        %v4860 = vmul.f32 %v4834, 0.0078125
        %v4861 = vmul.f32 %v4836, 0.0078125
        %v4862 = vmul.f32 %v4838, 0.0078125
        %v4863 = vmul.f32 %v4840, 0.0078125
        %v4864 = vmul.f32 %v4842, 0.0078125
        %v4865 = vmul.f32 %v4844, 0.0078125
        %v4866 = vmul.f32 %v4846, 0.0078125
        %v4867 = vmul.f32 %v4848, 0.0078125
        %v4868 = vmul.f32 %v4850, 0.0078125
        %v4869 = vmul.f32 %v4852, 0.0078125
        %v4870 = vmul.f32 %v4854, 0.0078125
        %v4871 = vld [vmem:[%s7] sm:$0xff]
        %v4872 = vld [vmem:[%s8] sm:$0xff]
        %4874 = vset.pattern.permute.xlu0 0
        %4875 = vperm.xlu0 %4874, %v4872
        %v4876 = vpop.permute.xlu0 %4875
        %4878 = vmatprep.subr.mxu0 0.0
        %4879 = vmatpush1.msra.mxu0 %v4855
        %4880 = vmatprep.subr.mxu0 0.0
        %4881 = vmatpush1.msra.mxu0 %v4856
        %4882 = vmatprep.subr.mxu0 0.0
        %4883 = vmatpush1.msra.mxu0 %v4857
        %4884 = vmatprep.subr.mxu0 0.0
        %4885 = vmatpush1.msra.mxu0 %v4858
        %4886 = vmatprep.subr.mxu0 0.0
        %4887 = vmatpush1.msra.mxu0 %v4859
        %4888 = vmatprep.subr.mxu0 0.0
        %4889 = vmatpush1.msra.mxu0 %v4860
        %4890 = vmatprep.subr.mxu0 0.0
        %4891 = vmatpush1.msra.mxu0 %v4861
        %4892 = vmatprep.subr.mxu0 0.0
        %4893 = vmatpush1.msra.mxu0 %v4862
        %4894 = vmatprep.subr.mxu0 0.0
        %4895 = vmatpush1.msra.mxu0 %v4863
        %4896 = vmatprep.subr.mxu0 0.0
        %4897 = vmatpush1.msra.mxu0 %v4864
        %4898 = vmatprep.subr.mxu0 0.0
        %4899 = vmatpush1.msra.mxu0 %v4865
        %4900 = vmatprep.subr.mxu0 0.0
        %4901 = vmatpush1.msra.mxu0 %v4866
        %4902 = vmatprep.subr.mxu0 0.0
        %4903 = vmatpush1.msra.mxu0 %v4867
        %4904 = vmatprep.subr.mxu0 0.0
        %4905 = vmatpush1.msra.mxu0 %v4868
        %4906 = vmatprep.subr.mxu0 0.0
        %4907 = vmatpush1.msra.mxu0 %v4869
        %4908 = vmatprep.subr.mxu0 0.0
        %4909 = vmatpush1.msra.mxu0 %v4870
        %4910 = vmatprep.subr.mxu0 0.0
        %4911 = vmatpush1.msra.mxu0 0.0
        %4912 = vmatprep.subr.mxu0 0.0
        %4913 = vmatpush1.msra.mxu0 0.0
        %4914 = vmatprep.subr.mxu0 0.0
        %4915 = vmatpush1.msra.mxu0 0.0
        %4916 = vmatprep.subr.mxu0 0.0
        %4917 = vmatpush1.msra.mxu0 0.0
        %4918 = vmatprep.subr.mxu0 0.0
        %4919 = vmatpush1.msra.mxu0 0.0
        %4920 = vmatprep.subr.mxu0 0.0
        %4921 = vmatpush1.msra.mxu0 0.0
        %4922 = vmatprep.subr.mxu0 0.0
        %4923 = vmatpush1.msra.mxu0 0.0
        %4924 = vmatprep.subr.mxu0 0.0
        %4925 = vmatpush1.msra.mxu0 0.0
        %4926 = vmatprep.subr.mxu0 0.0
        %4927 = vmatpush1.msra.mxu0 0.0
        %4928 = vmatprep.subr.mxu0 0.0
        %4929 = vmatpush1.msra.mxu0 0.0
        %4930 = vmatprep.subr.mxu0 0.0
        %4931 = vmatpush1.msra.mxu0 0.0
        %4932 = vmatprep.subr.mxu0 0.0
        %4933 = vmatpush1.msra.mxu0 0.0
        %4934 = vmatprep.subr.mxu0 0.0
        %4935 = vmatpush1.msra.mxu0 0.0
        %4936 = vmatprep.subr.mxu0 0.0
        %4937 = vmatpush1.msra.mxu0 0.0
        %4938 = vmatprep.subr.mxu0 0.0
        %4939 = vmatpush1.msra.mxu0 0.0
        %4940 = vmatprep.subr.mxu0 0.0
        %4941 = vmatpush1.msra.mxu0 0.0
        %4942 = vmatprep.mubr.f32.mxu0 0.0
        %4943 = vmatmul.mubr.f32.gmra.mrb[0].mxu0 %v4871
        %v4944 = vpop.f32.mrb[0].mxu0
        %v4945 = vadd.f32 %v4876, %v4944
        %v4946 = vpop.f32.mrb[0].mxu0
        %4947 = vdwg.mxu0
        %v4948 = vmax.f32 %v4945, 0.0
        %v4949 = vld [vmem:[%s9] sm:$0xff]
        %v4950 = vld [vmem:[%s9 + $0x8] sm:$0xff]
        %v4951 = vld [vmem:[%s9 + $0x10] sm:$0xff]
        %v4952 = vld [vmem:[%s9 + $0x18] sm:$0xff]
        %v4953 = vld [vmem:[%s9 + $0x20] sm:$0xff]
        %v4954 = vld [vmem:[%s9 + $0x28] sm:$0xff]
        %v4955 = vld [vmem:[%s9 + $0x30] sm:$0xff]
        %v4956 = vld [vmem:[%s9 + $0x38] sm:$0xff]
        %v4957 = vld [vmem:[%s9 + $0x40] sm:$0xff]
        %v4958 = vld [vmem:[%s9 + $0x48] sm:$0xff]
        %v4959 = vld [vmem:[%s9 + $0x50] sm:$0xff]
        %v4960 = vld [vmem:[%s9 + $0x58] sm:$0xff]
        %v4961 = vld [vmem:[%s9 + $0x60] sm:$0xff]
        %v4962 = vld [vmem:[%s9 + $0x68] sm:$0xff]
        %v4963 = vld [vmem:[%s9 + $0x70] sm:$0xff]
        %v4964 = vld [vmem:[%s9 + $0x78] sm:$0xff]
        %v4965 = vld [vmem:[%s10] sm:$0xff]
        %v4966 = vld [vmem:[%s10 + $0x8] sm:$0xff]
        %v4967 = vld [vmem:[%s10 + $0x10] sm:$0xff]
        %v4968 = vld [vmem:[%s10 + $0x18] sm:$0xff]
        %v4969 = vld [vmem:[%s10 + $0x20] sm:$0xff]
        %v4970 = vld [vmem:[%s10 + $0x28] sm:$0xff]
        %v4971 = vld [vmem:[%s10 + $0x30] sm:$0xff]
        %v4972 = vld [vmem:[%s10 + $0x38] sm:$0xff]
        %v4973 = vld [vmem:[%s10 + $0x40] sm:$0xff]
        %v4974 = vld [vmem:[%s10 + $0x48] sm:$0xff]
        %v4975 = vld [vmem:[%s10 + $0x50] sm:$0xff]
        %v4976 = vld [vmem:[%s10 + $0x58] sm:$0xff]
        %v4977 = vld [vmem:[%s10 + $0x60] sm:$0xff]
        %v4978 = vld [vmem:[%s10 + $0x68] sm:$0xff]
        %v4979 = vld [vmem:[%s10 + $0x70] sm:$0xff]
        %v4980 = vld [vmem:[%s10 + $0x78] sm:$0xff]
        %4982 = vset.pattern.permute.xlu0 0
        %4983 = vperm.xlu0 %4982, %v4965
        %v4984 = vpop.permute.xlu0 %4983
        %4987 = vset.pattern.permute.xlu0 0
        %4988 = vperm.xlu0 %4987, %v4966
        %v4989 = vpop.permute.xlu0 %4988
        %4992 = vset.pattern.permute.xlu0 0
        %4993 = vperm.xlu0 %4992, %v4967
        %v4994 = vpop.permute.xlu0 %4993
        %4997 = vset.pattern.permute.xlu0 0
        %4998 = vperm.xlu0 %4997, %v4968
        %v4999 = vpop.permute.xlu0 %4998
        %5002 = vset.pattern.permute.xlu0 0
        %5003 = vperm.xlu0 %5002, %v4969
        %v5004 = vpop.permute.xlu0 %5003
        %5007 = vset.pattern.permute.xlu0 0
        %5008 = vperm.xlu0 %5007, %v4970
        %v5009 = vpop.permute.xlu0 %5008
        %5012 = vset.pattern.permute.xlu0 0
        %5013 = vperm.xlu0 %5012, %v4971
        %v5014 = vpop.permute.xlu0 %5013
        %5017 = vset.pattern.permute.xlu0 0
        %5018 = vperm.xlu0 %5017, %v4972
        %v5019 = vpop.permute.xlu0 %5018
        %5022 = vset.pattern.permute.xlu0 0
        %5023 = vperm.xlu0 %5022, %v4973
        %v5024 = vpop.permute.xlu0 %5023
        %5027 = vset.pattern.permute.xlu0 0
        %5028 = vperm.xlu0 %5027, %v4974
        %v5029 = vpop.permute.xlu0 %5028
        %5032 = vset.pattern.permute.xlu0 0
        %5033 = vperm.xlu0 %5032, %v4975
        %v5034 = vpop.permute.xlu0 %5033
        %5037 = vset.pattern.permute.xlu0 0
        %5038 = vperm.xlu0 %5037, %v4976
        %v5039 = vpop.permute.xlu0 %5038
        %5042 = vset.pattern.permute.xlu0 0
        %5043 = vperm.xlu0 %5042, %v4977
        %v5044 = vpop.permute.xlu0 %5043
        %5047 = vset.pattern.permute.xlu0 0
        %5048 = vperm.xlu0 %5047, %v4978
        %v5049 = vpop.permute.xlu0 %5048
        %5052 = vset.pattern.permute.xlu0 0
        %5053 = vperm.xlu0 %5052, %v4979
        %v5054 = vpop.permute.xlu0 %5053
        %5057 = vset.pattern.permute.xlu0 0
        %5058 = vperm.xlu0 %5057, %v4980
        %v5059 = vpop.permute.xlu0 %5058
        %v5062 = vsel %vm4228, %v4949, 0
        %v5065 = vsel %vm4228, %v4950, 0
        %v5068 = vsel %vm4228, %v4951, 0
        %v5071 = vsel %vm4228, %v4952, 0
        %v5074 = vsel %vm4228, %v4953, 0
        %v5077 = vsel %vm4228, %v4954, 0
        %v5080 = vsel %vm4228, %v4955, 0
        %v5083 = vsel %vm4228, %v4956, 0
        %v5086 = vsel %vm4228, %v4957, 0
        %v5089 = vsel %vm4228, %v4958, 0
        %v5092 = vsel %vm4228, %v4959, 0
        %v5095 = vsel %vm4228, %v4960, 0
        %v5098 = vsel %vm4228, %v4961, 0
        %v5101 = vsel %vm4228, %v4962, 0
        %v5104 = vsel %vm4228, %v4963, 0
        %v5107 = vsel %vm4228, %v4964, 0
        %5109 = vmatprep.subr.mxu0 0.0
        %5110 = vmatpush1.msra.mxu0 %v4948
        %5111 = vmatprep.subr.mxu0 0.0
        %5112 = vmatpush1.msra.mxu0 0.0
        %5113 = vmatprep.subr.mxu0 0.0
        %5114 = vmatpush1.msra.mxu0 0.0
        %5115 = vmatprep.subr.mxu0 0.0
        %5116 = vmatpush1.msra.mxu0 0.0
        %5117 = vmatprep.subr.mxu0 0.0
        %5118 = vmatpush1.msra.mxu0 0.0
        %5119 = vmatprep.subr.mxu0 0.0
        %5120 = vmatpush1.msra.mxu0 0.0
        %5121 = vmatprep.subr.mxu0 0.0
        %5122 = vmatpush1.msra.mxu0 0.0
        %5123 = vmatprep.subr.mxu0 0.0
        %5124 = vmatpush1.msra.mxu0 0.0
        %5125 = vmatprep.subr.mxu0 0.0
        %5126 = vmatpush1.msra.mxu0 0.0
        %5127 = vmatprep.subr.mxu0 0.0
        %5128 = vmatpush1.msra.mxu0 0.0
        %5129 = vmatprep.subr.mxu0 0.0
        %5130 = vmatpush1.msra.mxu0 0.0
        %5131 = vmatprep.subr.mxu0 0.0
        %5132 = vmatpush1.msra.mxu0 0.0
        %5133 = vmatprep.subr.mxu0 0.0
        %5134 = vmatpush1.msra.mxu0 0.0
        %5135 = vmatprep.subr.mxu0 0.0
        %5136 = vmatpush1.msra.mxu0 0.0
        %5137 = vmatprep.subr.mxu0 0.0
        %5138 = vmatpush1.msra.mxu0 0.0
        %5139 = vmatprep.subr.mxu0 0.0
        %5140 = vmatpush1.msra.mxu0 0.0
        %5141 = vmatprep.subr.mxu0 0.0
        %5142 = vmatpush1.msra.mxu0 0.0
        %5143 = vmatprep.subr.mxu0 0.0
        %5144 = vmatpush1.msra.mxu0 0.0
        %5145 = vmatprep.subr.mxu0 0.0
        %5146 = vmatpush1.msra.mxu0 0.0
        %5147 = vmatprep.subr.mxu0 0.0
        %5148 = vmatpush1.msra.mxu0 0.0
        %5149 = vmatprep.subr.mxu0 0.0
        %5150 = vmatpush1.msra.mxu0 0.0
        %5151 = vmatprep.subr.mxu0 0.0
        %5152 = vmatpush1.msra.mxu0 0.0
        %5153 = vmatprep.subr.mxu0 0.0
        %5154 = vmatpush1.msra.mxu0 0.0
        %5155 = vmatprep.subr.mxu0 0.0
        %5156 = vmatpush1.msra.mxu0 0.0
        %5157 = vmatprep.subr.mxu0 0.0
        %5158 = vmatpush1.msra.mxu0 0.0
        %5159 = vmatprep.subr.mxu0 0.0
        %5160 = vmatpush1.msra.mxu0 0.0
        %5161 = vmatprep.subr.mxu0 0.0
        %5162 = vmatpush1.msra.mxu0 0.0
        %5163 = vmatprep.subr.mxu0 0.0
        %5164 = vmatpush1.msra.mxu0 0.0
        %5165 = vmatprep.subr.mxu0 0.0
        %5166 = vmatpush1.msra.mxu0 0.0
        %5167 = vmatprep.subr.mxu0 0.0
        %5168 = vmatpush1.msra.mxu0 0.0
        %5169 = vmatprep.subr.mxu0 0.0
        %5170 = vmatpush1.msra.mxu0 0.0
        %5171 = vmatprep.subr.mxu0 0.0
        %5172 = vmatpush1.msra.mxu0 0.0
        %5173 = vmatprep.mubr.f32.mxu0 0.0
        %5174 = vmatmul.mubr.f32.gmra.mrb[0].mxu0 %v5062
        %v5175 = vpop.f32.mrb[0].mxu0
        %v5176 = vadd.f32 %v4984, %v5175
        %v5177 = vpop.f32.mrb[0].mxu0
        %5178 = vmatprep.mubr.f32.mxu0 0.0
        %5179 = vmatmul.mubr.f32.gmra.mrb[0].mxu0 %v5065
        %v5180 = vpop.f32.mrb[0].mxu0
        %v5181 = vadd.f32 %v4989, %v5180
        %v5182 = vpop.f32.mrb[0].mxu0
        %5183 = vmatprep.mubr.f32.mxu0 0.0
        %5184 = vmatmul.mubr.f32.gmra.mrb[0].mxu0 %v5068
        %v5185 = vpop.f32.mrb[0].mxu0
        %v5186 = vadd.f32 %v4994, %v5185
        %v5187 = vpop.f32.mrb[0].mxu0
        %5188 = vmatprep.mubr.f32.mxu0 0.0
        %5189 = vmatmul.mubr.f32.gmra.mrb[0].mxu0 %v5071
        %v5190 = vpop.f32.mrb[0].mxu0
        %v5191 = vadd.f32 %v4999, %v5190
        %v5192 = vpop.f32.mrb[0].mxu0
        %5193 = vmatprep.mubr.f32.mxu0 0.0
        %5194 = vmatmul.mubr.f32.gmra.mrb[0].mxu0 %v5074
        %v5195 = vpop.f32.mrb[0].mxu0
        %v5196 = vadd.f32 %v5004, %v5195
        %v5197 = vpop.f32.mrb[0].mxu0
        %5198 = vmatprep.mubr.f32.mxu0 0.0
        %5199 = vmatmul.mubr.f32.gmra.mrb[0].mxu0 %v5077
        %v5200 = vpop.f32.mrb[0].mxu0
        %v5201 = vadd.f32 %v5009, %v5200
        %v5202 = vpop.f32.mrb[0].mxu0
        %5203 = vmatprep.mubr.f32.mxu0 0.0
        %5204 = vmatmul.mubr.f32.gmra.mrb[0].mxu0 %v5080
        %v5205 = vpop.f32.mrb[0].mxu0
        %v5206 = vadd.f32 %v5014, %v5205
        %v5207 = vpop.f32.mrb[0].mxu0
        %5208 = vmatprep.mubr.f32.mxu0 0.0
        %5209 = vmatmul.mubr.f32.gmra.mrb[0].mxu0 %v5083
        %v5210 = vpop.f32.mrb[0].mxu0
        %v5211 = vadd.f32 %v5019, %v5210
        %v5212 = vpop.f32.mrb[0].mxu0
        %5213 = vmatprep.mubr.f32.mxu0 0.0
        %5214 = vmatmul.mubr.f32.gmra.mrb[0].mxu0 %v5086
        %v5215 = vpop.f32.mrb[0].mxu0
        %v5216 = vadd.f32 %v5024, %v5215
        %v5217 = vpop.f32.mrb[0].mxu0
        %5218 = vmatprep.mubr.f32.mxu0 0.0
        %5219 = vmatmul.mubr.f32.gmra.mrb[0].mxu0 %v5089
        %v5220 = vpop.f32.mrb[0].mxu0
        %v5221 = vadd.f32 %v5029, %v5220
        %v5222 = vpop.f32.mrb[0].mxu0
        %5223 = vmatprep.mubr.f32.mxu0 0.0
        %5224 = vmatmul.mubr.f32.gmra.mrb[0].mxu0 %v5092
        %v5225 = vpop.f32.mrb[0].mxu0
        %v5226 = vadd.f32 %v5034, %v5225
        %v5227 = vpop.f32.mrb[0].mxu0
        %5228 = vmatprep.mubr.f32.mxu0 0.0
        %5229 = vmatmul.mubr.f32.gmra.mrb[0].mxu0 %v5095
        %v5230 = vpop.f32.mrb[0].mxu0
        %v5231 = vadd.f32 %v5039, %v5230
        %v5232 = vpop.f32.mrb[0].mxu0
        %5233 = vmatprep.mubr.f32.mxu0 0.0
        %5234 = vmatmul.mubr.f32.gmra.mrb[0].mxu0 %v5098
        %v5235 = vpop.f32.mrb[0].mxu0
        %v5236 = vadd.f32 %v5044, %v5235
        %v5237 = vpop.f32.mrb[0].mxu0
        %5238 = vmatprep.mubr.f32.mxu0 0.0
        %5239 = vmatmul.mubr.f32.gmra.mrb[0].mxu0 %v5101
        %v5240 = vpop.f32.mrb[0].mxu0
        %v5241 = vadd.f32 %v5049, %v5240
        %v5242 = vpop.f32.mrb[0].mxu0
        %5243 = vmatprep.mubr.f32.mxu0 0.0
        %5244 = vmatmul.mubr.f32.gmra.mrb[0].mxu0 %v5104
        %v5245 = vpop.f32.mrb[0].mxu0
        %v5246 = vadd.f32 %v5054, %v5245
        %v5247 = vpop.f32.mrb[0].mxu0
        %5248 = vmatprep.mubr.f32.mxu0 0.0
        %5249 = vmatmul.mubr.f32.gmra.mrb[0].mxu0 %v5107
        %v5250 = vpop.f32.mrb[0].mxu0
        %v5251 = vadd.f32 %v5059, %v5250
        %v5252 = vpop.f32.mrb[0].mxu0
        %5253 = vdwg.mxu0
        %v5254 = vxor.u32 %v5176, 2147483648
        %v5255 = vxor.u32 %v5181, 2147483648
        %v5256 = vxor.u32 %v5186, 2147483648
        %v5257 = vxor.u32 %v5191, 2147483648
        %v5258 = vxor.u32 %v5196, 2147483648
        %v5259 = vxor.u32 %v5201, 2147483648
        %v5260 = vxor.u32 %v5206, 2147483648
        %v5261 = vxor.u32 %v5211, 2147483648
        %v5262 = vxor.u32 %v5216, 2147483648
        %v5263 = vxor.u32 %v5221, 2147483648
        %v5264 = vxor.u32 %v5226, 2147483648
        %v5265 = vxor.u32 %v5231, 2147483648
        %v5266 = vxor.u32 %v5236, 2147483648
        %v5267 = vxor.u32 %v5241, 2147483648
        %v5268 = vxor.u32 %v5246, 2147483648
        %v5269 = vxor.u32 %v5251, 2147483648
        %v5270 = vmul.f32 %v5254, 1.442695
        %v5271 = vpow.pop %v5270
        %v5272 = vmul.f32 %v5255, 1.442695
        %v5273 = vpow.pop %v5272
        %v5274 = vmul.f32 %v5256, 1.442695
        %v5275 = vpow.pop %v5274
        %v5276 = vmul.f32 %v5257, 1.442695
        %v5277 = vpow.pop %v5276
        %v5278 = vmul.f32 %v5258, 1.442695
        %v5279 = vpow.pop %v5278
        %v5280 = vmul.f32 %v5259, 1.442695
        %v5281 = vpow.pop %v5280
        %v5282 = vmul.f32 %v5260, 1.442695
        %v5283 = vpow.pop %v5282
        %v5284 = vmul.f32 %v5261, 1.442695
        %v5285 = vpow.pop %v5284
        %v5286 = vmul.f32 %v5262, 1.442695
        %v5287 = vpow.pop %v5286
        %v5288 = vmul.f32 %v5263, 1.442695
        %v5289 = vpow.pop %v5288
        %v5290 = vmul.f32 %v5264, 1.442695
        %v5291 = vpow.pop %v5290
        %v5292 = vmul.f32 %v5265, 1.442695
        %v5293 = vpow.pop %v5292
        %v5294 = vmul.f32 %v5266, 1.442695
        %v5295 = vpow.pop %v5294
        %v5296 = vmul.f32 %v5267, 1.442695
        %v5297 = vpow.pop %v5296
        %v5298 = vmul.f32 %v5268, 1.442695
        %v5299 = vpow.pop %v5298
        %v5300 = vmul.f32 %v5269, 1.442695
        %v5301 = vpow.pop %v5300
        %v5302 = vadd.f32 %v5271, 1.0
        %v5303 = vadd.f32 %v5273, 1.0
        %v5304 = vadd.f32 %v5275, 1.0
        %v5305 = vadd.f32 %v5277, 1.0
        %v5306 = vadd.f32 %v5279, 1.0
        %v5307 = vadd.f32 %v5281, 1.0
        %v5308 = vadd.f32 %v5283, 1.0
        %v5309 = vadd.f32 %v5285, 1.0
        %v5310 = vadd.f32 %v5287, 1.0
        %v5311 = vadd.f32 %v5289, 1.0
        %v5312 = vadd.f32 %v5291, 1.0
        %v5313 = vadd.f32 %v5293, 1.0
        %v5314 = vadd.f32 %v5295, 1.0
        %v5315 = vadd.f32 %v5297, 1.0
        %v5316 = vadd.f32 %v5299, 1.0
        %v5317 = vadd.f32 %v5301, 1.0
        %v5318 = vrcp.pop %v5302
        %v5319 = vmul.f32 1.0, %v5318
        %v5320 = vrcp.pop %v5303
        %v5321 = vmul.f32 1.0, %v5320
        %v5322 = vrcp.pop %v5304
        %v5323 = vmul.f32 1.0, %v5322
        %v5324 = vrcp.pop %v5305
        %v5325 = vmul.f32 1.0, %v5324
        %v5326 = vrcp.pop %v5306
        %v5327 = vmul.f32 1.0, %v5326
        %v5328 = vrcp.pop %v5307
        %v5329 = vmul.f32 1.0, %v5328
        %v5330 = vrcp.pop %v5308
        %v5331 = vmul.f32 1.0, %v5330
        %v5332 = vrcp.pop %v5309
        %v5333 = vmul.f32 1.0, %v5332
        %v5334 = vrcp.pop %v5310
        %v5335 = vmul.f32 1.0, %v5334
        %v5336 = vrcp.pop %v5311
        %v5337 = vmul.f32 1.0, %v5336
        %v5338 = vrcp.pop %v5312
        %v5339 = vmul.f32 1.0, %v5338
        %v5340 = vrcp.pop %v5313
        %v5341 = vmul.f32 1.0, %v5340
        %v5342 = vrcp.pop %v5314
        %v5343 = vmul.f32 1.0, %v5342
        %v5344 = vrcp.pop %v5315
        %v5345 = vmul.f32 1.0, %v5344
        %v5346 = vrcp.pop %v5316
        %v5347 = vmul.f32 1.0, %v5346
        %v5348 = vrcp.pop %v5317
        %v5349 = vmul.f32 1.0, %v5348
        %v5350 = vmul.f32 %v4807, %v5319
        %v5351 = vmul.f32 %v4808, %v5321
        %v5352 = vmul.f32 %v4809, %v5323
        %v5353 = vmul.f32 %v4810, %v5325
        %v5354 = vmul.f32 %v4811, %v5327
        %v5355 = vmul.f32 %v4812, %v5329
        %v5356 = vmul.f32 %v4813, %v5331
        %v5357 = vmul.f32 %v4814, %v5333
        %v5358 = vmul.f32 %v4815, %v5335
        %v5359 = vmul.f32 %v4816, %v5337
        %v5360 = vmul.f32 %v4817, %v5339
        %v5361 = vmul.f32 %v4818, %v5341
        %v5362 = vmul.f32 %v4819, %v5343
        %v5363 = vmul.f32 %v4820, %v5345
        %v5364 = vmul.f32 %v4821, %v5347
        %v5365 = vmul.f32 %v4822, %v5349
        %5366 = vst [vmem:[%s379] sm:$0xff] %v5350
        %5367 = vst [vmem:[%s379 + $0x8] sm:$0xff] %v5351
        %5368 = vst [vmem:[%s379 + $0x10] sm:$0xff] %v5352
        %5369 = vst [vmem:[%s379 + $0x18] sm:$0xff] %v5353
        %5370 = vst [vmem:[%s379 + $0x20] sm:$0xff] %v5354
        %5371 = vst [vmem:[%s379 + $0x28] sm:$0xff] %v5355
        %5372 = vst [vmem:[%s379 + $0x30] sm:$0xff] %v5356
        %5373 = vst [vmem:[%s379 + $0x38] sm:$0xff] %v5357
        %5374 = vst [vmem:[%s379 + $0x40] sm:$0xff] %v5358
        %5375 = vst [vmem:[%s379 + $0x48] sm:$0xff] %v5359
        %5376 = vst [vmem:[%s379 + $0x50] sm:$0xff] %v5360
        %5377 = vst [vmem:[%s379 + $0x58] sm:$0xff] %v5361
        %5378 = vst [vmem:[%s379 + $0x60] sm:$0xff] %v5362
        %5379 = vst [vmem:[%s379 + $0x68] sm:$0xff] %v5363
        %5380 = vst [vmem:[%s379 + $0x70] sm:$0xff] %v5364
        %5381 = vst [vmem:[%s379 + $0x78] sm:$0xff] %v5365
        %s5382 = sand.u32 %s269, 1
        %s5383 = scalar_lea.sflag [#allocation3], %s5382
        %s5384 = sand.u32 %s269, 1
        %s5385 = smul.addr %s5384, 128
        %s5386 = scalar_lea.vmem [#allocation2], %s5385
        // Predicated region
        $region65: #{feature_extraction_pallas.1} parent=63 // pred_check
          %p5387 = pneg %p279
        $region66: #{feature_extraction_pallas.1} parent=63 // pred_check_branch
          %5389 = sbr.rel (%p5387) target = $region68
        $region67: #{feature_extraction_pallas.1} parent=63 // pred_region
          %s5391 = ssub.s32 2048, 2048
          %5392 = vsyncadd %s5383, %s5391
          %s5393 = smul.addr %s25, 16
          %s5394 = smul.addr %s5393, 128
          %s5395 = scalar_lea.hbm %s11, %s5394
          %s5396 = sshll.u32 %s5386, 4
          %s5397 = int_to_ptr.vmem [resolvable:$true] %s5396
          %5402 = dma.vmem_to_hbm [thread:$0]  %s5397, 2048, %s5395, %s5383, 128, 128, 8
        $region68: #{feature_extraction_pallas.1} parent=63 // pred_fallthru
          _
      $region64: #{feature_extraction_pallas.1} parent=5 // pred_fallthru
        _
      %p5403 = scmp.le.s32.totalorder 2, %s20
      // Predicated region
      $region69: #{feature_extraction_pallas.1} parent=5 // pred_check
        %p5404 = pneg %p5403
      $region70: #{feature_extraction_pallas.1} parent=5 // pred_check_branch
        %5406 = sbr.rel (%p5404) target = $region72
      $region71: #{feature_extraction_pallas.1} parent=5 // pred_region
        %s5407 = ssub.s32 %s20, 2
        // Predicated region
        $region73: #{feature_extraction_pallas.1} parent=71 // pred_check
          %p5408 = pneg %p285
        $region74: #{feature_extraction_pallas.1} parent=71 // pred_check_branch
          %5410 = sbr.rel (%p5408) target = $region76
        $region75: #{feature_extraction_pallas.1} parent=71 // pred_region
          %s5411 = sand.u32 %s270, 1
          %s5412 = scalar_lea.sflag [#allocation3], %s5411
          %s5413 = sand.u32 %s270, 1
          %s5414 = smul.addr %s5413, 128
          %s5415 = scalar_lea.vmem [#allocation2], %s5414
          %5416 = dma.done %s5412, 2048
        $region76: #{feature_extraction_pallas.1} parent=71 // pred_fallthru
          _
      $region72: #{feature_extraction_pallas.1} parent=5 // pred_fallthru
        _
    $region6: #{feature_extraction_pallas.1} parent=1 // loop_footer
      %s24 = sadd.s32 1, %s20
    $region7: #{feature_extraction_pallas.1} parent=1 // loop_footer_branch
      %19 = sbr.rel target = $region3
    $region8: #{feature_extraction_pallas.1} parent=1 // loop_exit
      _
    %5417 = vsyncpa [#allocation3], 1
    %s5418 = scalar_lea.sflag [#allocation3], 1
    %5419 = vsyncpa %s5418, 1

</llo_original>
